<compile_context>
chip_gen: v5e
topology: v5e:2x2
jax: 0.10.0
libtpu: 0.0.40
codegen_flags: <defaults>
</compile_context>

<pallas_src>
import functools
import math

import jax
import jax.numpy as jnp
from jax.experimental import pallas as pl
from jax.experimental.pallas import tpu as pltpu


def _mdot(a, b):
    """MXU matmul: bf16 operands (no-op cast if already bf16), f32 accumulation."""
    return jnp.dot(a.astype(jnp.bfloat16), b.astype(jnp.bfloat16),
                   preferred_element_type=jnp.float32)


# ---------------------------------------------------------------------------
# Fully fused per-batch-element kernel
# ---------------------------------------------------------------------------
def _fused_kernel(
        # per-batch-element blocks
        x_ref, demb_ref, cond_ref,
        # precomputed layout constants (DMA'd once, grid-invariant)
        smask_ref, startmask_ref,
        # parameters (pre-packed; matmul weights already bf16)
        diff_w_ref, diff_b_ref,
        ln_aff_ref, taps3a_ref, taps5_ref, taps3b_ref, cbias_ref,
        t_ln_ref, head_block_ref, wqkv_ref, bqkv_ref, wo_ref, bo_ref,
        wff1_ref, bff1_ref, wff2_ref, bff2_ref,
        wmc_ref, bmc_ref, out_w_ref, out_b_ref,
        # outputs
        res_ref, skip_ref,
        # scratch
        stack_ref,
        *, C, K, L, Fdim, nheads, use_feature):
    M = K * L
    inv_CL = 1.0 / (C * L)
    inv_C = 1.0 / C
    INV_RES = 1.0 / 1.414213            # literal from the PyTorch source
    INV_SQRT2 = 1.0 / math.sqrt(2.0)

    # ---- lane-shift helpers (XLU) ------------------------------------------
    def shiftL(v, n):                   # out[:, m] = v[:, (m + n) % M]
        return pltpu.roll(v, shift=(-n) % M, axis=1)

    def shiftR(v, n):                   # out[:, m] = v[:, (m - n) % M]
        return pltpu.roll(v, shift=n % M, axis=1)

    start_mask = startmask_ref[...]     # (C, M): 1.0 at the first lane of each sample

    def _window(v, shift_fn):
        """Cyclic running sum over L consecutive lanes (binary decomposition)."""
        pows = [v]                      # pows[k] = window of length 2**k
        k = 0
        while (2 << k) <= L:
            p = pows[k]
            pows.append(p + shift_fn(p, 1 << k))
            k += 1
        acc, offset, bit, rem = None, 0, 0, L
        while rem:
            if rem & 1:
                part = pows[bit] if offset == 0 else shift_fn(pows[bit], offset)
                acc = part if acc is None else acc + part
                offset += 1 << bit
            rem >>= 1
            bit += 1
        return acc

    def seg_total(v):
        """(C, M) -> (1, M): per-sample (L-lane segment) sum over C*L, broadcast."""
        w = _window(v, shiftL)                    # forward window of length L
        w = _window(w * start_mask, shiftR)       # broadcast segment-start value
        return jnp.sum(w, axis=0, keepdims=True)  # sublane reduce over channels

    def ln_sample(v, w_aff, b_aff):
        """nn.LayerNorm([C, L]) per packed sample -- no (M, M) matmuls."""
        mean = seg_total(v) * inv_CL
        d = v - mean
        var = seg_total(d * d) * inv_CL
        return d * jax.lax.rsqrt(var + 1e-5) * w_aff + b_aff

    def ln_channels(v, w_col, b_col):
        """nn.LayerNorm(C): normalize over channels (sublanes) per position."""
        mu = jnp.sum(v, axis=0, keepdims=True) * inv_C
        d = v - mu
        var = jnp.sum(d * d, axis=0, keepdims=True) * inv_C
        return d * jax.lax.rsqrt(var + 1e-5) * w_col + b_col

    _S2IDX = {-2: 0, -1: 1, 1: 2, 2: 3}

    def shift_masked(v, s):
        if s == 0:
            return v
        return shiftL(v, s) * smask_ref[_S2IDX[s]]

    def conv_same(v, taps, bias, ksize):
        """'same' Conv1d over L per packed sample as ONE (C,ksize*C)@(ksize*C,M) dot."""
        pad = ksize // 2
        for t in range(ksize):
            stack_ref[t * C:(t + 1) * C, :] = shift_masked(v, t - pad)
        return _mdot(taps, stack_ref[:ksize * C, :]) + bias

    # ---- diffusion projection + broadcast add (VPU/XLU) ---------------------
    d_emb = (jnp.sum(diff_w_ref[...] * demb_ref[...], axis=1, keepdims=True)
             + diff_b_ref[...])                                        # (C, 1)
    y = x_ref[...] + d_emb

    # ---- time layer: 3 fused Conv1dResLayers --------------------------------
    for blk in range(3):
        aff = ln_aff_ref[blk]            # (4, C, M): ln1 w/b, ln2 w/b
        cb = cbias_ref[blk]              # (3, C, 1)
        h = ln_sample(y, aff[0], aff[1])
        h = conv_same(h, taps3a_ref[blk], cb[0], 3)
        h = h * jax.nn.sigmoid(h)        # SiLU
        h = ln_sample(h, aff[2], aff[3])
        h = conv_same(h, taps5_ref[blk], cb[1], 5)
        h = h * jax.nn.sigmoid(h)
        h = conv_same(h, taps3b_ref[blk], cb[2], 3)
        y = (h + y) * INV_RES

    # ---- feature layer: pre-norm TransformerEncoderLayer over K -------------
    if use_feature:                      # PyTorch skips the layer when K == 1
        Dh = C // nheads
        scale = 1.0 / math.sqrt(Dh)
        hb = head_block_ref[...]         # (C, C) bf16 0/1 head-membership matrix

        h1 = ln_channels(y, t_ln_ref[0], t_ln_ref[1])
        qkv = _mdot(wqkv_ref[...], h1) + bqkv_ref[...]                 # (3C, M)
        q, k_, v_ = qkv[:C] * scale, qkv[C:2 * C], qkv[2 * C:]

        # streaming (flash-style) softmax over the K relative feature offsets
        s0 = _mdot(hb, q * k_)           # per-head score broadcast over head channels
        m_i, l_i, acc = s0, jnp.ones_like(s0), v_
        for r in range(1, K):
            k_r = shiftL(k_, r * L)
            v_r = shiftL(v_, r * L)
            s_r = _mdot(hb, q * k_r)
            m_new = jnp.maximum(m_i, s_r)
            a = jnp.exp(m_i - m_new)
            p = jnp.exp(s_r - m_new)
            l_i = a * l_i + p
            acc = a * acc + p * v_r
            m_i = m_new
        attn = acc * pl.reciprocal(l_i, approx=True)
        y = y + _mdot(wo_ref[...], attn) + bo_ref[...]                 # residual 1

        h2 = ln_channels(y, t_ln_ref[2], t_ln_ref[3])
        f = jnp.maximum(_mdot(wff1_ref[...], h2) + bff1_ref[...], 0.0)  # ReLU
        y = y + _mdot(wff2_ref[...], f) + bff2_ref[...]                # residual 2

    # ---- fused mid+cond projection, gating, output projection ---------------
    stack_ref[:C, :] = y
    stack_ref[C:C + Fdim, :] = cond_ref[...]
    z = _mdot(wmc_ref[...], stack_ref[:C + Fdim, :]) + bmc_ref[...]    # (2C, M)
    g = jax.nn.sigmoid(z[:C]) * jnp.tanh(z[C:])
    out = _mdot(out_w_ref[...], g) + out_b_ref[...]                    # (2C, M)
    res_ref[...] = (x_ref[...] + out[:C]) * INV_SQRT2
    skip_ref[...] = out[C:]


# ---------------------------------------------------------------------------
# Wrapper-side packing of constants / parameters (done once, outside the grid)
# ---------------------------------------------------------------------------
def _layout_constants(C, K, L, nheads):
    M = K * L
    lane = (jnp.arange(M, dtype=jnp.int32) % L)[None, :]               # (1, M)

    def mask(s):
        ok = (lane + s >= 0) & (lane + s < L)
        return jnp.broadcast_to(ok, (C, M)).astype(jnp.float32)

    smask = jnp.stack([mask(-2), mask(-1), mask(1), mask(2)])          # (4, C, M)
    startmask = jnp.broadcast_to(lane == 0, (C, M)).astype(jnp.float32)
    hid = jnp.arange(C, dtype=jnp.int32) // (C // nheads)
    head_block = (hid[:, None] == hid[None, :]).astype(jnp.bfloat16)   # (C, C)
    return smask, startmask, head_block


def _pack_params(p, K):
    bf16, f32 = jnp.bfloat16, jnp.float32

    def taps_mat(w):                 # (Cout, Cin, ks) -> (Cout, ks*Cin) bf16
        Co, Ci, ks = w.shape
        return jnp.transpose(w, (0, 2, 1)).reshape(Co, ks * Ci).astype(bf16)

    ln_aff, t3a, t5, t3b, cb = [], [], [], [], []
    for blk in p['time_layer']:
        ln_aff.append(jnp.stack([jnp.tile(blk['norm1_w'], (1, K)),
                                 jnp.tile(blk['norm1_b'], (1, K)),
                                 jnp.tile(blk['norm2_w'], (1, K)),
                                 jnp.tile(blk['norm2_b'], (1, K))]))
        t3a.append(taps_mat(blk['conv1_w']))
        t5.append(taps_mat(blk['conv2_w']))
        t3b.append(taps_mat(blk['conv3_w']))
        cb.append(jnp.stack([blk['conv1_b'][:, None],
                             blk['conv2_b'][:, None],
                             blk['conv3_b'][:, None]]))
    t = p['feature_layer']
    return dict(
        diff_w=p['diff_w'].astype(f32),
        diff_b=p['diff_b'][:, None].astype(f32),
        ln_aff=jnp.stack(ln_aff).astype(f32),                 # (3, 4, C, M)
        taps3a=jnp.stack(t3a), taps5=jnp.stack(t5), taps3b=jnp.stack(t3b),
        cbias=jnp.stack(cb).astype(f32),                      # (3, 3, C, 1)
        t_ln=jnp.stack([t['norm1_w'][:, None], t['norm1_b'][:, None],
                        t['norm2_w'][:, None], t['norm2_b'][:, None]]).astype(f32),
        wqkv=t['in_proj_w'].astype(bf16),
        bqkv=t['in_proj_b'][:, None].astype(f32),
        wo=t['out_proj_w'].astype(bf16),
        bo=t['out_proj_b'][:, None].astype(f32),
        wff1=t['linear1_w'].astype(bf16),
        bff1=t['linear1_b'][:, None].astype(f32),
        wff2=t['linear2_w'].astype(bf16),
        bff2=t['linear2_b'][:, None].astype(f32),
        # fused [mid | cond] 1x1 projection
        wmc=jnp.concatenate([p['mid_w'][:, :, 0], p['cond_w'][:, :, 0]],
                            axis=1).astype(bf16),
        bmc=(p['mid_b'] + p['cond_b'])[:, None].astype(f32),
        out_w=p['out_w'][:, :, 0].astype(bf16),
        out_b=p['out_b'][:, None].astype(f32),
    )


# ---------------------------------------------------------------------------
# Wrapper: one pallas_call for the whole ResidualConvBlock forward
# ---------------------------------------------------------------------------
def residual_conv_block_forward(params, x, feature_embed, diffusion_emb, nheads):
    B, C, K, L = x.shape
    assert C % nheads == 0, "channels must be divisible by nheads"
    M = K * L
    Fdim = feature_embed.shape[1]
    Ddim = diffusion_emb.shape[1]
    use_feature = K > 1

    x_flat = x.reshape(B, C, M)                 # contiguous (free) reshapes only
    cond = feature_embed.reshape(B, Fdim, M)
    demb = diffusion_emb.reshape(B, 1, Ddim)

    smask, startmask, head_block = _layout_constants(C, K, L, nheads)
    pp = _pack_params(params, K)

    operands = [x_flat, demb, cond, smask, startmask,
                pp['diff_w'], pp['diff_b'],
                pp['ln_aff'], pp['taps3a'], pp['taps5'], pp['taps3b'], pp['cbias'],
                pp['t_ln'], head_block, pp['wqkv'], pp['bqkv'], pp['wo'], pp['bo'],
                pp['wff1'], pp['bff1'], pp['wff2'], pp['bff2'],
                pp['wmc'], pp['bmc'], pp['out_w'], pp['out_b']]

    def full_spec(a):
        return pl.BlockSpec(a.shape, lambda b, _nd=a.ndim: (0,) * _nd)

    in_specs = ([pl.BlockSpec((None, C, M), lambda b: (b, 0, 0)),
                 pl.BlockSpec((None, 1, Ddim), lambda b: (b, 0, 0)),
                 pl.BlockSpec((None, Fdim, M), lambda b: (b, 0, 0))]
                + [full_spec(a) for a in operands[3:]])

    stack_rows = max(5 * C, C + Fdim)
    stack_rows = ((stack_rows + 7) // 8) * 8

    kernel = functools.partial(_fused_kernel, C=C, K=K, L=L, Fdim=Fdim,
                               nheads=nheads, use_feature=use_feature)

    grid_spec = pltpu.PrefetchScalarGridSpec(
        num_scalar_prefetch=0,
        grid=(B,),
        in_specs=in_specs,
        out_specs=[pl.BlockSpec((None, C, M), lambda b: (b, 0, 0)),
                   pl.BlockSpec((None, C, M), lambda b: (b, 0, 0))],
        scratch_shapes=[pltpu.VMEM((stack_rows, M), jnp.float32)],
    )

    res, skip = pl.pallas_call(
        kernel,
        out_shape=(jax.ShapeDtypeStruct((B, C, M), jnp.float32),
                   jax.ShapeDtypeStruct((B, C, M), jnp.float32)),
        grid_spec=grid_spec,
        compiler_params=pltpu.CompilerParams(dimension_semantics=("parallel",)),
    )(*operands)

    return res.reshape(B, C, K, L), skip.reshape(B, C, K, L)


# ---------------------------------------------------------------------------
# Deterministic synthetic parameters (PyTorch-natural shapes, repacked above)
# ---------------------------------------------------------------------------
def init_params(key, C, L, K, Fdim, Ddim, nheads, ff=64):
    keys = iter(jax.random.split(key, 64))
    nrm = lambda shape, scale: jax.random.normal(next(keys), shape, jnp.float32) * scale
    p = {}
    # diffusion_projection: nn.Linear(Ddim, C)
    p['diff_w'] = nrm((C, Ddim), 1.0 / math.sqrt(Ddim))
    p['diff_b'] = nrm((C,), 0.02)
    # time_layer: 3 x Conv1dResLayer(C, C, L)
    p['time_layer'] = []
    for _ in range(3):
        p['time_layer'].append(dict(
            norm1_w=jnp.ones((C, L), jnp.float32), norm1_b=jnp.zeros((C, L), jnp.float32),
            norm2_w=jnp.ones((C, L), jnp.float32), norm2_b=jnp.zeros((C, L), jnp.float32),
            conv1_w=nrm((C, C, 3), math.sqrt(2.0 / (C * 3))), conv1_b=nrm((C,), 0.02),
            conv2_w=nrm((C, C, 5), math.sqrt(2.0 / (C * 5))), conv2_b=nrm((C,), 0.02),
            conv3_w=nrm((C, C, 3), math.sqrt(2.0 / (C * 3))), conv3_b=nrm((C,), 0.02),
        ))
    # feature_layer: pre-norm TransformerEncoderLayer(d_model=C, nhead, ff=64, relu)
    p['feature_layer'] = dict(
        norm1_w=jnp.ones((C,), jnp.float32), norm1_b=jnp.zeros((C,), jnp.float32),
        norm2_w=jnp.ones((C,), jnp.float32), norm2_b=jnp.zeros((C,), jnp.float32),
        in_proj_w=nrm((3 * C, C), 1.0 / math.sqrt(C)), in_proj_b=nrm((3 * C,), 0.02),
        out_proj_w=nrm((C, C), 1.0 / math.sqrt(C)), out_proj_b=nrm((C,), 0.02),
        linear1_w=nrm((ff, C), 1.0 / math.sqrt(C)), linear1_b=nrm((ff,), 0.02),
        linear2_w=nrm((C, ff), 1.0 / math.sqrt(ff)), linear2_b=nrm((C,), 0.02),
    )
    # 1x1 convs (Conv1d_with_init): weight (Cout, Cin, 1), bias (Cout,)
    p['mid_w'] = nrm((2 * C, C, 1), math.sqrt(2.0 / C)); p['mid_b'] = nrm((2 * C,), 0.02)
    p['cond_w'] = nrm((2 * C, Fdim, 1), math.sqrt(2.0 / Fdim)); p['cond_b'] = nrm((2 * C,), 0.02)
    p['out_w'] = nrm((2 * C, C, 1), math.sqrt(2.0 / C)); p['out_b'] = nrm((2 * C,), 0.02)
    return p


# ---------------------------------------------------------------------------
if __name__ == "__main__":
    B, C, K, L = 2, 8, 8, 16          # K*L = 128 -> lane-dense activation tiles
    Fdim = 16                         # feature_embed_dim (cond_dim)
    Ddim = 16                         # diffusion_embedding_dim
    nheads = 4                        # must divide channels

    key = jax.random.PRNGKey(0)
    kx, kf, kd, kp = jax.random.split(key, 4)
    x = jax.random.normal(kx, (B, C, K, L), jnp.float32)
    feature_embed = jax.random.normal(kf, (B, Fdim, K, L), jnp.float32)
    diffusion_emb = jax.random.normal(kd, (B, Ddim), jnp.float32)
    params = init_params(kp, C, L, K, Fdim, Ddim, nheads)

    fwd = jax.jit(functools.partial(residual_conv_block_forward, nheads=nheads))
    res, skip = fwd(params, x, feature_embed, diffusion_emb)
    jax.block_until_ready((res, skip))
    assert res.shape == (B, C, K, L) and skip.shape == (B, C, K, L)
    assert bool(jnp.all(jnp.isfinite(res))) and bool(jnp.all(jnp.isfinite(skip)))
    print("KERNEL_OK")
</pallas_src>

<mosaic_0001>
module attributes {stable_mosaic.version = 11 : i64} {
  func.func @_fused_kernel(%arg0: i32, %arg1: memref<1x8x128xf32, #tpu.memory_space<vmem>>, %arg2: memref<1x1x16xf32, #tpu.memory_space<vmem>>, %arg3: memref<1x16x128xf32, #tpu.memory_space<vmem>>, %arg4: memref<4x8x128xf32, #tpu.memory_space<vmem>>, %arg5: memref<8x128xf32, #tpu.memory_space<vmem>>, %arg6: memref<8x16xf32, #tpu.memory_space<vmem>>, %arg7: memref<8x1xf32, #tpu.memory_space<vmem>>, %arg8: memref<3x4x8x128xf32, #tpu.memory_space<vmem>>, %arg9: memref<3x8x24xbf16, #tpu.memory_space<vmem>>, %arg10: memref<3x8x40xbf16, #tpu.memory_space<vmem>>, %arg11: memref<3x8x24xbf16, #tpu.memory_space<vmem>>, %arg12: memref<3x3x8x1xf32, #tpu.memory_space<vmem>>, %arg13: memref<4x8x1xf32, #tpu.memory_space<vmem>>, %arg14: memref<8x8xbf16, #tpu.memory_space<vmem>>, %arg15: memref<24x8xbf16, #tpu.memory_space<vmem>>, %arg16: memref<24x1xf32, #tpu.memory_space<vmem>>, %arg17: memref<8x8xbf16, #tpu.memory_space<vmem>>, %arg18: memref<8x1xf32, #tpu.memory_space<vmem>>, %arg19: memref<64x8xbf16, #tpu.memory_space<vmem>>, %arg20: memref<64x1xf32, #tpu.memory_space<vmem>>, %arg21: memref<8x64xbf16, #tpu.memory_space<vmem>>, %arg22: memref<8x1xf32, #tpu.memory_space<vmem>>, %arg23: memref<16x24xbf16, #tpu.memory_space<vmem>>, %arg24: memref<16x1xf32, #tpu.memory_space<vmem>>, %arg25: memref<16x8xbf16, #tpu.memory_space<vmem>>, %arg26: memref<16x1xf32, #tpu.memory_space<vmem>>, %arg27: memref<1x8x128xf32, #tpu.memory_space<vmem>>, %arg28: memref<1x8x128xf32, #tpu.memory_space<vmem>>, %arg29: memref<40x128xf32, #tpu.memory_space<vmem>>) attributes {dimension_semantics = [#tpu.dimension_semantics<parallel>], iteration_bounds = array<i64: 2>, scalar_prefetch = 0 : i64, scratch_operands = 1 : i64, tpu.core_type = #tpu.core_type<tc>, window_params = [{transform_indices = @transform_0, window_bounds = array<i64: 1, 8, 128>}, {transform_indices = @transform_1, window_bounds = array<i64: 1, 1, 16>}, {transform_indices = @transform_2, window_bounds = array<i64: 1, 16, 128>}, {pipeline_mode = #tpu.pipeline_mode<synchronous>, transform_indices = @transform_3, window_bounds = array<i64: 4, 8, 128>}, {pipeline_mode = #tpu.pipeline_mode<synchronous>, transform_indices = @transform_4, window_bounds = array<i64: 8, 128>}, {pipeline_mode = #tpu.pipeline_mode<synchronous>, transform_indices = @transform_5, window_bounds = array<i64: 8, 16>}, {pipeline_mode = #tpu.pipeline_mode<synchronous>, transform_indices = @transform_6, window_bounds = array<i64: 8, 1>}, {pipeline_mode = #tpu.pipeline_mode<synchronous>, transform_indices = @transform_7, window_bounds = array<i64: 3, 4, 8, 128>}, {pipeline_mode = #tpu.pipeline_mode<synchronous>, transform_indices = @transform_8, window_bounds = array<i64: 3, 8, 24>}, {pipeline_mode = #tpu.pipeline_mode<synchronous>, transform_indices = @transform_9, window_bounds = array<i64: 3, 8, 40>}, {pipeline_mode = #tpu.pipeline_mode<synchronous>, transform_indices = @transform_10, window_bounds = array<i64: 3, 8, 24>}, {pipeline_mode = #tpu.pipeline_mode<synchronous>, transform_indices = @transform_11, window_bounds = array<i64: 3, 3, 8, 1>}, {pipeline_mode = #tpu.pipeline_mode<synchronous>, transform_indices = @transform_12, window_bounds = array<i64: 4, 8, 1>}, {pipeline_mode = #tpu.pipeline_mode<synchronous>, transform_indices = @transform_13, window_bounds = array<i64: 8, 8>}, {pipeline_mode = #tpu.pipeline_mode<synchronous>, transform_indices = @transform_14, window_bounds = array<i64: 24, 8>}, {pipeline_mode = #tpu.pipeline_mode<synchronous>, transform_indices = @transform_15, window_bounds = array<i64: 24, 1>}, {pipeline_mode = #tpu.pipeline_mode<synchronous>, transform_indices = @transform_16, window_bounds = array<i64: 8, 8>}, {pipeline_mode = #tpu.pipeline_mode<synchronous>, transform_indices = @transform_17, window_bounds = array<i64: 8, 1>}, {pipeline_mode = #tpu.pipeline_mode<synchronous>, transform_indices = @transform_18, window_bounds = array<i64: 64, 8>}, {pipeline_mode = #tpu.pipeline_mode<synchronous>, transform_indices = @transform_19, window_bounds = array<i64: 64, 1>}, {pipeline_mode = #tpu.pipeline_mode<synchronous>, transform_indices = @transform_20, window_bounds = array<i64: 8, 64>}, {pipeline_mode = #tpu.pipeline_mode<synchronous>, transform_indices = @transform_21, window_bounds = array<i64: 8, 1>}, {pipeline_mode = #tpu.pipeline_mode<synchronous>, transform_indices = @transform_22, window_bounds = array<i64: 16, 24>}, {pipeline_mode = #tpu.pipeline_mode<synchronous>, transform_indices = @transform_23, window_bounds = array<i64: 16, 1>}, {pipeline_mode = #tpu.pipeline_mode<synchronous>, transform_indices = @transform_24, window_bounds = array<i64: 16, 8>}, {pipeline_mode = #tpu.pipeline_mode<synchronous>, transform_indices = @transform_25, window_bounds = array<i64: 16, 1>}, {transform_indices = @transform_26, window_bounds = array<i64: 1, 8, 128>}, {transform_indices = @transform_27, window_bounds = array<i64: 1, 8, 128>}]} {
    %c0 = arith.constant 0 : index
    %c0_0 = arith.constant 0 : index
    %0 = vector.load %arg5[%c0, %c0_0] : memref<8x128xf32, #tpu.memory_space<vmem>>, vector<8x128xf32>
    %c0_1 = arith.constant 0 : index
    %c0_2 = arith.constant 0 : index
    %1 = vector.load %arg6[%c0_1, %c0_2] : memref<8x16xf32, #tpu.memory_space<vmem>>, vector<8x16xf32>
    %c0_3 = arith.constant 0 : index
    %c0_4 = arith.constant 0 : index
    %c0_5 = arith.constant 0 : index
    %2 = vector.load %arg2[%c0_3, %c0_4, %c0_5] : memref<1x1x16xf32, #tpu.memory_space<vmem>>, vector<1x1x16xf32>
    %3 = vector.shape_cast %2 : vector<1x1x16xf32> to vector<1x16xf32>
    %4 = vector.broadcast %3 : vector<1x16xf32> to vector<8x16xf32>
    %5 = arith.mulf %1, %4 : vector<8x16xf32>
    %cst = arith.constant dense<0.000000e+00> : vector<8xf32>
    %6 = vector.multi_reduction <add>, %5, %cst [1] : vector<8x16xf32> to vector<8xf32>
    %7 = vector.shape_cast %6 : vector<8xf32> to vector<8x1xf32>
    %c0_6 = arith.constant 0 : index
    %c0_7 = arith.constant 0 : index
    %8 = vector.load %arg7[%c0_6, %c0_7] : memref<8x1xf32, #tpu.memory_space<vmem>>, vector<8x1xf32>
    %9 = arith.addf %7, %8 : vector<8x1xf32>
    %c0_8 = arith.constant 0 : index
    %c0_9 = arith.constant 0 : index
    %c0_10 = arith.constant 0 : index
    %10 = vector.load %arg1[%c0_8, %c0_9, %c0_10] : memref<1x8x128xf32, #tpu.memory_space<vmem>>, vector<1x8x128xf32>
    %11 = vector.shape_cast %10 : vector<1x8x128xf32> to vector<8x128xf32>
    %12 = vector.broadcast %9 : vector<8x1xf32> to vector<8x128xf32>
    %13 = arith.addf %11, %12 : vector<8x128xf32>
    %c0_11 = arith.constant 0 : index
    %c0_12 = arith.constant 0 : index
    %c0_13 = arith.constant 0 : index
    %c0_14 = arith.constant 0 : index
    %14 = vector.load %arg8[%c0_11, %c0_12, %c0_13, %c0_14] : memref<3x4x8x128xf32, #tpu.memory_space<vmem>>, vector<1x4x8x128xf32>
    %15 = vector.shape_cast %14 : vector<1x4x8x128xf32> to vector<4x8x128xf32>
    %c0_15 = arith.constant 0 : index
    %c0_16 = arith.constant 0 : index
    %c0_17 = arith.constant 0 : index
    %c0_18 = arith.constant 0 : index
    %16 = vector.load %arg12[%c0_15, %c0_16, %c0_17, %c0_18] : memref<3x3x8x1xf32, #tpu.memory_space<vmem>>, vector<1x3x8x1xf32>
    %17 = vector.shape_cast %16 : vector<1x3x8x1xf32> to vector<3x8x1xf32>
    %18 = vector.extract_strided_slice %15 {offsets = [0, 0, 0], sizes = [1, 8, 128], strides = [1, 1, 1]} : vector<4x8x128xf32> to vector<1x8x128xf32>
    %19 = vector.shape_cast %18 : vector<1x8x128xf32> to vector<8x128xf32>
    %20 = vector.extract_strided_slice %15 {offsets = [1, 0, 0], sizes = [1, 8, 128], strides = [1, 1, 1]} : vector<4x8x128xf32> to vector<1x8x128xf32>
    %21 = vector.shape_cast %20 : vector<1x8x128xf32> to vector<8x128xf32>
    %c127_i32 = arith.constant 127 : i32
    %22 = tpu.dynamic_rotate %13 by %c127_i32 dim 1 : vector<8x128xf32>, i32 -> vector<8x128xf32>
    %23 = arith.addf %13, %22 : vector<8x128xf32>
    %c126_i32 = arith.constant 126 : i32
    %24 = tpu.dynamic_rotate %23 by %c126_i32 dim 1 : vector<8x128xf32>, i32 -> vector<8x128xf32>
    %25 = arith.addf %23, %24 : vector<8x128xf32>
    %c124_i32 = arith.constant 124 : i32
    %26 = tpu.dynamic_rotate %25 by %c124_i32 dim 1 : vector<8x128xf32>, i32 -> vector<8x128xf32>
    %27 = arith.addf %25, %26 : vector<8x128xf32>
    %c120_i32 = arith.constant 120 : i32
    %28 = tpu.dynamic_rotate %27 by %c120_i32 dim 1 : vector<8x128xf32>, i32 -> vector<8x128xf32>
    %29 = arith.addf %27, %28 : vector<8x128xf32>
    %30 = arith.mulf %29, %0 : vector<8x128xf32>
    %c1_i32 = arith.constant 1 : i32
    %31 = tpu.dynamic_rotate %30 by %c1_i32 dim 1 : vector<8x128xf32>, i32 -> vector<8x128xf32>
    %32 = arith.addf %30, %31 : vector<8x128xf32>
    %c2_i32 = arith.constant 2 : i32
    %33 = tpu.dynamic_rotate %32 by %c2_i32 dim 1 : vector<8x128xf32>, i32 -> vector<8x128xf32>
    %34 = arith.addf %32, %33 : vector<8x128xf32>
    %c4_i32 = arith.constant 4 : i32
    %35 = tpu.dynamic_rotate %34 by %c4_i32 dim 1 : vector<8x128xf32>, i32 -> vector<8x128xf32>
    %36 = arith.addf %34, %35 : vector<8x128xf32>
    %c8_i32 = arith.constant 8 : i32
    %37 = tpu.dynamic_rotate %36 by %c8_i32 dim 1 : vector<8x128xf32>, i32 -> vector<8x128xf32>
    %38 = arith.addf %36, %37 : vector<8x128xf32>
    %cst_19 = arith.constant dense<0.000000e+00> : vector<128xf32>
    %39 = vector.multi_reduction <add>, %38, %cst_19 [0] : vector<8x128xf32> to vector<128xf32>
    %40 = vector.shape_cast %39 : vector<128xf32> to vector<1x128xf32>
    %cst_20 = arith.constant 7.812500e-03 : f32
    %41 = vector.broadcast %cst_20 : f32 to vector<1x128xf32>
    %42 = arith.mulf %40, %41 : vector<1x128xf32>
    %43 = vector.broadcast %42 : vector<1x128xf32> to vector<8x128xf32>
    %44 = arith.subf %13, %43 : vector<8x128xf32>
    %45 = arith.mulf %44, %44 : vector<8x128xf32>
    %c127_i32_21 = arith.constant 127 : i32
    %46 = tpu.dynamic_rotate %45 by %c127_i32_21 dim 1 : vector<8x128xf32>, i32 -> vector<8x128xf32>
    %47 = arith.addf %45, %46 : vector<8x128xf32>
    %c126_i32_22 = arith.constant 126 : i32
    %48 = tpu.dynamic_rotate %47 by %c126_i32_22 dim 1 : vector<8x128xf32>, i32 -> vector<8x128xf32>
    %49 = arith.addf %47, %48 : vector<8x128xf32>
    %c124_i32_23 = arith.constant 124 : i32
    %50 = tpu.dynamic_rotate %49 by %c124_i32_23 dim 1 : vector<8x128xf32>, i32 -> vector<8x128xf32>
    %51 = arith.addf %49, %50 : vector<8x128xf32>
    %c120_i32_24 = arith.constant 120 : i32
    %52 = tpu.dynamic_rotate %51 by %c120_i32_24 dim 1 : vector<8x128xf32>, i32 -> vector<8x128xf32>
    %53 = arith.addf %51, %52 : vector<8x128xf32>
    %54 = arith.mulf %53, %0 : vector<8x128xf32>
    %c1_i32_25 = arith.constant 1 : i32
    %55 = tpu.dynamic_rotate %54 by %c1_i32_25 dim 1 : vector<8x128xf32>, i32 -> vector<8x128xf32>
    %56 = arith.addf %54, %55 : vector<8x128xf32>
    %c2_i32_26 = arith.constant 2 : i32
    %57 = tpu.dynamic_rotate %56 by %c2_i32_26 dim 1 : vector<8x128xf32>, i32 -> vector<8x128xf32>
    %58 = arith.addf %56, %57 : vector<8x128xf32>
    %c4_i32_27 = arith.constant 4 : i32
    %59 = tpu.dynamic_rotate %58 by %c4_i32_27 dim 1 : vector<8x128xf32>, i32 -> vector<8x128xf32>
    %60 = arith.addf %58, %59 : vector<8x128xf32>
    %c8_i32_28 = arith.constant 8 : i32
    %61 = tpu.dynamic_rotate %60 by %c8_i32_28 dim 1 : vector<8x128xf32>, i32 -> vector<8x128xf32>
    %62 = arith.addf %60, %61 : vector<8x128xf32>
    %cst_29 = arith.constant dense<0.000000e+00> : vector<128xf32>
    %63 = vector.multi_reduction <add>, %62, %cst_29 [0] : vector<8x128xf32> to vector<128xf32>
    %64 = vector.shape_cast %63 : vector<128xf32> to vector<1x128xf32>
    %cst_30 = arith.constant 7.812500e-03 : f32
    %65 = vector.broadcast %cst_30 : f32 to vector<1x128xf32>
    %66 = arith.mulf %64, %65 : vector<1x128xf32>
    %cst_31 = arith.constant 9.99999974E-6 : f32
    %67 = vector.broadcast %cst_31 : f32 to vector<1x128xf32>
    %68 = arith.addf %66, %67 : vector<1x128xf32>
    %69 = math.rsqrt %68 : vector<1x128xf32>
    %70 = vector.broadcast %69 : vector<1x128xf32> to vector<8x128xf32>
    %71 = arith.mulf %44, %70 : vector<8x128xf32>
    %72 = arith.mulf %71, %19 : vector<8x128xf32>
    %73 = arith.addf %72, %21 : vector<8x128xf32>
    %c0_32 = arith.constant 0 : index
    %c0_33 = arith.constant 0 : index
    %c0_34 = arith.constant 0 : index
    %74 = vector.load %arg9[%c0_32, %c0_33, %c0_34] : memref<3x8x24xbf16, #tpu.memory_space<vmem>>, vector<1x8x24xbf16>
    %75 = vector.shape_cast %74 : vector<1x8x24xbf16> to vector<8x24xbf16>
    %76 = vector.extract_strided_slice %17 {offsets = [0, 0, 0], sizes = [1, 8, 1], strides = [1, 1, 1]} : vector<3x8x1xf32> to vector<1x8x1xf32>
    %77 = vector.shape_cast %76 : vector<1x8x1xf32> to vector<8x1xf32>
    %c1_i32_35 = arith.constant 1 : i32
    %78 = tpu.dynamic_rotate %73 by %c1_i32_35 dim 1 : vector<8x128xf32>, i32 -> vector<8x128xf32>
    %c1 = arith.constant 1 : index
    %c0_36 = arith.constant 0 : index
    %c0_37 = arith.constant 0 : index
    %79 = vector.load %arg4[%c1, %c0_36, %c0_37] : memref<4x8x128xf32, #tpu.memory_space<vmem>>, vector<1x8x128xf32>
    %80 = vector.shape_cast %79 : vector<1x8x128xf32> to vector<8x128xf32>
    %81 = arith.mulf %78, %80 : vector<8x128xf32>
    %c0_38 = arith.constant 0 : index
    %c0_39 = arith.constant 0 : index
    %82 = vector.load %arg29[%c0_38, %c0_39] : memref<40x128xf32, #tpu.memory_space<vmem>>, vector<8x128xf32>
    tpu.vector_store %arg29[%c0_38, %c0_39], %81 {strides = array<i32>} : memref<40x128xf32, #tpu.memory_space<vmem>>, vector<8x128xf32>,
    %c8 = arith.constant 8 : index
    %c0_40 = arith.constant 0 : index
    %83 = vector.load %arg29[%c8, %c0_40] : memref<40x128xf32, #tpu.memory_space<vmem>>, vector<8x128xf32>
    tpu.vector_store %arg29[%c8, %c0_40], %73 {strides = array<i32>} : memref<40x128xf32, #tpu.memory_space<vmem>>, vector<8x128xf32>,
    %c127_i32_41 = arith.constant 127 : i32
    %84 = tpu.dynamic_rotate %73 by %c127_i32_41 dim 1 : vector<8x128xf32>, i32 -> vector<8x128xf32>
    %c2 = arith.constant 2 : index
    %c0_42 = arith.constant 0 : index
    %c0_43 = arith.constant 0 : index
    %85 = vector.load %arg4[%c2, %c0_42, %c0_43] : memref<4x8x128xf32, #tpu.memory_space<vmem>>, vector<1x8x128xf32>
    %86 = vector.shape_cast %85 : vector<1x8x128xf32> to vector<8x128xf32>
    %87 = arith.mulf %84, %86 : vector<8x128xf32>
    %c16 = arith.constant 16 : index
    %c0_44 = arith.constant 0 : index
    %88 = vector.load %arg29[%c16, %c0_44] : memref<40x128xf32, #tpu.memory_space<vmem>>, vector<8x128xf32>
    tpu.vector_store %arg29[%c16, %c0_44], %87 {strides = array<i32>} : memref<40x128xf32, #tpu.memory_space<vmem>>, vector<8x128xf32>,
    %c0_45 = arith.constant 0 : index
    %c0_46 = arith.constant 0 : index
    %89 = vector.load %arg29[%c0_45, %c0_46] : memref<40x128xf32, #tpu.memory_space<vmem>>, vector<24x128xf32>
    %90 = arith.truncf %89 : vector<24x128xf32> to vector<24x128xbf16>
    %cst_47 = arith.constant dense<0.000000e+00> : vector<8x128xf32>
    %91 = tpu.matmul %75, %90, %cst_47 {dimension_numbers = #tpu.dot_dimension_numbers<[1], [0], [0], [1], [0, 0, 1, 1], [], []>} : vector<8x24xbf16>, vector<24x128xbf16>, vector<8x128xf32> -> vector<8x128xf32>
    %92 = vector.broadcast %77 : vector<8x1xf32> to vector<8x128xf32>
    %93 = arith.addf %91, %92 : vector<8x128xf32>
    %94 = arith.negf %93 : vector<8x128xf32>
    %95 = math.exp %94 : vector<8x128xf32>
    %cst_48 = arith.constant 1.000000e+00 : f32
    %96 = vector.broadcast %cst_48 : f32 to vector<8x128xf32>
    %97 = arith.addf %96, %95 : vector<8x128xf32>
    %98 = arith.divf %96, %97 : vector<8x128xf32>
    %99 = arith.mulf %93, %98 : vector<8x128xf32>
    %100 = vector.extract_strided_slice %15 {offsets = [2, 0, 0], sizes = [1, 8, 128], strides = [1, 1, 1]} : vector<4x8x128xf32> to vector<1x8x128xf32>
    %101 = vector.shape_cast %100 : vector<1x8x128xf32> to vector<8x128xf32>
    %102 = vector.extract_strided_slice %15 {offsets = [3, 0, 0], sizes = [1, 8, 128], strides = [1, 1, 1]} : vector<4x8x128xf32> to vector<1x8x128xf32>
    %103 = vector.shape_cast %102 : vector<1x8x128xf32> to vector<8x128xf32>
    %c127_i32_49 = arith.constant 127 : i32
    %104 = tpu.dynamic_rotate %99 by %c127_i32_49 dim 1 : vector<8x128xf32>, i32 -> vector<8x128xf32>
    %105 = arith.addf %99, %104 : vector<8x128xf32>
    %c126_i32_50 = arith.constant 126 : i32
    %106 = tpu.dynamic_rotate %105 by %c126_i32_50 dim 1 : vector<8x128xf32>, i32 -> vector<8x128xf32>
    %107 = arith.addf %105, %106 : vector<8x128xf32>
    %c124_i32_51 = arith.constant 124 : i32
    %108 = tpu.dynamic_rotate %107 by %c124_i32_51 dim 1 : vector<8x128xf32>, i32 -> vector<8x128xf32>
    %109 = arith.addf %107, %108 : vector<8x128xf32>
    %c120_i32_52 = arith.constant 120 : i32
    %110 = tpu.dynamic_rotate %109 by %c120_i32_52 dim 1 : vector<8x128xf32>, i32 -> vector<8x128xf32>
    %111 = arith.addf %109, %110 : vector<8x128xf32>
    %112 = arith.mulf %111, %0 : vector<8x128xf32>
    %c1_i32_53 = arith.constant 1 : i32
    %113 = tpu.dynamic_rotate %112 by %c1_i32_53 dim 1 : vector<8x128xf32>, i32 -> vector<8x128xf32>
    %114 = arith.addf %112, %113 : vector<8x128xf32>
    %c2_i32_54 = arith.constant 2 : i32
    %115 = tpu.dynamic_rotate %114 by %c2_i32_54 dim 1 : vector<8x128xf32>, i32 -> vector<8x128xf32>
    %116 = arith.addf %114, %115 : vector<8x128xf32>
    %c4_i32_55 = arith.constant 4 : i32
    %117 = tpu.dynamic_rotate %116 by %c4_i32_55 dim 1 : vector<8x128xf32>, i32 -> vector<8x128xf32>
    %118 = arith.addf %116, %117 : vector<8x128xf32>
    %c8_i32_56 = arith.constant 8 : i32
    %119 = tpu.dynamic_rotate %118 by %c8_i32_56 dim 1 : vector<8x128xf32>, i32 -> vector<8x128xf32>
    %120 = arith.addf %118, %119 : vector<8x128xf32>
    %cst_57 = arith.constant dense<0.000000e+00> : vector<128xf32>
    %121 = vector.multi_reduction <add>, %120, %cst_57 [0] : vector<8x128xf32> to vector<128xf32>
    %122 = vector.shape_cast %121 : vector<128xf32> to vector<1x128xf32>
    %cst_58 = arith.constant 7.812500e-03 : f32
    %123 = vector.broadcast %cst_58 : f32 to vector<1x128xf32>
    %124 = arith.mulf %122, %123 : vector<1x128xf32>
    %125 = vector.broadcast %124 : vector<1x128xf32> to vector<8x128xf32>
    %126 = arith.subf %99, %125 : vector<8x128xf32>
    %127 = arith.mulf %126, %126 : vector<8x128xf32>
    %c127_i32_59 = arith.constant 127 : i32
    %128 = tpu.dynamic_rotate %127 by %c127_i32_59 dim 1 : vector<8x128xf32>, i32 -> vector<8x128xf32>
    %129 = arith.addf %127, %128 : vector<8x128xf32>
    %c126_i32_60 = arith.constant 126 : i32
    %130 = tpu.dynamic_rotate %129 by %c126_i32_60 dim 1 : vector<8x128xf32>, i32 -> vector<8x128xf32>
    %131 = arith.addf %129, %130 : vector<8x128xf32>
    %c124_i32_61 = arith.constant 124 : i32
    %132 = tpu.dynamic_rotate %131 by %c124_i32_61 dim 1 : vector<8x128xf32>, i32 -> vector<8x128xf32>
    %133 = arith.addf %131, %132 : vector<8x128xf32>
    %c120_i32_62 = arith.constant 120 : i32
    %134 = tpu.dynamic_rotate %133 by %c120_i32_62 dim 1 : vector<8x128xf32>, i32 -> vector<8x128xf32>
    %135 = arith.addf %133, %134 : vector<8x128xf32>
    %136 = arith.mulf %135, %0 : vector<8x128xf32>
    %c1_i32_63 = arith.constant 1 : i32
    %137 = tpu.dynamic_rotate %136 by %c1_i32_63 dim 1 : vector<8x128xf32>, i32 -> vector<8x128xf32>
    %138 = arith.addf %136, %137 : vector<8x128xf32>
    %c2_i32_64 = arith.constant 2 : i32
    %139 = tpu.dynamic_rotate %138 by %c2_i32_64 dim 1 : vector<8x128xf32>, i32 -> vector<8x128xf32>
    %140 = arith.addf %138, %139 : vector<8x128xf32>
    %c4_i32_65 = arith.constant 4 : i32
    %141 = tpu.dynamic_rotate %140 by %c4_i32_65 dim 1 : vector<8x128xf32>, i32 -> vector<8x128xf32>
    %142 = arith.addf %140, %141 : vector<8x128xf32>
    %c8_i32_66 = arith.constant 8 : i32
    %143 = tpu.dynamic_rotate %142 by %c8_i32_66 dim 1 : vector<8x128xf32>, i32 -> vector<8x128xf32>
    %144 = arith.addf %142, %143 : vector<8x128xf32>
    %cst_67 = arith.constant dense<0.000000e+00> : vector<128xf32>
    %145 = vector.multi_reduction <add>, %144, %cst_67 [0] : vector<8x128xf32> to vector<128xf32>
    %146 = vector.shape_cast %145 : vector<128xf32> to vector<1x128xf32>
    %cst_68 = arith.constant 7.812500e-03 : f32
    %147 = vector.broadcast %cst_68 : f32 to vector<1x128xf32>
    %148 = arith.mulf %146, %147 : vector<1x128xf32>
    %cst_69 = arith.constant 9.99999974E-6 : f32
    %149 = vector.broadcast %cst_69 : f32 to vector<1x128xf32>
    %150 = arith.addf %148, %149 : vector<1x128xf32>
    %151 = math.rsqrt %150 : vector<1x128xf32>
    %152 = vector.broadcast %151 : vector<1x128xf32> to vector<8x128xf32>
    %153 = arith.mulf %126, %152 : vector<8x128xf32>
    %154 = arith.mulf %153, %101 : vector<8x128xf32>
    %155 = arith.addf %154, %103 : vector<8x128xf32>
    %c0_70 = arith.constant 0 : index
    %c0_71 = arith.constant 0 : index
    %c0_72 = arith.constant 0 : index
    %156 = vector.load %arg10[%c0_70, %c0_71, %c0_72] : memref<3x8x40xbf16, #tpu.memory_space<vmem>>, vector<1x8x40xbf16>
    %157 = vector.shape_cast %156 : vector<1x8x40xbf16> to vector<8x40xbf16>
    %158 = vector.extract_strided_slice %17 {offsets = [1, 0, 0], sizes = [1, 8, 1], strides = [1, 1, 1]} : vector<3x8x1xf32> to vector<1x8x1xf32>
    %159 = vector.shape_cast %158 : vector<1x8x1xf32> to vector<8x1xf32>
    %c2_i32_73 = arith.constant 2 : i32
    %160 = tpu.dynamic_rotate %155 by %c2_i32_73 dim 1 : vector<8x128xf32>, i32 -> vector<8x128xf32>
    %c0_74 = arith.constant 0 : index
    %c0_75 = arith.constant 0 : index
    %c0_76 = arith.constant 0 : index
    %161 = vector.load %arg4[%c0_74, %c0_75, %c0_76] : memref<4x8x128xf32, #tpu.memory_space<vmem>>, vector<1x8x128xf32>
    %162 = vector.shape_cast %161 : vector<1x8x128xf32> to vector<8x128xf32>
    %163 = arith.mulf %160, %162 : vector<8x128xf32>
    %c0_77 = arith.constant 0 : index
    %c0_78 = arith.constant 0 : index
    %164 = vector.load %arg29[%c0_77, %c0_78] : memref<40x128xf32, #tpu.memory_space<vmem>>, vector<8x128xf32>
    tpu.vector_store %arg29[%c0_77, %c0_78], %163 {strides = array<i32>} : memref<40x128xf32, #tpu.memory_space<vmem>>, vector<8x128xf32>,
    %c1_i32_79 = arith.constant 1 : i32
    %165 = tpu.dynamic_rotate %155 by %c1_i32_79 dim 1 : vector<8x128xf32>, i32 -> vector<8x128xf32>
    %c1_80 = arith.constant 1 : index
    %c0_81 = arith.constant 0 : index
    %c0_82 = arith.constant 0 : index
    %166 = vector.load %arg4[%c1_80, %c0_81, %c0_82] : memref<4x8x128xf32, #tpu.memory_space<vmem>>, vector<1x8x128xf32>
    %167 = vector.shape_cast %166 : vector<1x8x128xf32> to vector<8x128xf32>
    %168 = arith.mulf %165, %167 : vector<8x128xf32>
    %c8_83 = arith.constant 8 : index
    %c0_84 = arith.constant 0 : index
    %169 = vector.load %arg29[%c8_83, %c0_84] : memref<40x128xf32, #tpu.memory_space<vmem>>, vector<8x128xf32>
    tpu.vector_store %arg29[%c8_83, %c0_84], %168 {strides = array<i32>} : memref<40x128xf32, #tpu.memory_space<vmem>>, vector<8x128xf32>,
    %c16_85 = arith.constant 16 : index
    %c0_86 = arith.constant 0 : index
    %170 = vector.load %arg29[%c16_85, %c0_86] : memref<40x128xf32, #tpu.memory_space<vmem>>, vector<8x128xf32>
    tpu.vector_store %arg29[%c16_85, %c0_86], %155 {strides = array<i32>} : memref<40x128xf32, #tpu.memory_space<vmem>>, vector<8x128xf32>,
    %c127_i32_87 = arith.constant 127 : i32
    %171 = tpu.dynamic_rotate %155 by %c127_i32_87 dim 1 : vector<8x128xf32>, i32 -> vector<8x128xf32>
    %c2_88 = arith.constant 2 : index
    %c0_89 = arith.constant 0 : index
    %c0_90 = arith.constant 0 : index
    %172 = vector.load %arg4[%c2_88, %c0_89, %c0_90] : memref<4x8x128xf32, #tpu.memory_space<vmem>>, vector<1x8x128xf32>
    %173 = vector.shape_cast %172 : vector<1x8x128xf32> to vector<8x128xf32>
    %174 = arith.mulf %171, %173 : vector<8x128xf32>
    %c24 = arith.constant 24 : index
    %c0_91 = arith.constant 0 : index
    %175 = vector.load %arg29[%c24, %c0_91] : memref<40x128xf32, #tpu.memory_space<vmem>>, vector<8x128xf32>
    tpu.vector_store %arg29[%c24, %c0_91], %174 {strides = array<i32>} : memref<40x128xf32, #tpu.memory_space<vmem>>, vector<8x128xf32>,
    %c126_i32_92 = arith.constant 126 : i32
    %176 = tpu.dynamic_rotate %155 by %c126_i32_92 dim 1 : vector<8x128xf32>, i32 -> vector<8x128xf32>
    %c3 = arith.constant 3 : index
    %c0_93 = arith.constant 0 : index
    %c0_94 = arith.constant 0 : index
    %177 = vector.load %arg4[%c3, %c0_93, %c0_94] : memref<4x8x128xf32, #tpu.memory_space<vmem>>, vector<1x8x128xf32>
    %178 = vector.shape_cast %177 : vector<1x8x128xf32> to vector<8x128xf32>
    %179 = arith.mulf %176, %178 : vector<8x128xf32>
    %c32 = arith.constant 32 : index
    %c0_95 = arith.constant 0 : index
    %180 = vector.load %arg29[%c32, %c0_95] : memref<40x128xf32, #tpu.memory_space<vmem>>, vector<8x128xf32>
    tpu.vector_store %arg29[%c32, %c0_95], %179 {strides = array<i32>} : memref<40x128xf32, #tpu.memory_space<vmem>>, vector<8x128xf32>,
    %c0_96 = arith.constant 0 : index
    %c0_97 = arith.constant 0 : index
    %181 = vector.load %arg29[%c0_96, %c0_97] : memref<40x128xf32, #tpu.memory_space<vmem>>, vector<40x128xf32>
    %182 = arith.truncf %181 : vector<40x128xf32> to vector<40x128xbf16>
    %cst_98 = arith.constant dense<0.000000e+00> : vector<8x128xf32>
    %183 = tpu.matmul %157, %182, %cst_98 {dimension_numbers = #tpu.dot_dimension_numbers<[1], [0], [0], [1], [0, 0, 1, 1], [], []>} : vector<8x40xbf16>, vector<40x128xbf16>, vector<8x128xf32> -> vector<8x128xf32>
    %184 = vector.broadcast %159 : vector<8x1xf32> to vector<8x128xf32>
    %185 = arith.addf %183, %184 : vector<8x128xf32>
    %186 = arith.negf %185 : vector<8x128xf32>
    %187 = math.exp %186 : vector<8x128xf32>
    %cst_99 = arith.constant 1.000000e+00 : f32
    %188 = vector.broadcast %cst_99 : f32 to vector<8x128xf32>
    %189 = arith.addf %188, %187 : vector<8x128xf32>
    %190 = arith.divf %188, %189 : vector<8x128xf32>
    %191 = arith.mulf %185, %190 : vector<8x128xf32>
    %c0_100 = arith.constant 0 : index
    %c0_101 = arith.constant 0 : index
    %c0_102 = arith.constant 0 : index
    %192 = vector.load %arg11[%c0_100, %c0_101, %c0_102] : memref<3x8x24xbf16, #tpu.memory_space<vmem>>, vector<1x8x24xbf16>
    %193 = vector.shape_cast %192 : vector<1x8x24xbf16> to vector<8x24xbf16>
    %194 = vector.extract_strided_slice %17 {offsets = [2, 0, 0], sizes = [1, 8, 1], strides = [1, 1, 1]} : vector<3x8x1xf32> to vector<1x8x1xf32>
    %195 = vector.shape_cast %194 : vector<1x8x1xf32> to vector<8x1xf32>
    %c1_i32_103 = arith.constant 1 : i32
    %196 = tpu.dynamic_rotate %191 by %c1_i32_103 dim 1 : vector<8x128xf32>, i32 -> vector<8x128xf32>
    %c1_104 = arith.constant 1 : index
    %c0_105 = arith.constant 0 : index
    %c0_106 = arith.constant 0 : index
    %197 = vector.load %arg4[%c1_104, %c0_105, %c0_106] : memref<4x8x128xf32, #tpu.memory_space<vmem>>, vector<1x8x128xf32>
    %198 = vector.shape_cast %197 : vector<1x8x128xf32> to vector<8x128xf32>
    %199 = arith.mulf %196, %198 : vector<8x128xf32>
    %c0_107 = arith.constant 0 : index
    %c0_108 = arith.constant 0 : index
    %200 = vector.load %arg29[%c0_107, %c0_108] : memref<40x128xf32, #tpu.memory_space<vmem>>, vector<8x128xf32>
    tpu.vector_store %arg29[%c0_107, %c0_108], %199 {strides = array<i32>} : memref<40x128xf32, #tpu.memory_space<vmem>>, vector<8x128xf32>,
    %c8_109 = arith.constant 8 : index
    %c0_110 = arith.constant 0 : index
    %201 = vector.load %arg29[%c8_109, %c0_110] : memref<40x128xf32, #tpu.memory_space<vmem>>, vector<8x128xf32>
    tpu.vector_store %arg29[%c8_109, %c0_110], %191 {strides = array<i32>} : memref<40x128xf32, #tpu.memory_space<vmem>>, vector<8x128xf32>,
    %c127_i32_111 = arith.constant 127 : i32
    %202 = tpu.dynamic_rotate %191 by %c127_i32_111 dim 1 : vector<8x128xf32>, i32 -> vector<8x128xf32>
    %c2_112 = arith.constant 2 : index
    %c0_113 = arith.constant 0 : index
    %c0_114 = arith.constant 0 : index
    %203 = vector.load %arg4[%c2_112, %c0_113, %c0_114] : memref<4x8x128xf32, #tpu.memory_space<vmem>>, vector<1x8x128xf32>
    %204 = vector.shape_cast %203 : vector<1x8x128xf32> to vector<8x128xf32>
    %205 = arith.mulf %202, %204 : vector<8x128xf32>
    %c16_115 = arith.constant 16 : index
    %c0_116 = arith.constant 0 : index
    %206 = vector.load %arg29[%c16_115, %c0_116] : memref<40x128xf32, #tpu.memory_space<vmem>>, vector<8x128xf32>
    tpu.vector_store %arg29[%c16_115, %c0_116], %205 {strides = array<i32>} : memref<40x128xf32, #tpu.memory_space<vmem>>, vector<8x128xf32>,
    %c0_117 = arith.constant 0 : index
    %c0_118 = arith.constant 0 : index
    %207 = vector.load %arg29[%c0_117, %c0_118] : memref<40x128xf32, #tpu.memory_space<vmem>>, vector<24x128xf32>
    %208 = arith.truncf %207 : vector<24x128xf32> to vector<24x128xbf16>
    %cst_119 = arith.constant dense<0.000000e+00> : vector<8x128xf32>
    %209 = tpu.matmul %193, %208, %cst_119 {dimension_numbers = #tpu.dot_dimension_numbers<[1], [0], [0], [1], [0, 0, 1, 1], [], []>} : vector<8x24xbf16>, vector<24x128xbf16>, vector<8x128xf32> -> vector<8x128xf32>
    %210 = vector.broadcast %195 : vector<8x1xf32> to vector<8x128xf32>
    %211 = arith.addf %209, %210 : vector<8x128xf32>
    %212 = arith.addf %211, %13 : vector<8x128xf32>
    %cst_120 = arith.constant 0.707107067 : f32
    %213 = vector.broadcast %cst_120 : f32 to vector<8x128xf32>
    %214 = arith.mulf %212, %213 : vector<8x128xf32>
    %c1_121 = arith.constant 1 : index
    %c0_122 = arith.constant 0 : index
    %c0_123 = arith.constant 0 : index
    %c0_124 = arith.constant 0 : index
    %215 = vector.load %arg8[%c1_121, %c0_122, %c0_123, %c0_124] : memref<3x4x8x128xf32, #tpu.memory_space<vmem>>, vector<1x4x8x128xf32>
    %216 = vector.shape_cast %215 : vector<1x4x8x128xf32> to vector<4x8x128xf32>
    %c1_125 = arith.constant 1 : index
    %c0_126 = arith.constant 0 : index
    %c0_127 = arith.constant 0 : index
    %c0_128 = arith.constant 0 : index
    %217 = vector.load %arg12[%c1_125, %c0_126, %c0_127, %c0_128] : memref<3x3x8x1xf32, #tpu.memory_space<vmem>>, vector<1x3x8x1xf32>
    %218 = vector.shape_cast %217 : vector<1x3x8x1xf32> to vector<3x8x1xf32>
    %219 = vector.extract_strided_slice %216 {offsets = [0, 0, 0], sizes = [1, 8, 128], strides = [1, 1, 1]} : vector<4x8x128xf32> to vector<1x8x128xf32>
    %220 = vector.shape_cast %219 : vector<1x8x128xf32> to vector<8x128xf32>
    %221 = vector.extract_strided_slice %216 {offsets = [1, 0, 0], sizes = [1, 8, 128], strides = [1, 1, 1]} : vector<4x8x128xf32> to vector<1x8x128xf32>
    %222 = vector.shape_cast %221 : vector<1x8x128xf32> to vector<8x128xf32>
    %c127_i32_129 = arith.constant 127 : i32
    %223 = tpu.dynamic_rotate %214 by %c127_i32_129 dim 1 : vector<8x128xf32>, i32 -> vector<8x128xf32>
    %224 = arith.addf %214, %223 : vector<8x128xf32>
    %c126_i32_130 = arith.constant 126 : i32
    %225 = tpu.dynamic_rotate %224 by %c126_i32_130 dim 1 : vector<8x128xf32>, i32 -> vector<8x128xf32>
    %226 = arith.addf %224, %225 : vector<8x128xf32>
    %c124_i32_131 = arith.constant 124 : i32
    %227 = tpu.dynamic_rotate %226 by %c124_i32_131 dim 1 : vector<8x128xf32>, i32 -> vector<8x128xf32>
    %228 = arith.addf %226, %227 : vector<8x128xf32>
    %c120_i32_132 = arith.constant 120 : i32
    %229 = tpu.dynamic_rotate %228 by %c120_i32_132 dim 1 : vector<8x128xf32>, i32 -> vector<8x128xf32>
    %230 = arith.addf %228, %229 : vector<8x128xf32>
    %231 = arith.mulf %230, %0 : vector<8x128xf32>
    %c1_i32_133 = arith.constant 1 : i32
    %232 = tpu.dynamic_rotate %231 by %c1_i32_133 dim 1 : vector<8x128xf32>, i32 -> vector<8x128xf32>
    %233 = arith.addf %231, %232 : vector<8x128xf32>
    %c2_i32_134 = arith.constant 2 : i32
    %234 = tpu.dynamic_rotate %233 by %c2_i32_134 dim 1 : vector<8x128xf32>, i32 -> vector<8x128xf32>
    %235 = arith.addf %233, %234 : vector<8x128xf32>
    %c4_i32_135 = arith.constant 4 : i32
    %236 = tpu.dynamic_rotate %235 by %c4_i32_135 dim 1 : vector<8x128xf32>, i32 -> vector<8x128xf32>
    %237 = arith.addf %235, %236 : vector<8x128xf32>
    %c8_i32_136 = arith.constant 8 : i32
    %238 = tpu.dynamic_rotate %237 by %c8_i32_136 dim 1 : vector<8x128xf32>, i32 -> vector<8x128xf32>
    %239 = arith.addf %237, %238 : vector<8x128xf32>
    %cst_137 = arith.constant dense<0.000000e+00> : vector<128xf32>
    %240 = vector.multi_reduction <add>, %239, %cst_137 [0] : vector<8x128xf32> to vector<128xf32>
    %241 = vector.shape_cast %240 : vector<128xf32> to vector<1x128xf32>
    %cst_138 = arith.constant 7.812500e-03 : f32
    %242 = vector.broadcast %cst_138 : f32 to vector<1x128xf32>
    %243 = arith.mulf %241, %242 : vector<1x128xf32>
    %244 = vector.broadcast %243 : vector<1x128xf32> to vector<8x128xf32>
    %245 = arith.subf %214, %244 : vector<8x128xf32>
    %246 = arith.mulf %245, %245 : vector<8x128xf32>
    %c127_i32_139 = arith.constant 127 : i32
    %247 = tpu.dynamic_rotate %246 by %c127_i32_139 dim 1 : vector<8x128xf32>, i32 -> vector<8x128xf32>
    %248 = arith.addf %246, %247 : vector<8x128xf32>
    %c126_i32_140 = arith.constant 126 : i32
    %249 = tpu.dynamic_rotate %248 by %c126_i32_140 dim 1 : vector<8x128xf32>, i32 -> vector<8x128xf32>
    %250 = arith.addf %248, %249 : vector<8x128xf32>
    %c124_i32_141 = arith.constant 124 : i32
    %251 = tpu.dynamic_rotate %250 by %c124_i32_141 dim 1 : vector<8x128xf32>, i32 -> vector<8x128xf32>
    %252 = arith.addf %250, %251 : vector<8x128xf32>
    %c120_i32_142 = arith.constant 120 : i32
    %253 = tpu.dynamic_rotate %252 by %c120_i32_142 dim 1 : vector<8x128xf32>, i32 -> vector<8x128xf32>
    %254 = arith.addf %252, %253 : vector<8x128xf32>
    %255 = arith.mulf %254, %0 : vector<8x128xf32>
    %c1_i32_143 = arith.constant 1 : i32
    %256 = tpu.dynamic_rotate %255 by %c1_i32_143 dim 1 : vector<8x128xf32>, i32 -> vector<8x128xf32>
    %257 = arith.addf %255, %256 : vector<8x128xf32>
    %c2_i32_144 = arith.constant 2 : i32
    %258 = tpu.dynamic_rotate %257 by %c2_i32_144 dim 1 : vector<8x128xf32>, i32 -> vector<8x128xf32>
    %259 = arith.addf %257, %258 : vector<8x128xf32>
    %c4_i32_145 = arith.constant 4 : i32
    %260 = tpu.dynamic_rotate %259 by %c4_i32_145 dim 1 : vector<8x128xf32>, i32 -> vector<8x128xf32>
    %261 = arith.addf %259, %260 : vector<8x128xf32>
    %c8_i32_146 = arith.constant 8 : i32
    %262 = tpu.dynamic_rotate %261 by %c8_i32_146 dim 1 : vector<8x128xf32>, i32 -> vector<8x128xf32>
    %263 = arith.addf %261, %262 : vector<8x128xf32>
    %cst_147 = arith.constant dense<0.000000e+00> : vector<128xf32>
    %264 = vector.multi_reduction <add>, %263, %cst_147 [0] : vector<8x128xf32> to vector<128xf32>
    %265 = vector.shape_cast %264 : vector<128xf32> to vector<1x128xf32>
    %cst_148 = arith.constant 7.812500e-03 : f32
    %266 = vector.broadcast %cst_148 : f32 to vector<1x128xf32>
    %267 = arith.mulf %265, %266 : vector<1x128xf32>
    %cst_149 = arith.constant 9.99999974E-6 : f32
    %268 = vector.broadcast %cst_149 : f32 to vector<1x128xf32>
    %269 = arith.addf %267, %268 : vector<1x128xf32>
    %270 = math.rsqrt %269 : vector<1x128xf32>
    %271 = vector.broadcast %270 : vector<1x128xf32> to vector<8x128xf32>
    %272 = arith.mulf %245, %271 : vector<8x128xf32>
    %273 = arith.mulf %272, %220 : vector<8x128xf32>
    %274 = arith.addf %273, %222 : vector<8x128xf32>
    %c1_150 = arith.constant 1 : index
    %c0_151 = arith.constant 0 : index
    %c0_152 = arith.constant 0 : index
    %275 = vector.load %arg9[%c1_150, %c0_151, %c0_152] : memref<3x8x24xbf16, #tpu.memory_space<vmem>>, vector<1x8x24xbf16>
    %276 = vector.shape_cast %275 : vector<1x8x24xbf16> to vector<8x24xbf16>
    %277 = vector.extract_strided_slice %218 {offsets = [0, 0, 0], sizes = [1, 8, 1], strides = [1, 1, 1]} : vector<3x8x1xf32> to vector<1x8x1xf32>
    %278 = vector.shape_cast %277 : vector<1x8x1xf32> to vector<8x1xf32>
    %c1_i32_153 = arith.constant 1 : i32
    %279 = tpu.dynamic_rotate %274 by %c1_i32_153 dim 1 : vector<8x128xf32>, i32 -> vector<8x128xf32>
    %c1_154 = arith.constant 1 : index
    %c0_155 = arith.constant 0 : index
    %c0_156 = arith.constant 0 : index
    %280 = vector.load %arg4[%c1_154, %c0_155, %c0_156] : memref<4x8x128xf32, #tpu.memory_space<vmem>>, vector<1x8x128xf32>
    %281 = vector.shape_cast %280 : vector<1x8x128xf32> to vector<8x128xf32>
    %282 = arith.mulf %279, %281 : vector<8x128xf32>
    %c0_157 = arith.constant 0 : index
    %c0_158 = arith.constant 0 : index
    %283 = vector.load %arg29[%c0_157, %c0_158] : memref<40x128xf32, #tpu.memory_space<vmem>>, vector<8x128xf32>
    tpu.vector_store %arg29[%c0_157, %c0_158], %282 {strides = array<i32>} : memref<40x128xf32, #tpu.memory_space<vmem>>, vector<8x128xf32>,
    %c8_159 = arith.constant 8 : index
    %c0_160 = arith.constant 0 : index
    %284 = vector.load %arg29[%c8_159, %c0_160] : memref<40x128xf32, #tpu.memory_space<vmem>>, vector<8x128xf32>
    tpu.vector_store %arg29[%c8_159, %c0_160], %274 {strides = array<i32>} : memref<40x128xf32, #tpu.memory_space<vmem>>, vector<8x128xf32>,
    %c127_i32_161 = arith.constant 127 : i32
    %285 = tpu.dynamic_rotate %274 by %c127_i32_161 dim 1 : vector<8x128xf32>, i32 -> vector<8x128xf32>
    %c2_162 = arith.constant 2 : index
    %c0_163 = arith.constant 0 : index
    %c0_164 = arith.constant 0 : index
    %286 = vector.load %arg4[%c2_162, %c0_163, %c0_164] : memref<4x8x128xf32, #tpu.memory_space<vmem>>, vector<1x8x128xf32>
    %287 = vector.shape_cast %286 : vector<1x8x128xf32> to vector<8x128xf32>
    %288 = arith.mulf %285, %287 : vector<8x128xf32>
    %c16_165 = arith.constant 16 : index
    %c0_166 = arith.constant 0 : index
    %289 = vector.load %arg29[%c16_165, %c0_166] : memref<40x128xf32, #tpu.memory_space<vmem>>, vector<8x128xf32>
    tpu.vector_store %arg29[%c16_165, %c0_166], %288 {strides = array<i32>} : memref<40x128xf32, #tpu.memory_space<vmem>>, vector<8x128xf32>,
    %c0_167 = arith.constant 0 : index
    %c0_168 = arith.constant 0 : index
    %290 = vector.load %arg29[%c0_167, %c0_168] : memref<40x128xf32, #tpu.memory_space<vmem>>, vector<24x128xf32>
    %291 = arith.truncf %290 : vector<24x128xf32> to vector<24x128xbf16>
    %cst_169 = arith.constant dense<0.000000e+00> : vector<8x128xf32>
    %292 = tpu.matmul %276, %291, %cst_169 {dimension_numbers = #tpu.dot_dimension_numbers<[1], [0], [0], [1], [0, 0, 1, 1], [], []>} : vector<8x24xbf16>, vector<24x128xbf16>, vector<8x128xf32> -> vector<8x128xf32>
    %293 = vector.broadcast %278 : vector<8x1xf32> to vector<8x128xf32>
    %294 = arith.addf %292, %293 : vector<8x128xf32>
    %295 = arith.negf %294 : vector<8x128xf32>
    %296 = math.exp %295 : vector<8x128xf32>
    %cst_170 = arith.constant 1.000000e+00 : f32
    %297 = vector.broadcast %cst_170 : f32 to vector<8x128xf32>
    %298 = arith.addf %297, %296 : vector<8x128xf32>
    %299 = arith.divf %297, %298 : vector<8x128xf32>
    %300 = arith.mulf %294, %299 : vector<8x128xf32>
    %301 = vector.extract_strided_slice %216 {offsets = [2, 0, 0], sizes = [1, 8, 128], strides = [1, 1, 1]} : vector<4x8x128xf32> to vector<1x8x128xf32>
    %302 = vector.shape_cast %301 : vector<1x8x128xf32> to vector<8x128xf32>
    %303 = vector.extract_strided_slice %216 {offsets = [3, 0, 0], sizes = [1, 8, 128], strides = [1, 1, 1]} : vector<4x8x128xf32> to vector<1x8x128xf32>
    %304 = vector.shape_cast %303 : vector<1x8x128xf32> to vector<8x128xf32>
    %c127_i32_171 = arith.constant 127 : i32
    %305 = tpu.dynamic_rotate %300 by %c127_i32_171 dim 1 : vector<8x128xf32>, i32 -> vector<8x128xf32>
    %306 = arith.addf %300, %305 : vector<8x128xf32>
    %c126_i32_172 = arith.constant 126 : i32
    %307 = tpu.dynamic_rotate %306 by %c126_i32_172 dim 1 : vector<8x128xf32>, i32 -> vector<8x128xf32>
    %308 = arith.addf %306, %307 : vector<8x128xf32>
    %c124_i32_173 = arith.constant 124 : i32
    %309 = tpu.dynamic_rotate %308 by %c124_i32_173 dim 1 : vector<8x128xf32>, i32 -> vector<8x128xf32>
    %310 = arith.addf %308, %309 : vector<8x128xf32>
    %c120_i32_174 = arith.constant 120 : i32
    %311 = tpu.dynamic_rotate %310 by %c120_i32_174 dim 1 : vector<8x128xf32>, i32 -> vector<8x128xf32>
    %312 = arith.addf %310, %311 : vector<8x128xf32>
    %313 = arith.mulf %312, %0 : vector<8x128xf32>
    %c1_i32_175 = arith.constant 1 : i32
    %314 = tpu.dynamic_rotate %313 by %c1_i32_175 dim 1 : vector<8x128xf32>, i32 -> vector<8x128xf32>
    %315 = arith.addf %313, %314 : vector<8x128xf32>
    %c2_i32_176 = arith.constant 2 : i32
    %316 = tpu.dynamic_rotate %315 by %c2_i32_176 dim 1 : vector<8x128xf32>, i32 -> vector<8x128xf32>
    %317 = arith.addf %315, %316 : vector<8x128xf32>
    %c4_i32_177 = arith.constant 4 : i32
    %318 = tpu.dynamic_rotate %317 by %c4_i32_177 dim 1 : vector<8x128xf32>, i32 -> vector<8x128xf32>
    %319 = arith.addf %317, %318 : vector<8x128xf32>
    %c8_i32_178 = arith.constant 8 : i32
    %320 = tpu.dynamic_rotate %319 by %c8_i32_178 dim 1 : vector<8x128xf32>, i32 -> vector<8x128xf32>
    %321 = arith.addf %319, %320 : vector<8x128xf32>
    %cst_179 = arith.constant dense<0.000000e+00> : vector<128xf32>
    %322 = vector.multi_reduction <add>, %321, %cst_179 [0] : vector<8x128xf32> to vector<128xf32>
    %323 = vector.shape_cast %322 : vector<128xf32> to vector<1x128xf32>
    %cst_180 = arith.constant 7.812500e-03 : f32
    %324 = vector.broadcast %cst_180 : f32 to vector<1x128xf32>
    %325 = arith.mulf %323, %324 : vector<1x128xf32>
    %326 = vector.broadcast %325 : vector<1x128xf32> to vector<8x128xf32>
    %327 = arith.subf %300, %326 : vector<8x128xf32>
    %328 = arith.mulf %327, %327 : vector<8x128xf32>
    %c127_i32_181 = arith.constant 127 : i32
    %329 = tpu.dynamic_rotate %328 by %c127_i32_181 dim 1 : vector<8x128xf32>, i32 -> vector<8x128xf32>
    %330 = arith.addf %328, %329 : vector<8x128xf32>
    %c126_i32_182 = arith.constant 126 : i32
    %331 = tpu.dynamic_rotate %330 by %c126_i32_182 dim 1 : vector<8x128xf32>, i32 -> vector<8x128xf32>
    %332 = arith.addf %330, %331 : vector<8x128xf32>
    %c124_i32_183 = arith.constant 124 : i32
    %333 = tpu.dynamic_rotate %332 by %c124_i32_183 dim 1 : vector<8x128xf32>, i32 -> vector<8x128xf32>
    %334 = arith.addf %332, %333 : vector<8x128xf32>
    %c120_i32_184 = arith.constant 120 : i32
    %335 = tpu.dynamic_rotate %334 by %c120_i32_184 dim 1 : vector<8x128xf32>, i32 -> vector<8x128xf32>
    %336 = arith.addf %334, %335 : vector<8x128xf32>
    %337 = arith.mulf %336, %0 : vector<8x128xf32>
    %c1_i32_185 = arith.constant 1 : i32
    %338 = tpu.dynamic_rotate %337 by %c1_i32_185 dim 1 : vector<8x128xf32>, i32 -> vector<8x128xf32>
    %339 = arith.addf %337, %338 : vector<8x128xf32>
    %c2_i32_186 = arith.constant 2 : i32
    %340 = tpu.dynamic_rotate %339 by %c2_i32_186 dim 1 : vector<8x128xf32>, i32 -> vector<8x128xf32>
    %341 = arith.addf %339, %340 : vector<8x128xf32>
    %c4_i32_187 = arith.constant 4 : i32
    %342 = tpu.dynamic_rotate %341 by %c4_i32_187 dim 1 : vector<8x128xf32>, i32 -> vector<8x128xf32>
    %343 = arith.addf %341, %342 : vector<8x128xf32>
    %c8_i32_188 = arith.constant 8 : i32
    %344 = tpu.dynamic_rotate %343 by %c8_i32_188 dim 1 : vector<8x128xf32>, i32 -> vector<8x128xf32>
    %345 = arith.addf %343, %344 : vector<8x128xf32>
    %cst_189 = arith.constant dense<0.000000e+00> : vector<128xf32>
    %346 = vector.multi_reduction <add>, %345, %cst_189 [0] : vector<8x128xf32> to vector<128xf32>
    %347 = vector.shape_cast %346 : vector<128xf32> to vector<1x128xf32>
    %cst_190 = arith.constant 7.812500e-03 : f32
    %348 = vector.broadcast %cst_190 : f32 to vector<1x128xf32>
    %349 = arith.mulf %347, %348 : vector<1x128xf32>
    %cst_191 = arith.constant 9.99999974E-6 : f32
    %350 = vector.broadcast %cst_191 : f32 to vector<1x128xf32>
    %351 = arith.addf %349, %350 : vector<1x128xf32>
    %352 = math.rsqrt %351 : vector<1x128xf32>
    %353 = vector.broadcast %352 : vector<1x128xf32> to vector<8x128xf32>
    %354 = arith.mulf %327, %353 : vector<8x128xf32>
    %355 = arith.mulf %354, %302 : vector<8x128xf32>
    %356 = arith.addf %355, %304 : vector<8x128xf32>
    %c1_192 = arith.constant 1 : index
    %c0_193 = arith.constant 0 : index
    %c0_194 = arith.constant 0 : index
    %357 = vector.load %arg10[%c1_192, %c0_193, %c0_194] : memref<3x8x40xbf16, #tpu.memory_space<vmem>>, vector<1x8x40xbf16>
    %358 = vector.shape_cast %357 : vector<1x8x40xbf16> to vector<8x40xbf16>
    %359 = vector.extract_strided_slice %218 {offsets = [1, 0, 0], sizes = [1, 8, 1], strides = [1, 1, 1]} : vector<3x8x1xf32> to vector<1x8x1xf32>
    %360 = vector.shape_cast %359 : vector<1x8x1xf32> to vector<8x1xf32>
    %c2_i32_195 = arith.constant 2 : i32
    %361 = tpu.dynamic_rotate %356 by %c2_i32_195 dim 1 : vector<8x128xf32>, i32 -> vector<8x128xf32>
    %c0_196 = arith.constant 0 : index
    %c0_197 = arith.constant 0 : index
    %c0_198 = arith.constant 0 : index
    %362 = vector.load %arg4[%c0_196, %c0_197, %c0_198] : memref<4x8x128xf32, #tpu.memory_space<vmem>>, vector<1x8x128xf32>
    %363 = vector.shape_cast %362 : vector<1x8x128xf32> to vector<8x128xf32>
    %364 = arith.mulf %361, %363 : vector<8x128xf32>
    %c0_199 = arith.constant 0 : index
    %c0_200 = arith.constant 0 : index
    %365 = vector.load %arg29[%c0_199, %c0_200] : memref<40x128xf32, #tpu.memory_space<vmem>>, vector<8x128xf32>
    tpu.vector_store %arg29[%c0_199, %c0_200], %364 {strides = array<i32>} : memref<40x128xf32, #tpu.memory_space<vmem>>, vector<8x128xf32>,
    %c1_i32_201 = arith.constant 1 : i32
    %366 = tpu.dynamic_rotate %356 by %c1_i32_201 dim 1 : vector<8x128xf32>, i32 -> vector<8x128xf32>
    %c1_202 = arith.constant 1 : index
    %c0_203 = arith.constant 0 : index
    %c0_204 = arith.constant 0 : index
    %367 = vector.load %arg4[%c1_202, %c0_203, %c0_204] : memref<4x8x128xf32, #tpu.memory_space<vmem>>, vector<1x8x128xf32>
    %368 = vector.shape_cast %367 : vector<1x8x128xf32> to vector<8x128xf32>
    %369 = arith.mulf %366, %368 : vector<8x128xf32>
    %c8_205 = arith.constant 8 : index
    %c0_206 = arith.constant 0 : index
    %370 = vector.load %arg29[%c8_205, %c0_206] : memref<40x128xf32, #tpu.memory_space<vmem>>, vector<8x128xf32>
    tpu.vector_store %arg29[%c8_205, %c0_206], %369 {strides = array<i32>} : memref<40x128xf32, #tpu.memory_space<vmem>>, vector<8x128xf32>,
    %c16_207 = arith.constant 16 : index
    %c0_208 = arith.constant 0 : index
    %371 = vector.load %arg29[%c16_207, %c0_208] : memref<40x128xf32, #tpu.memory_space<vmem>>, vector<8x128xf32>
    tpu.vector_store %arg29[%c16_207, %c0_208], %356 {strides = array<i32>} : memref<40x128xf32, #tpu.memory_space<vmem>>, vector<8x128xf32>,
    %c127_i32_209 = arith.constant 127 : i32
    %372 = tpu.dynamic_rotate %356 by %c127_i32_209 dim 1 : vector<8x128xf32>, i32 -> vector<8x128xf32>
    %c2_210 = arith.constant 2 : index
    %c0_211 = arith.constant 0 : index
    %c0_212 = arith.constant 0 : index
    %373 = vector.load %arg4[%c2_210, %c0_211, %c0_212] : memref<4x8x128xf32, #tpu.memory_space<vmem>>, vector<1x8x128xf32>
    %374 = vector.shape_cast %373 : vector<1x8x128xf32> to vector<8x128xf32>
    %375 = arith.mulf %372, %374 : vector<8x128xf32>
    %c24_213 = arith.constant 24 : index
    %c0_214 = arith.constant 0 : index
    %376 = vector.load %arg29[%c24_213, %c0_214] : memref<40x128xf32, #tpu.memory_space<vmem>>, vector<8x128xf32>
    tpu.vector_store %arg29[%c24_213, %c0_214], %375 {strides = array<i32>} : memref<40x128xf32, #tpu.memory_space<vmem>>, vector<8x128xf32>,
    %c126_i32_215 = arith.constant 126 : i32
    %377 = tpu.dynamic_rotate %356 by %c126_i32_215 dim 1 : vector<8x128xf32>, i32 -> vector<8x128xf32>
    %c3_216 = arith.constant 3 : index
    %c0_217 = arith.constant 0 : index
    %c0_218 = arith.constant 0 : index
    %378 = vector.load %arg4[%c3_216, %c0_217, %c0_218] : memref<4x8x128xf32, #tpu.memory_space<vmem>>, vector<1x8x128xf32>
    %379 = vector.shape_cast %378 : vector<1x8x128xf32> to vector<8x128xf32>
    %380 = arith.mulf %377, %379 : vector<8x128xf32>
    %c32_219 = arith.constant 32 : index
    %c0_220 = arith.constant 0 : index
    %381 = vector.load %arg29[%c32_219, %c0_220] : memref<40x128xf32, #tpu.memory_space<vmem>>, vector<8x128xf32>
    tpu.vector_store %arg29[%c32_219, %c0_220], %380 {strides = array<i32>} : memref<40x128xf32, #tpu.memory_space<vmem>>, vector<8x128xf32>,
    %c0_221 = arith.constant 0 : index
    %c0_222 = arith.constant 0 : index
    %382 = vector.load %arg29[%c0_221, %c0_222] : memref<40x128xf32, #tpu.memory_space<vmem>>, vector<40x128xf32>
    %383 = arith.truncf %382 : vector<40x128xf32> to vector<40x128xbf16>
    %cst_223 = arith.constant dense<0.000000e+00> : vector<8x128xf32>
    %384 = tpu.matmul %358, %383, %cst_223 {dimension_numbers = #tpu.dot_dimension_numbers<[1], [0], [0], [1], [0, 0, 1, 1], [], []>} : vector<8x40xbf16>, vector<40x128xbf16>, vector<8x128xf32> -> vector<8x128xf32>
    %385 = vector.broadcast %360 : vector<8x1xf32> to vector<8x128xf32>
    %386 = arith.addf %384, %385 : vector<8x128xf32>
    %387 = arith.negf %386 : vector<8x128xf32>
    %388 = math.exp %387 : vector<8x128xf32>
    %cst_224 = arith.constant 1.000000e+00 : f32
    %389 = vector.broadcast %cst_224 : f32 to vector<8x128xf32>
    %390 = arith.addf %389, %388 : vector<8x128xf32>
    %391 = arith.divf %389, %390 : vector<8x128xf32>
    %392 = arith.mulf %386, %391 : vector<8x128xf32>
    %c1_225 = arith.constant 1 : index
    %c0_226 = arith.constant 0 : index
    %c0_227 = arith.constant 0 : index
    %393 = vector.load %arg11[%c1_225, %c0_226, %c0_227] : memref<3x8x24xbf16, #tpu.memory_space<vmem>>, vector<1x8x24xbf16>
    %394 = vector.shape_cast %393 : vector<1x8x24xbf16> to vector<8x24xbf16>
    %395 = vector.extract_strided_slice %218 {offsets = [2, 0, 0], sizes = [1, 8, 1], strides = [1, 1, 1]} : vector<3x8x1xf32> to vector<1x8x1xf32>
    %396 = vector.shape_cast %395 : vector<1x8x1xf32> to vector<8x1xf32>
    %c1_i32_228 = arith.constant 1 : i32
    %397 = tpu.dynamic_rotate %392 by %c1_i32_228 dim 1 : vector<8x128xf32>, i32 -> vector<8x128xf32>
    %c1_229 = arith.constant 1 : index
    %c0_230 = arith.constant 0 : index
    %c0_231 = arith.constant 0 : index
    %398 = vector.load %arg4[%c1_229, %c0_230, %c0_231] : memref<4x8x128xf32, #tpu.memory_space<vmem>>, vector<1x8x128xf32>
    %399 = vector.shape_cast %398 : vector<1x8x128xf32> to vector<8x128xf32>
    %400 = arith.mulf %397, %399 : vector<8x128xf32>
    %c0_232 = arith.constant 0 : index
    %c0_233 = arith.constant 0 : index
    %401 = vector.load %arg29[%c0_232, %c0_233] : memref<40x128xf32, #tpu.memory_space<vmem>>, vector<8x128xf32>
    tpu.vector_store %arg29[%c0_232, %c0_233], %400 {strides = array<i32>} : memref<40x128xf32, #tpu.memory_space<vmem>>, vector<8x128xf32>,
    %c8_234 = arith.constant 8 : index
    %c0_235 = arith.constant 0 : index
    %402 = vector.load %arg29[%c8_234, %c0_235] : memref<40x128xf32, #tpu.memory_space<vmem>>, vector<8x128xf32>
    tpu.vector_store %arg29[%c8_234, %c0_235], %392 {strides = array<i32>} : memref<40x128xf32, #tpu.memory_space<vmem>>, vector<8x128xf32>,
    %c127_i32_236 = arith.constant 127 : i32
    %403 = tpu.dynamic_rotate %392 by %c127_i32_236 dim 1 : vector<8x128xf32>, i32 -> vector<8x128xf32>
    %c2_237 = arith.constant 2 : index
    %c0_238 = arith.constant 0 : index
    %c0_239 = arith.constant 0 : index
    %404 = vector.load %arg4[%c2_237, %c0_238, %c0_239] : memref<4x8x128xf32, #tpu.memory_space<vmem>>, vector<1x8x128xf32>
    %405 = vector.shape_cast %404 : vector<1x8x128xf32> to vector<8x128xf32>
    %406 = arith.mulf %403, %405 : vector<8x128xf32>
    %c16_240 = arith.constant 16 : index
    %c0_241 = arith.constant 0 : index
    %407 = vector.load %arg29[%c16_240, %c0_241] : memref<40x128xf32, #tpu.memory_space<vmem>>, vector<8x128xf32>
    tpu.vector_store %arg29[%c16_240, %c0_241], %406 {strides = array<i32>} : memref<40x128xf32, #tpu.memory_space<vmem>>, vector<8x128xf32>,
    %c0_242 = arith.constant 0 : index
    %c0_243 = arith.constant 0 : index
    %408 = vector.load %arg29[%c0_242, %c0_243] : memref<40x128xf32, #tpu.memory_space<vmem>>, vector<24x128xf32>
    %409 = arith.truncf %408 : vector<24x128xf32> to vector<24x128xbf16>
    %cst_244 = arith.constant dense<0.000000e+00> : vector<8x128xf32>
    %410 = tpu.matmul %394, %409, %cst_244 {dimension_numbers = #tpu.dot_dimension_numbers<[1], [0], [0], [1], [0, 0, 1, 1], [], []>} : vector<8x24xbf16>, vector<24x128xbf16>, vector<8x128xf32> -> vector<8x128xf32>
    %411 = vector.broadcast %396 : vector<8x1xf32> to vector<8x128xf32>
    %412 = arith.addf %410, %411 : vector<8x128xf32>
    %413 = arith.addf %412, %214 : vector<8x128xf32>
    %cst_245 = arith.constant 0.707107067 : f32
    %414 = vector.broadcast %cst_245 : f32 to vector<8x128xf32>
    %415 = arith.mulf %413, %414 : vector<8x128xf32>
    %c2_246 = arith.constant 2 : index
    %c0_247 = arith.constant 0 : index
    %c0_248 = arith.constant 0 : index
    %c0_249 = arith.constant 0 : index
    %416 = vector.load %arg8[%c2_246, %c0_247, %c0_248, %c0_249] : memref<3x4x8x128xf32, #tpu.memory_space<vmem>>, vector<1x4x8x128xf32>
    %417 = vector.shape_cast %416 : vector<1x4x8x128xf32> to vector<4x8x128xf32>
    %c2_250 = arith.constant 2 : index
    %c0_251 = arith.constant 0 : index
    %c0_252 = arith.constant 0 : index
    %c0_253 = arith.constant 0 : index
    %418 = vector.load %arg12[%c2_250, %c0_251, %c0_252, %c0_253] : memref<3x3x8x1xf32, #tpu.memory_space<vmem>>, vector<1x3x8x1xf32>
    %419 = vector.shape_cast %418 : vector<1x3x8x1xf32> to vector<3x8x1xf32>
    %420 = vector.extract_strided_slice %417 {offsets = [0, 0, 0], sizes = [1, 8, 128], strides = [1, 1, 1]} : vector<4x8x128xf32> to vector<1x8x128xf32>
    %421 = vector.shape_cast %420 : vector<1x8x128xf32> to vector<8x128xf32>
    %422 = vector.extract_strided_slice %417 {offsets = [1, 0, 0], sizes = [1, 8, 128], strides = [1, 1, 1]} : vector<4x8x128xf32> to vector<1x8x128xf32>
    %423 = vector.shape_cast %422 : vector<1x8x128xf32> to vector<8x128xf32>
    %c127_i32_254 = arith.constant 127 : i32
    %424 = tpu.dynamic_rotate %415 by %c127_i32_254 dim 1 : vector<8x128xf32>, i32 -> vector<8x128xf32>
    %425 = arith.addf %415, %424 : vector<8x128xf32>
    %c126_i32_255 = arith.constant 126 : i32
    %426 = tpu.dynamic_rotate %425 by %c126_i32_255 dim 1 : vector<8x128xf32>, i32 -> vector<8x128xf32>
    %427 = arith.addf %425, %426 : vector<8x128xf32>
    %c124_i32_256 = arith.constant 124 : i32
    %428 = tpu.dynamic_rotate %427 by %c124_i32_256 dim 1 : vector<8x128xf32>, i32 -> vector<8x128xf32>
    %429 = arith.addf %427, %428 : vector<8x128xf32>
    %c120_i32_257 = arith.constant 120 : i32
    %430 = tpu.dynamic_rotate %429 by %c120_i32_257 dim 1 : vector<8x128xf32>, i32 -> vector<8x128xf32>
    %431 = arith.addf %429, %430 : vector<8x128xf32>
    %432 = arith.mulf %431, %0 : vector<8x128xf32>
    %c1_i32_258 = arith.constant 1 : i32
    %433 = tpu.dynamic_rotate %432 by %c1_i32_258 dim 1 : vector<8x128xf32>, i32 -> vector<8x128xf32>
    %434 = arith.addf %432, %433 : vector<8x128xf32>
    %c2_i32_259 = arith.constant 2 : i32
    %435 = tpu.dynamic_rotate %434 by %c2_i32_259 dim 1 : vector<8x128xf32>, i32 -> vector<8x128xf32>
    %436 = arith.addf %434, %435 : vector<8x128xf32>
    %c4_i32_260 = arith.constant 4 : i32
    %437 = tpu.dynamic_rotate %436 by %c4_i32_260 dim 1 : vector<8x128xf32>, i32 -> vector<8x128xf32>
    %438 = arith.addf %436, %437 : vector<8x128xf32>
    %c8_i32_261 = arith.constant 8 : i32
    %439 = tpu.dynamic_rotate %438 by %c8_i32_261 dim 1 : vector<8x128xf32>, i32 -> vector<8x128xf32>
    %440 = arith.addf %438, %439 : vector<8x128xf32>
    %cst_262 = arith.constant dense<0.000000e+00> : vector<128xf32>
    %441 = vector.multi_reduction <add>, %440, %cst_262 [0] : vector<8x128xf32> to vector<128xf32>
    %442 = vector.shape_cast %441 : vector<128xf32> to vector<1x128xf32>
    %cst_263 = arith.constant 7.812500e-03 : f32
    %443 = vector.broadcast %cst_263 : f32 to vector<1x128xf32>
    %444 = arith.mulf %442, %443 : vector<1x128xf32>
    %445 = vector.broadcast %444 : vector<1x128xf32> to vector<8x128xf32>
    %446 = arith.subf %415, %445 : vector<8x128xf32>
    %447 = arith.mulf %446, %446 : vector<8x128xf32>
    %c127_i32_264 = arith.constant 127 : i32
    %448 = tpu.dynamic_rotate %447 by %c127_i32_264 dim 1 : vector<8x128xf32>, i32 -> vector<8x128xf32>
    %449 = arith.addf %447, %448 : vector<8x128xf32>
    %c126_i32_265 = arith.constant 126 : i32
    %450 = tpu.dynamic_rotate %449 by %c126_i32_265 dim 1 : vector<8x128xf32>, i32 -> vector<8x128xf32>
    %451 = arith.addf %449, %450 : vector<8x128xf32>
    %c124_i32_266 = arith.constant 124 : i32
    %452 = tpu.dynamic_rotate %451 by %c124_i32_266 dim 1 : vector<8x128xf32>, i32 -> vector<8x128xf32>
    %453 = arith.addf %451, %452 : vector<8x128xf32>
    %c120_i32_267 = arith.constant 120 : i32
    %454 = tpu.dynamic_rotate %453 by %c120_i32_267 dim 1 : vector<8x128xf32>, i32 -> vector<8x128xf32>
    %455 = arith.addf %453, %454 : vector<8x128xf32>
    %456 = arith.mulf %455, %0 : vector<8x128xf32>
    %c1_i32_268 = arith.constant 1 : i32
    %457 = tpu.dynamic_rotate %456 by %c1_i32_268 dim 1 : vector<8x128xf32>, i32 -> vector<8x128xf32>
    %458 = arith.addf %456, %457 : vector<8x128xf32>
    %c2_i32_269 = arith.constant 2 : i32
    %459 = tpu.dynamic_rotate %458 by %c2_i32_269 dim 1 : vector<8x128xf32>, i32 -> vector<8x128xf32>
    %460 = arith.addf %458, %459 : vector<8x128xf32>
    %c4_i32_270 = arith.constant 4 : i32
    %461 = tpu.dynamic_rotate %460 by %c4_i32_270 dim 1 : vector<8x128xf32>, i32 -> vector<8x128xf32>
    %462 = arith.addf %460, %461 : vector<8x128xf32>
    %c8_i32_271 = arith.constant 8 : i32
    %463 = tpu.dynamic_rotate %462 by %c8_i32_271 dim 1 : vector<8x128xf32>, i32 -> vector<8x128xf32>
    %464 = arith.addf %462, %463 : vector<8x128xf32>
    %cst_272 = arith.constant dense<0.000000e+00> : vector<128xf32>
    %465 = vector.multi_reduction <add>, %464, %cst_272 [0] : vector<8x128xf32> to vector<128xf32>
    %466 = vector.shape_cast %465 : vector<128xf32> to vector<1x128xf32>
    %cst_273 = arith.constant 7.812500e-03 : f32
    %467 = vector.broadcast %cst_273 : f32 to vector<1x128xf32>
    %468 = arith.mulf %466, %467 : vector<1x128xf32>
    %cst_274 = arith.constant 9.99999974E-6 : f32
    %469 = vector.broadcast %cst_274 : f32 to vector<1x128xf32>
    %470 = arith.addf %468, %469 : vector<1x128xf32>
    %471 = math.rsqrt %470 : vector<1x128xf32>
    %472 = vector.broadcast %471 : vector<1x128xf32> to vector<8x128xf32>
    %473 = arith.mulf %446, %472 : vector<8x128xf32>
    %474 = arith.mulf %473, %421 : vector<8x128xf32>
    %475 = arith.addf %474, %423 : vector<8x128xf32>
    %c2_275 = arith.constant 2 : index
    %c0_276 = arith.constant 0 : index
    %c0_277 = arith.constant 0 : index
    %476 = vector.load %arg9[%c2_275, %c0_276, %c0_277] : memref<3x8x24xbf16, #tpu.memory_space<vmem>>, vector<1x8x24xbf16>
    %477 = vector.shape_cast %476 : vector<1x8x24xbf16> to vector<8x24xbf16>
    %478 = vector.extract_strided_slice %419 {offsets = [0, 0, 0], sizes = [1, 8, 1], strides = [1, 1, 1]} : vector<3x8x1xf32> to vector<1x8x1xf32>
    %479 = vector.shape_cast %478 : vector<1x8x1xf32> to vector<8x1xf32>
    %c1_i32_278 = arith.constant 1 : i32
    %480 = tpu.dynamic_rotate %475 by %c1_i32_278 dim 1 : vector<8x128xf32>, i32 -> vector<8x128xf32>
    %c1_279 = arith.constant 1 : index
    %c0_280 = arith.constant 0 : index
    %c0_281 = arith.constant 0 : index
    %481 = vector.load %arg4[%c1_279, %c0_280, %c0_281] : memref<4x8x128xf32, #tpu.memory_space<vmem>>, vector<1x8x128xf32>
    %482 = vector.shape_cast %481 : vector<1x8x128xf32> to vector<8x128xf32>
    %483 = arith.mulf %480, %482 : vector<8x128xf32>
    %c0_282 = arith.constant 0 : index
    %c0_283 = arith.constant 0 : index
    %484 = vector.load %arg29[%c0_282, %c0_283] : memref<40x128xf32, #tpu.memory_space<vmem>>, vector<8x128xf32>
    tpu.vector_store %arg29[%c0_282, %c0_283], %483 {strides = array<i32>} : memref<40x128xf32, #tpu.memory_space<vmem>>, vector<8x128xf32>,
    %c8_284 = arith.constant 8 : index
    %c0_285 = arith.constant 0 : index
    %485 = vector.load %arg29[%c8_284, %c0_285] : memref<40x128xf32, #tpu.memory_space<vmem>>, vector<8x128xf32>
    tpu.vector_store %arg29[%c8_284, %c0_285], %475 {strides = array<i32>} : memref<40x128xf32, #tpu.memory_space<vmem>>, vector<8x128xf32>,
    %c127_i32_286 = arith.constant 127 : i32
    %486 = tpu.dynamic_rotate %475 by %c127_i32_286 dim 1 : vector<8x128xf32>, i32 -> vector<8x128xf32>
    %c2_287 = arith.constant 2 : index
    %c0_288 = arith.constant 0 : index
    %c0_289 = arith.constant 0 : index
    %487 = vector.load %arg4[%c2_287, %c0_288, %c0_289] : memref<4x8x128xf32, #tpu.memory_space<vmem>>, vector<1x8x128xf32>
    %488 = vector.shape_cast %487 : vector<1x8x128xf32> to vector<8x128xf32>
    %489 = arith.mulf %486, %488 : vector<8x128xf32>
    %c16_290 = arith.constant 16 : index
    %c0_291 = arith.constant 0 : index
    %490 = vector.load %arg29[%c16_290, %c0_291] : memref<40x128xf32, #tpu.memory_space<vmem>>, vector<8x128xf32>
    tpu.vector_store %arg29[%c16_290, %c0_291], %489 {strides = array<i32>} : memref<40x128xf32, #tpu.memory_space<vmem>>, vector<8x128xf32>,
    %c0_292 = arith.constant 0 : index
    %c0_293 = arith.constant 0 : index
    %491 = vector.load %arg29[%c0_292, %c0_293] : memref<40x128xf32, #tpu.memory_space<vmem>>, vector<24x128xf32>
    %492 = arith.truncf %491 : vector<24x128xf32> to vector<24x128xbf16>
    %cst_294 = arith.constant dense<0.000000e+00> : vector<8x128xf32>
    %493 = tpu.matmul %477, %492, %cst_294 {dimension_numbers = #tpu.dot_dimension_numbers<[1], [0], [0], [1], [0, 0, 1, 1], [], []>} : vector<8x24xbf16>, vector<24x128xbf16>, vector<8x128xf32> -> vector<8x128xf32>
    %494 = vector.broadcast %479 : vector<8x1xf32> to vector<8x128xf32>
    %495 = arith.addf %493, %494 : vector<8x128xf32>
    %496 = arith.negf %495 : vector<8x128xf32>
    %497 = math.exp %496 : vector<8x128xf32>
    %cst_295 = arith.constant 1.000000e+00 : f32
    %498 = vector.broadcast %cst_295 : f32 to vector<8x128xf32>
    %499 = arith.addf %498, %497 : vector<8x128xf32>
    %500 = arith.divf %498, %499 : vector<8x128xf32>
    %501 = arith.mulf %495, %500 : vector<8x128xf32>
    %502 = vector.extract_strided_slice %417 {offsets = [2, 0, 0], sizes = [1, 8, 128], strides = [1, 1, 1]} : vector<4x8x128xf32> to vector<1x8x128xf32>
    %503 = vector.shape_cast %502 : vector<1x8x128xf32> to vector<8x128xf32>
    %504 = vector.extract_strided_slice %417 {offsets = [3, 0, 0], sizes = [1, 8, 128], strides = [1, 1, 1]} : vector<4x8x128xf32> to vector<1x8x128xf32>
    %505 = vector.shape_cast %504 : vector<1x8x128xf32> to vector<8x128xf32>
    %c127_i32_296 = arith.constant 127 : i32
    %506 = tpu.dynamic_rotate %501 by %c127_i32_296 dim 1 : vector<8x128xf32>, i32 -> vector<8x128xf32>
    %507 = arith.addf %501, %506 : vector<8x128xf32>
    %c126_i32_297 = arith.constant 126 : i32
    %508 = tpu.dynamic_rotate %507 by %c126_i32_297 dim 1 : vector<8x128xf32>, i32 -> vector<8x128xf32>
    %509 = arith.addf %507, %508 : vector<8x128xf32>
    %c124_i32_298 = arith.constant 124 : i32
    %510 = tpu.dynamic_rotate %509 by %c124_i32_298 dim 1 : vector<8x128xf32>, i32 -> vector<8x128xf32>
    %511 = arith.addf %509, %510 : vector<8x128xf32>
    %c120_i32_299 = arith.constant 120 : i32
    %512 = tpu.dynamic_rotate %511 by %c120_i32_299 dim 1 : vector<8x128xf32>, i32 -> vector<8x128xf32>
    %513 = arith.addf %511, %512 : vector<8x128xf32>
    %514 = arith.mulf %513, %0 : vector<8x128xf32>
    %c1_i32_300 = arith.constant 1 : i32
    %515 = tpu.dynamic_rotate %514 by %c1_i32_300 dim 1 : vector<8x128xf32>, i32 -> vector<8x128xf32>
    %516 = arith.addf %514, %515 : vector<8x128xf32>
    %c2_i32_301 = arith.constant 2 : i32
    %517 = tpu.dynamic_rotate %516 by %c2_i32_301 dim 1 : vector<8x128xf32>, i32 -> vector<8x128xf32>
    %518 = arith.addf %516, %517 : vector<8x128xf32>
    %c4_i32_302 = arith.constant 4 : i32
    %519 = tpu.dynamic_rotate %518 by %c4_i32_302 dim 1 : vector<8x128xf32>, i32 -> vector<8x128xf32>
    %520 = arith.addf %518, %519 : vector<8x128xf32>
    %c8_i32_303 = arith.constant 8 : i32
    %521 = tpu.dynamic_rotate %520 by %c8_i32_303 dim 1 : vector<8x128xf32>, i32 -> vector<8x128xf32>
    %522 = arith.addf %520, %521 : vector<8x128xf32>
    %cst_304 = arith.constant dense<0.000000e+00> : vector<128xf32>
    %523 = vector.multi_reduction <add>, %522, %cst_304 [0] : vector<8x128xf32> to vector<128xf32>
    %524 = vector.shape_cast %523 : vector<128xf32> to vector<1x128xf32>
    %cst_305 = arith.constant 7.812500e-03 : f32
    %525 = vector.broadcast %cst_305 : f32 to vector<1x128xf32>
    %526 = arith.mulf %524, %525 : vector<1x128xf32>
    %527 = vector.broadcast %526 : vector<1x128xf32> to vector<8x128xf32>
    %528 = arith.subf %501, %527 : vector<8x128xf32>
    %529 = arith.mulf %528, %528 : vector<8x128xf32>
    %c127_i32_306 = arith.constant 127 : i32
    %530 = tpu.dynamic_rotate %529 by %c127_i32_306 dim 1 : vector<8x128xf32>, i32 -> vector<8x128xf32>
    %531 = arith.addf %529, %530 : vector<8x128xf32>
    %c126_i32_307 = arith.constant 126 : i32
    %532 = tpu.dynamic_rotate %531 by %c126_i32_307 dim 1 : vector<8x128xf32>, i32 -> vector<8x128xf32>
    %533 = arith.addf %531, %532 : vector<8x128xf32>
    %c124_i32_308 = arith.constant 124 : i32
    %534 = tpu.dynamic_rotate %533 by %c124_i32_308 dim 1 : vector<8x128xf32>, i32 -> vector<8x128xf32>
    %535 = arith.addf %533, %534 : vector<8x128xf32>
    %c120_i32_309 = arith.constant 120 : i32
    %536 = tpu.dynamic_rotate %535 by %c120_i32_309 dim 1 : vector<8x128xf32>, i32 -> vector<8x128xf32>
    %537 = arith.addf %535, %536 : vector<8x128xf32>
    %538 = arith.mulf %537, %0 : vector<8x128xf32>
    %c1_i32_310 = arith.constant 1 : i32
    %539 = tpu.dynamic_rotate %538 by %c1_i32_310 dim 1 : vector<8x128xf32>, i32 -> vector<8x128xf32>
    %540 = arith.addf %538, %539 : vector<8x128xf32>
    %c2_i32_311 = arith.constant 2 : i32
    %541 = tpu.dynamic_rotate %540 by %c2_i32_311 dim 1 : vector<8x128xf32>, i32 -> vector<8x128xf32>
    %542 = arith.addf %540, %541 : vector<8x128xf32>
    %c4_i32_312 = arith.constant 4 : i32
    %543 = tpu.dynamic_rotate %542 by %c4_i32_312 dim 1 : vector<8x128xf32>, i32 -> vector<8x128xf32>
    %544 = arith.addf %542, %543 : vector<8x128xf32>
    %c8_i32_313 = arith.constant 8 : i32
    %545 = tpu.dynamic_rotate %544 by %c8_i32_313 dim 1 : vector<8x128xf32>, i32 -> vector<8x128xf32>
    %546 = arith.addf %544, %545 : vector<8x128xf32>
    %cst_314 = arith.constant dense<0.000000e+00> : vector<128xf32>
    %547 = vector.multi_reduction <add>, %546, %cst_314 [0] : vector<8x128xf32> to vector<128xf32>
    %548 = vector.shape_cast %547 : vector<128xf32> to vector<1x128xf32>
    %cst_315 = arith.constant 7.812500e-03 : f32
    %549 = vector.broadcast %cst_315 : f32 to vector<1x128xf32>
    %550 = arith.mulf %548, %549 : vector<1x128xf32>
    %cst_316 = arith.constant 9.99999974E-6 : f32
    %551 = vector.broadcast %cst_316 : f32 to vector<1x128xf32>
    %552 = arith.addf %550, %551 : vector<1x128xf32>
    %553 = math.rsqrt %552 : vector<1x128xf32>
    %554 = vector.broadcast %553 : vector<1x128xf32> to vector<8x128xf32>
    %555 = arith.mulf %528, %554 : vector<8x128xf32>
    %556 = arith.mulf %555, %503 : vector<8x128xf32>
    %557 = arith.addf %556, %505 : vector<8x128xf32>
    %c2_317 = arith.constant 2 : index
    %c0_318 = arith.constant 0 : index
    %c0_319 = arith.constant 0 : index
    %558 = vector.load %arg10[%c2_317, %c0_318, %c0_319] : memref<3x8x40xbf16, #tpu.memory_space<vmem>>, vector<1x8x40xbf16>
    %559 = vector.shape_cast %558 : vector<1x8x40xbf16> to vector<8x40xbf16>
    %560 = vector.extract_strided_slice %419 {offsets = [1, 0, 0], sizes = [1, 8, 1], strides = [1, 1, 1]} : vector<3x8x1xf32> to vector<1x8x1xf32>
    %561 = vector.shape_cast %560 : vector<1x8x1xf32> to vector<8x1xf32>
    %c2_i32_320 = arith.constant 2 : i32
    %562 = tpu.dynamic_rotate %557 by %c2_i32_320 dim 1 : vector<8x128xf32>, i32 -> vector<8x128xf32>
    %c0_321 = arith.constant 0 : index
    %c0_322 = arith.constant 0 : index
    %c0_323 = arith.constant 0 : index
    %563 = vector.load %arg4[%c0_321, %c0_322, %c0_323] : memref<4x8x128xf32, #tpu.memory_space<vmem>>, vector<1x8x128xf32>
    %564 = vector.shape_cast %563 : vector<1x8x128xf32> to vector<8x128xf32>
    %565 = arith.mulf %562, %564 : vector<8x128xf32>
    %c0_324 = arith.constant 0 : index
    %c0_325 = arith.constant 0 : index
    %566 = vector.load %arg29[%c0_324, %c0_325] : memref<40x128xf32, #tpu.memory_space<vmem>>, vector<8x128xf32>
    tpu.vector_store %arg29[%c0_324, %c0_325], %565 {strides = array<i32>} : memref<40x128xf32, #tpu.memory_space<vmem>>, vector<8x128xf32>,
    %c1_i32_326 = arith.constant 1 : i32
    %567 = tpu.dynamic_rotate %557 by %c1_i32_326 dim 1 : vector<8x128xf32>, i32 -> vector<8x128xf32>
    %c1_327 = arith.constant 1 : index
    %c0_328 = arith.constant 0 : index
    %c0_329 = arith.constant 0 : index
    %568 = vector.load %arg4[%c1_327, %c0_328, %c0_329] : memref<4x8x128xf32, #tpu.memory_space<vmem>>, vector<1x8x128xf32>
    %569 = vector.shape_cast %568 : vector<1x8x128xf32> to vector<8x128xf32>
    %570 = arith.mulf %567, %569 : vector<8x128xf32>
    %c8_330 = arith.constant 8 : index
    %c0_331 = arith.constant 0 : index
    %571 = vector.load %arg29[%c8_330, %c0_331] : memref<40x128xf32, #tpu.memory_space<vmem>>, vector<8x128xf32>
    tpu.vector_store %arg29[%c8_330, %c0_331], %570 {strides = array<i32>} : memref<40x128xf32, #tpu.memory_space<vmem>>, vector<8x128xf32>,
    %c16_332 = arith.constant 16 : index
    %c0_333 = arith.constant 0 : index
    %572 = vector.load %arg29[%c16_332, %c0_333] : memref<40x128xf32, #tpu.memory_space<vmem>>, vector<8x128xf32>
    tpu.vector_store %arg29[%c16_332, %c0_333], %557 {strides = array<i32>} : memref<40x128xf32, #tpu.memory_space<vmem>>, vector<8x128xf32>,
    %c127_i32_334 = arith.constant 127 : i32
    %573 = tpu.dynamic_rotate %557 by %c127_i32_334 dim 1 : vector<8x128xf32>, i32 -> vector<8x128xf32>
    %c2_335 = arith.constant 2 : index
    %c0_336 = arith.constant 0 : index
    %c0_337 = arith.constant 0 : index
    %574 = vector.load %arg4[%c2_335, %c0_336, %c0_337] : memref<4x8x128xf32, #tpu.memory_space<vmem>>, vector<1x8x128xf32>
    %575 = vector.shape_cast %574 : vector<1x8x128xf32> to vector<8x128xf32>
    %576 = arith.mulf %573, %575 : vector<8x128xf32>
    %c24_338 = arith.constant 24 : index
    %c0_339 = arith.constant 0 : index
    %577 = vector.load %arg29[%c24_338, %c0_339] : memref<40x128xf32, #tpu.memory_space<vmem>>, vector<8x128xf32>
    tpu.vector_store %arg29[%c24_338, %c0_339], %576 {strides = array<i32>} : memref<40x128xf32, #tpu.memory_space<vmem>>, vector<8x128xf32>,
    %c126_i32_340 = arith.constant 126 : i32
    %578 = tpu.dynamic_rotate %557 by %c126_i32_340 dim 1 : vector<8x128xf32>, i32 -> vector<8x128xf32>
    %c3_341 = arith.constant 3 : index
    %c0_342 = arith.constant 0 : index
    %c0_343 = arith.constant 0 : index
    %579 = vector.load %arg4[%c3_341, %c0_342, %c0_343] : memref<4x8x128xf32, #tpu.memory_space<vmem>>, vector<1x8x128xf32>
    %580 = vector.shape_cast %579 : vector<1x8x128xf32> to vector<8x128xf32>
    %581 = arith.mulf %578, %580 : vector<8x128xf32>
    %c32_344 = arith.constant 32 : index
    %c0_345 = arith.constant 0 : index
    %582 = vector.load %arg29[%c32_344, %c0_345] : memref<40x128xf32, #tpu.memory_space<vmem>>, vector<8x128xf32>
    tpu.vector_store %arg29[%c32_344, %c0_345], %581 {strides = array<i32>} : memref<40x128xf32, #tpu.memory_space<vmem>>, vector<8x128xf32>,
    %c0_346 = arith.constant 0 : index
    %c0_347 = arith.constant 0 : index
    %583 = vector.load %arg29[%c0_346, %c0_347] : memref<40x128xf32, #tpu.memory_space<vmem>>, vector<40x128xf32>
    %584 = arith.truncf %583 : vector<40x128xf32> to vector<40x128xbf16>
    %cst_348 = arith.constant dense<0.000000e+00> : vector<8x128xf32>
    %585 = tpu.matmul %559, %584, %cst_348 {dimension_numbers = #tpu.dot_dimension_numbers<[1], [0], [0], [1], [0, 0, 1, 1], [], []>} : vector<8x40xbf16>, vector<40x128xbf16>, vector<8x128xf32> -> vector<8x128xf32>
    %586 = vector.broadcast %561 : vector<8x1xf32> to vector<8x128xf32>
    %587 = arith.addf %585, %586 : vector<8x128xf32>
    %588 = arith.negf %587 : vector<8x128xf32>
    %589 = math.exp %588 : vector<8x128xf32>
    %cst_349 = arith.constant 1.000000e+00 : f32
    %590 = vector.broadcast %cst_349 : f32 to vector<8x128xf32>
    %591 = arith.addf %590, %589 : vector<8x128xf32>
    %592 = arith.divf %590, %591 : vector<8x128xf32>
    %593 = arith.mulf %587, %592 : vector<8x128xf32>
    %c2_350 = arith.constant 2 : index
    %c0_351 = arith.constant 0 : index
    %c0_352 = arith.constant 0 : index
    %594 = vector.load %arg11[%c2_350, %c0_351, %c0_352] : memref<3x8x24xbf16, #tpu.memory_space<vmem>>, vector<1x8x24xbf16>
    %595 = vector.shape_cast %594 : vector<1x8x24xbf16> to vector<8x24xbf16>
    %596 = vector.extract_strided_slice %419 {offsets = [2, 0, 0], sizes = [1, 8, 1], strides = [1, 1, 1]} : vector<3x8x1xf32> to vector<1x8x1xf32>
    %597 = vector.shape_cast %596 : vector<1x8x1xf32> to vector<8x1xf32>
    %c1_i32_353 = arith.constant 1 : i32
    %598 = tpu.dynamic_rotate %593 by %c1_i32_353 dim 1 : vector<8x128xf32>, i32 -> vector<8x128xf32>
    %c1_354 = arith.constant 1 : index
    %c0_355 = arith.constant 0 : index
    %c0_356 = arith.constant 0 : index
    %599 = vector.load %arg4[%c1_354, %c0_355, %c0_356] : memref<4x8x128xf32, #tpu.memory_space<vmem>>, vector<1x8x128xf32>
    %600 = vector.shape_cast %599 : vector<1x8x128xf32> to vector<8x128xf32>
    %601 = arith.mulf %598, %600 : vector<8x128xf32>
    %c0_357 = arith.constant 0 : index
    %c0_358 = arith.constant 0 : index
    %602 = vector.load %arg29[%c0_357, %c0_358] : memref<40x128xf32, #tpu.memory_space<vmem>>, vector<8x128xf32>
    tpu.vector_store %arg29[%c0_357, %c0_358], %601 {strides = array<i32>} : memref<40x128xf32, #tpu.memory_space<vmem>>, vector<8x128xf32>,
    %c8_359 = arith.constant 8 : index
    %c0_360 = arith.constant 0 : index
    %603 = vector.load %arg29[%c8_359, %c0_360] : memref<40x128xf32, #tpu.memory_space<vmem>>, vector<8x128xf32>
    tpu.vector_store %arg29[%c8_359, %c0_360], %593 {strides = array<i32>} : memref<40x128xf32, #tpu.memory_space<vmem>>, vector<8x128xf32>,
    %c127_i32_361 = arith.constant 127 : i32
    %604 = tpu.dynamic_rotate %593 by %c127_i32_361 dim 1 : vector<8x128xf32>, i32 -> vector<8x128xf32>
    %c2_362 = arith.constant 2 : index
    %c0_363 = arith.constant 0 : index
    %c0_364 = arith.constant 0 : index
    %605 = vector.load %arg4[%c2_362, %c0_363, %c0_364] : memref<4x8x128xf32, #tpu.memory_space<vmem>>, vector<1x8x128xf32>
    %606 = vector.shape_cast %605 : vector<1x8x128xf32> to vector<8x128xf32>
    %607 = arith.mulf %604, %606 : vector<8x128xf32>
    %c16_365 = arith.constant 16 : index
    %c0_366 = arith.constant 0 : index
    %608 = vector.load %arg29[%c16_365, %c0_366] : memref<40x128xf32, #tpu.memory_space<vmem>>, vector<8x128xf32>
    tpu.vector_store %arg29[%c16_365, %c0_366], %607 {strides = array<i32>} : memref<40x128xf32, #tpu.memory_space<vmem>>, vector<8x128xf32>,
    %c0_367 = arith.constant 0 : index
    %c0_368 = arith.constant 0 : index
    %609 = vector.load %arg29[%c0_367, %c0_368] : memref<40x128xf32, #tpu.memory_space<vmem>>, vector<24x128xf32>
    %610 = arith.truncf %609 : vector<24x128xf32> to vector<24x128xbf16>
    %cst_369 = arith.constant dense<0.000000e+00> : vector<8x128xf32>
    %611 = tpu.matmul %595, %610, %cst_369 {dimension_numbers = #tpu.dot_dimension_numbers<[1], [0], [0], [1], [0, 0, 1, 1], [], []>} : vector<8x24xbf16>, vector<24x128xbf16>, vector<8x128xf32> -> vector<8x128xf32>
    %612 = vector.broadcast %597 : vector<8x1xf32> to vector<8x128xf32>
    %613 = arith.addf %611, %612 : vector<8x128xf32>
    %614 = arith.addf %613, %415 : vector<8x128xf32>
    %cst_370 = arith.constant 0.707107067 : f32
    %615 = vector.broadcast %cst_370 : f32 to vector<8x128xf32>
    %616 = arith.mulf %614, %615 : vector<8x128xf32>
    %c0_371 = arith.constant 0 : index
    %c0_372 = arith.constant 0 : index
    %617 = vector.load %arg14[%c0_371, %c0_372] : memref<8x8xbf16, #tpu.memory_space<vmem>>, vector<8x8xbf16>
    %c0_373 = arith.constant 0 : index
    %c0_374 = arith.constant 0 : index
    %c0_375 = arith.constant 0 : index
    %618 = vector.load %arg13[%c0_373, %c0_374, %c0_375] : memref<4x8x1xf32, #tpu.memory_space<vmem>>, vector<1x8x1xf32>
    %619 = vector.shape_cast %618 : vector<1x8x1xf32> to vector<8x1xf32>
    %c1_376 = arith.constant 1 : index
    %c0_377 = arith.constant 0 : index
    %c0_378 = arith.constant 0 : index
    %620 = vector.load %arg13[%c1_376, %c0_377, %c0_378] : memref<4x8x1xf32, #tpu.memory_space<vmem>>, vector<1x8x1xf32>
    %621 = vector.shape_cast %620 : vector<1x8x1xf32> to vector<8x1xf32>
    %cst_379 = arith.constant dense<0.000000e+00> : vector<128xf32>
    %622 = vector.multi_reduction <add>, %616, %cst_379 [0] : vector<8x128xf32> to vector<128xf32>
    %623 = vector.shape_cast %622 : vector<128xf32> to vector<1x128xf32>
    %cst_380 = arith.constant 1.250000e-01 : f32
    %624 = vector.broadcast %cst_380 : f32 to vector<1x128xf32>
    %625 = arith.mulf %623, %624 : vector<1x128xf32>
    %626 = vector.broadcast %625 : vector<1x128xf32> to vector<8x128xf32>
    %627 = arith.subf %616, %626 : vector<8x128xf32>
    %628 = arith.mulf %627, %627 : vector<8x128xf32>
    %cst_381 = arith.constant dense<0.000000e+00> : vector<128xf32>
    %629 = vector.multi_reduction <add>, %628, %cst_381 [0] : vector<8x128xf32> to vector<128xf32>
    %630 = vector.shape_cast %629 : vector<128xf32> to vector<1x128xf32>
    %cst_382 = arith.constant 1.250000e-01 : f32
    %631 = vector.broadcast %cst_382 : f32 to vector<1x128xf32>
    %632 = arith.mulf %630, %631 : vector<1x128xf32>
    %cst_383 = arith.constant 9.99999974E-6 : f32
    %633 = vector.broadcast %cst_383 : f32 to vector<1x128xf32>
    %634 = arith.addf %632, %633 : vector<1x128xf32>
    %635 = math.rsqrt %634 : vector<1x128xf32>
    %636 = vector.broadcast %635 : vector<1x128xf32> to vector<8x128xf32>
    %637 = arith.mulf %627, %636 : vector<8x128xf32>
    %638 = vector.broadcast %619 : vector<8x1xf32> to vector<8x128xf32>
    %639 = arith.mulf %637, %638 : vector<8x128xf32>
    %640 = vector.broadcast %621 : vector<8x1xf32> to vector<8x128xf32>
    %641 = arith.addf %639, %640 : vector<8x128xf32>
    %c0_384 = arith.constant 0 : index
    %c0_385 = arith.constant 0 : index
    %642 = vector.load %arg15[%c0_384, %c0_385] : memref<24x8xbf16, #tpu.memory_space<vmem>>, vector<24x8xbf16>
    %643 = arith.truncf %641 : vector<8x128xf32> to vector<8x128xbf16>
    %cst_386 = arith.constant dense<0.000000e+00> : vector<24x128xf32>
    %644 = tpu.matmul %642, %643, %cst_386 {dimension_numbers = #tpu.dot_dimension_numbers<[1], [0], [0], [1], [0, 0, 1, 1], [], []>} : vector<24x8xbf16>, vector<8x128xbf16>, vector<24x128xf32> -> vector<24x128xf32>
    %c0_387 = arith.constant 0 : index
    %c0_388 = arith.constant 0 : index
    %645 = vector.load %arg16[%c0_387, %c0_388] : memref<24x1xf32, #tpu.memory_space<vmem>>, vector<24x1xf32>
    %646 = vector.broadcast %645 : vector<24x1xf32> to vector<24x128xf32>
    %647 = arith.addf %644, %646 : vector<24x128xf32>
    %648 = vector.extract_strided_slice %647 {offsets = [0, 0], sizes = [8, 128], strides = [1, 1]} : vector<24x128xf32> to vector<8x128xf32>
    %cst_389 = arith.constant 0.707106769 : f32
    %649 = vector.broadcast %cst_389 : f32 to vector<8x128xf32>
    %650 = arith.mulf %648, %649 : vector<8x128xf32>
    %651 = vector.extract_strided_slice %647 {offsets = [8, 0], sizes = [8, 128], strides = [1, 1]} : vector<24x128xf32> to vector<8x128xf32>
    %652 = vector.extract_strided_slice %647 {offsets = [16, 0], sizes = [8, 128], strides = [1, 1]} : vector<24x128xf32> to vector<8x128xf32>
    %653 = arith.mulf %650, %651 : vector<8x128xf32>
    %654 = arith.truncf %653 : vector<8x128xf32> to vector<8x128xbf16>
    %cst_390 = arith.constant dense<0.000000e+00> : vector<8x128xf32>
    %655 = tpu.matmul %617, %654, %cst_390 {dimension_numbers = #tpu.dot_dimension_numbers<[1], [0], [0], [1], [0, 0, 1, 1], [], []>} : vector<8x8xbf16>, vector<8x128xbf16>, vector<8x128xf32> -> vector<8x128xf32>
    %cst_391 = arith.constant 1.000000e+00 : f32
    %656 = vector.broadcast %cst_391 : f32 to vector<8x128xf32>
    %c112_i32 = arith.constant 112 : i32
    %657 = tpu.dynamic_rotate %651 by %c112_i32 dim 1 : vector<8x128xf32>, i32 -> vector<8x128xf32>
    %c112_i32_392 = arith.constant 112 : i32
    %658 = tpu.dynamic_rotate %652 by %c112_i32_392 dim 1 : vector<8x128xf32>, i32 -> vector<8x128xf32>
    %659 = arith.mulf %650, %657 : vector<8x128xf32>
    %660 = arith.truncf %659 : vector<8x128xf32> to vector<8x128xbf16>
    %cst_393 = arith.constant dense<0.000000e+00> : vector<8x128xf32>
    %661 = tpu.matmul %617, %660, %cst_393 {dimension_numbers = #tpu.dot_dimension_numbers<[1], [0], [0], [1], [0, 0, 1, 1], [], []>} : vector<8x8xbf16>, vector<8x128xbf16>, vector<8x128xf32> -> vector<8x128xf32>
    %662 = arith.maximumf %655, %661 : vector<8x128xf32>
    %663 = arith.subf %655, %662 : vector<8x128xf32>
    %664 = math.exp %663 : vector<8x128xf32>
    %665 = arith.subf %661, %662 : vector<8x128xf32>
    %666 = math.exp %665 : vector<8x128xf32>
    %667 = arith.mulf %664, %656 : vector<8x128xf32>
    %668 = arith.addf %667, %666 : vector<8x128xf32>
    %669 = arith.mulf %664, %652 : vector<8x128xf32>
    %670 = arith.mulf %666, %658 : vector<8x128xf32>
    %671 = arith.addf %669, %670 : vector<8x128xf32>
    %c96_i32 = arith.constant 96 : i32
    %672 = tpu.dynamic_rotate %651 by %c96_i32 dim 1 : vector<8x128xf32>, i32 -> vector<8x128xf32>
    %c96_i32_394 = arith.constant 96 : i32
    %673 = tpu.dynamic_rotate %652 by %c96_i32_394 dim 1 : vector<8x128xf32>, i32 -> vector<8x128xf32>
    %674 = arith.mulf %650, %672 : vector<8x128xf32>
    %675 = arith.truncf %674 : vector<8x128xf32> to vector<8x128xbf16>
    %cst_395 = arith.constant dense<0.000000e+00> : vector<8x128xf32>
    %676 = tpu.matmul %617, %675, %cst_395 {dimension_numbers = #tpu.dot_dimension_numbers<[1], [0], [0], [1], [0, 0, 1, 1], [], []>} : vector<8x8xbf16>, vector<8x128xbf16>, vector<8x128xf32> -> vector<8x128xf32>
    %677 = arith.maximumf %662, %676 : vector<8x128xf32>
    %678 = arith.subf %662, %677 : vector<8x128xf32>
    %679 = math.exp %678 : vector<8x128xf32>
    %680 = arith.subf %676, %677 : vector<8x128xf32>
    %681 = math.exp %680 : vector<8x128xf32>
    %682 = arith.mulf %679, %668 : vector<8x128xf32>
    %683 = arith.addf %682, %681 : vector<8x128xf32>
    %684 = arith.mulf %679, %671 : vector<8x128xf32>
    %685 = arith.mulf %681, %673 : vector<8x128xf32>
    %686 = arith.addf %684, %685 : vector<8x128xf32>
    %c80_i32 = arith.constant 80 : i32
    %687 = tpu.dynamic_rotate %651 by %c80_i32 dim 1 : vector<8x128xf32>, i32 -> vector<8x128xf32>
    %c80_i32_396 = arith.constant 80 : i32
    %688 = tpu.dynamic_rotate %652 by %c80_i32_396 dim 1 : vector<8x128xf32>, i32 -> vector<8x128xf32>
    %689 = arith.mulf %650, %687 : vector<8x128xf32>
    %690 = arith.truncf %689 : vector<8x128xf32> to vector<8x128xbf16>
    %cst_397 = arith.constant dense<0.000000e+00> : vector<8x128xf32>
    %691 = tpu.matmul %617, %690, %cst_397 {dimension_numbers = #tpu.dot_dimension_numbers<[1], [0], [0], [1], [0, 0, 1, 1], [], []>} : vector<8x8xbf16>, vector<8x128xbf16>, vector<8x128xf32> -> vector<8x128xf32>
    %692 = arith.maximumf %677, %691 : vector<8x128xf32>
    %693 = arith.subf %677, %692 : vector<8x128xf32>
    %694 = math.exp %693 : vector<8x128xf32>
    %695 = arith.subf %691, %692 : vector<8x128xf32>
    %696 = math.exp %695 : vector<8x128xf32>
    %697 = arith.mulf %694, %683 : vector<8x128xf32>
    %698 = arith.addf %697, %696 : vector<8x128xf32>
    %699 = arith.mulf %694, %686 : vector<8x128xf32>
    %700 = arith.mulf %696, %688 : vector<8x128xf32>
    %701 = arith.addf %699, %700 : vector<8x128xf32>
    %c64_i32 = arith.constant 64 : i32
    %702 = tpu.dynamic_rotate %651 by %c64_i32 dim 1 : vector<8x128xf32>, i32 -> vector<8x128xf32>
    %c64_i32_398 = arith.constant 64 : i32
    %703 = tpu.dynamic_rotate %652 by %c64_i32_398 dim 1 : vector<8x128xf32>, i32 -> vector<8x128xf32>
    %704 = arith.mulf %650, %702 : vector<8x128xf32>
    %705 = arith.truncf %704 : vector<8x128xf32> to vector<8x128xbf16>
    %cst_399 = arith.constant dense<0.000000e+00> : vector<8x128xf32>
    %706 = tpu.matmul %617, %705, %cst_399 {dimension_numbers = #tpu.dot_dimension_numbers<[1], [0], [0], [1], [0, 0, 1, 1], [], []>} : vector<8x8xbf16>, vector<8x128xbf16>, vector<8x128xf32> -> vector<8x128xf32>
    %707 = arith.maximumf %692, %706 : vector<8x128xf32>
    %708 = arith.subf %692, %707 : vector<8x128xf32>
    %709 = math.exp %708 : vector<8x128xf32>
    %710 = arith.subf %706, %707 : vector<8x128xf32>
    %711 = math.exp %710 : vector<8x128xf32>
    %712 = arith.mulf %709, %698 : vector<8x128xf32>
    %713 = arith.addf %712, %711 : vector<8x128xf32>
    %714 = arith.mulf %709, %701 : vector<8x128xf32>
    %715 = arith.mulf %711, %703 : vector<8x128xf32>
    %716 = arith.addf %714, %715 : vector<8x128xf32>
    %c48_i32 = arith.constant 48 : i32
    %717 = tpu.dynamic_rotate %651 by %c48_i32 dim 1 : vector<8x128xf32>, i32 -> vector<8x128xf32>
    %c48_i32_400 = arith.constant 48 : i32
    %718 = tpu.dynamic_rotate %652 by %c48_i32_400 dim 1 : vector<8x128xf32>, i32 -> vector<8x128xf32>
    %719 = arith.mulf %650, %717 : vector<8x128xf32>
    %720 = arith.truncf %719 : vector<8x128xf32> to vector<8x128xbf16>
    %cst_401 = arith.constant dense<0.000000e+00> : vector<8x128xf32>
    %721 = tpu.matmul %617, %720, %cst_401 {dimension_numbers = #tpu.dot_dimension_numbers<[1], [0], [0], [1], [0, 0, 1, 1], [], []>} : vector<8x8xbf16>, vector<8x128xbf16>, vector<8x128xf32> -> vector<8x128xf32>
    %722 = arith.maximumf %707, %721 : vector<8x128xf32>
    %723 = arith.subf %707, %722 : vector<8x128xf32>
    %724 = math.exp %723 : vector<8x128xf32>
    %725 = arith.subf %721, %722 : vector<8x128xf32>
    %726 = math.exp %725 : vector<8x128xf32>
    %727 = arith.mulf %724, %713 : vector<8x128xf32>
    %728 = arith.addf %727, %726 : vector<8x128xf32>
    %729 = arith.mulf %724, %716 : vector<8x128xf32>
    %730 = arith.mulf %726, %718 : vector<8x128xf32>
    %731 = arith.addf %729, %730 : vector<8x128xf32>
    %c32_i32 = arith.constant 32 : i32
    %732 = tpu.dynamic_rotate %651 by %c32_i32 dim 1 : vector<8x128xf32>, i32 -> vector<8x128xf32>
    %c32_i32_402 = arith.constant 32 : i32
    %733 = tpu.dynamic_rotate %652 by %c32_i32_402 dim 1 : vector<8x128xf32>, i32 -> vector<8x128xf32>
    %734 = arith.mulf %650, %732 : vector<8x128xf32>
    %735 = arith.truncf %734 : vector<8x128xf32> to vector<8x128xbf16>
    %cst_403 = arith.constant dense<0.000000e+00> : vector<8x128xf32>
    %736 = tpu.matmul %617, %735, %cst_403 {dimension_numbers = #tpu.dot_dimension_numbers<[1], [0], [0], [1], [0, 0, 1, 1], [], []>} : vector<8x8xbf16>, vector<8x128xbf16>, vector<8x128xf32> -> vector<8x128xf32>
    %737 = arith.maximumf %722, %736 : vector<8x128xf32>
    %738 = arith.subf %722, %737 : vector<8x128xf32>
    %739 = math.exp %738 : vector<8x128xf32>
    %740 = arith.subf %736, %737 : vector<8x128xf32>
    %741 = math.exp %740 : vector<8x128xf32>
    %742 = arith.mulf %739, %728 : vector<8x128xf32>
    %743 = arith.addf %742, %741 : vector<8x128xf32>
    %744 = arith.mulf %739, %731 : vector<8x128xf32>
    %745 = arith.mulf %741, %733 : vector<8x128xf32>
    %746 = arith.addf %744, %745 : vector<8x128xf32>
    %c16_i32 = arith.constant 16 : i32
    %747 = tpu.dynamic_rotate %651 by %c16_i32 dim 1 : vector<8x128xf32>, i32 -> vector<8x128xf32>
    %c16_i32_404 = arith.constant 16 : i32
    %748 = tpu.dynamic_rotate %652 by %c16_i32_404 dim 1 : vector<8x128xf32>, i32 -> vector<8x128xf32>
    %749 = arith.mulf %650, %747 : vector<8x128xf32>
    %750 = arith.truncf %749 : vector<8x128xf32> to vector<8x128xbf16>
    %cst_405 = arith.constant dense<0.000000e+00> : vector<8x128xf32>
    %751 = tpu.matmul %617, %750, %cst_405 {dimension_numbers = #tpu.dot_dimension_numbers<[1], [0], [0], [1], [0, 0, 1, 1], [], []>} : vector<8x8xbf16>, vector<8x128xbf16>, vector<8x128xf32> -> vector<8x128xf32>
    %752 = arith.maximumf %737, %751 : vector<8x128xf32>
    %753 = arith.subf %737, %752 : vector<8x128xf32>
    %754 = math.exp %753 : vector<8x128xf32>
    %755 = arith.subf %751, %752 : vector<8x128xf32>
    %756 = math.exp %755 : vector<8x128xf32>
    %757 = arith.mulf %754, %743 : vector<8x128xf32>
    %758 = arith.addf %757, %756 : vector<8x128xf32>
    %759 = arith.mulf %754, %746 : vector<8x128xf32>
    %760 = arith.mulf %756, %748 : vector<8x128xf32>
    %761 = arith.addf %759, %760 : vector<8x128xf32>
    %762 = tpu.reciprocal %758 {approx = true} : vector<8x128xf32> -> vector<8x128xf32>
    %763 = arith.mulf %761, %762 : vector<8x128xf32>
    %c0_406 = arith.constant 0 : index
    %c0_407 = arith.constant 0 : index
    %764 = vector.load %arg17[%c0_406, %c0_407] : memref<8x8xbf16, #tpu.memory_space<vmem>>, vector<8x8xbf16>
    %765 = arith.truncf %763 : vector<8x128xf32> to vector<8x128xbf16>
    %cst_408 = arith.constant dense<0.000000e+00> : vector<8x128xf32>
    %766 = tpu.matmul %764, %765, %cst_408 {dimension_numbers = #tpu.dot_dimension_numbers<[1], [0], [0], [1], [0, 0, 1, 1], [], []>} : vector<8x8xbf16>, vector<8x128xbf16>, vector<8x128xf32> -> vector<8x128xf32>
    %767 = arith.addf %616, %766 : vector<8x128xf32>
    %c0_409 = arith.constant 0 : index
    %c0_410 = arith.constant 0 : index
    %768 = vector.load %arg18[%c0_409, %c0_410] : memref<8x1xf32, #tpu.memory_space<vmem>>, vector<8x1xf32>
    %769 = vector.broadcast %768 : vector<8x1xf32> to vector<8x128xf32>
    %770 = arith.addf %767, %769 : vector<8x128xf32>
    %c2_411 = arith.constant 2 : index
    %c0_412 = arith.constant 0 : index
    %c0_413 = arith.constant 0 : index
    %771 = vector.load %arg13[%c2_411, %c0_412, %c0_413] : memref<4x8x1xf32, #tpu.memory_space<vmem>>, vector<1x8x1xf32>
    %772 = vector.shape_cast %771 : vector<1x8x1xf32> to vector<8x1xf32>
    %c3_414 = arith.constant 3 : index
    %c0_415 = arith.constant 0 : index
    %c0_416 = arith.constant 0 : index
    %773 = vector.load %arg13[%c3_414, %c0_415, %c0_416] : memref<4x8x1xf32, #tpu.memory_space<vmem>>, vector<1x8x1xf32>
    %774 = vector.shape_cast %773 : vector<1x8x1xf32> to vector<8x1xf32>
    %cst_417 = arith.constant dense<0.000000e+00> : vector<128xf32>
    %775 = vector.multi_reduction <add>, %770, %cst_417 [0] : vector<8x128xf32> to vector<128xf32>
    %776 = vector.shape_cast %775 : vector<128xf32> to vector<1x128xf32>
    %cst_418 = arith.constant 1.250000e-01 : f32
    %777 = vector.broadcast %cst_418 : f32 to vector<1x128xf32>
    %778 = arith.mulf %776, %777 : vector<1x128xf32>
    %779 = vector.broadcast %778 : vector<1x128xf32> to vector<8x128xf32>
    %780 = arith.subf %770, %779 : vector<8x128xf32>
    %781 = arith.mulf %780, %780 : vector<8x128xf32>
    %cst_419 = arith.constant dense<0.000000e+00> : vector<128xf32>
    %782 = vector.multi_reduction <add>, %781, %cst_419 [0] : vector<8x128xf32> to vector<128xf32>
    %783 = vector.shape_cast %782 : vector<128xf32> to vector<1x128xf32>
    %cst_420 = arith.constant 1.250000e-01 : f32
    %784 = vector.broadcast %cst_420 : f32 to vector<1x128xf32>
    %785 = arith.mulf %783, %784 : vector<1x128xf32>
    %cst_421 = arith.constant 9.99999974E-6 : f32
    %786 = vector.broadcast %cst_421 : f32 to vector<1x128xf32>
    %787 = arith.addf %785, %786 : vector<1x128xf32>
    %788 = math.rsqrt %787 : vector<1x128xf32>
    %789 = vector.broadcast %788 : vector<1x128xf32> to vector<8x128xf32>
    %790 = arith.mulf %780, %789 : vector<8x128xf32>
    %791 = vector.broadcast %772 : vector<8x1xf32> to vector<8x128xf32>
    %792 = arith.mulf %790, %791 : vector<8x128xf32>
    %793 = vector.broadcast %774 : vector<8x1xf32> to vector<8x128xf32>
    %794 = arith.addf %792, %793 : vector<8x128xf32>
    %c0_422 = arith.constant 0 : index
    %c0_423 = arith.constant 0 : index
    %795 = vector.load %arg19[%c0_422, %c0_423] : memref<64x8xbf16, #tpu.memory_space<vmem>>, vector<64x8xbf16>
    %796 = arith.truncf %794 : vector<8x128xf32> to vector<8x128xbf16>
    %cst_424 = arith.constant dense<0.000000e+00> : vector<64x128xf32>
    %797 = tpu.matmul %795, %796, %cst_424 {dimension_numbers = #tpu.dot_dimension_numbers<[1], [0], [0], [1], [0, 0, 1, 1], [], []>} : vector<64x8xbf16>, vector<8x128xbf16>, vector<64x128xf32> -> vector<64x128xf32>
    %c0_425 = arith.constant 0 : index
    %c0_426 = arith.constant 0 : index
    %798 = vector.load %arg20[%c0_425, %c0_426] : memref<64x1xf32, #tpu.memory_space<vmem>>, vector<64x1xf32>
    %799 = vector.broadcast %798 : vector<64x1xf32> to vector<64x128xf32>
    %800 = arith.addf %797, %799 : vector<64x128xf32>
    %cst_427 = arith.constant 0.000000e+00 : f32
    %801 = vector.broadcast %cst_427 : f32 to vector<64x128xf32>
    %802 = arith.maximumf %800, %801 : vector<64x128xf32>
    %c0_428 = arith.constant 0 : index
    %c0_429 = arith.constant 0 : index
    %803 = vector.load %arg21[%c0_428, %c0_429] : memref<8x64xbf16, #tpu.memory_space<vmem>>, vector<8x64xbf16>
    %804 = arith.truncf %802 : vector<64x128xf32> to vector<64x128xbf16>
    %cst_430 = arith.constant dense<0.000000e+00> : vector<8x128xf32>
    %805 = tpu.matmul %803, %804, %cst_430 {dimension_numbers = #tpu.dot_dimension_numbers<[1], [0], [0], [1], [0, 0, 1, 1], [], []>} : vector<8x64xbf16>, vector<64x128xbf16>, vector<8x128xf32> -> vector<8x128xf32>
    %806 = arith.addf %770, %805 : vector<8x128xf32>
    %c0_431 = arith.constant 0 : index
    %c0_432 = arith.constant 0 : index
    %807 = vector.load %arg22[%c0_431, %c0_432] : memref<8x1xf32, #tpu.memory_space<vmem>>, vector<8x1xf32>
    %808 = vector.broadcast %807 : vector<8x1xf32> to vector<8x128xf32>
    %809 = arith.addf %806, %808 : vector<8x128xf32>
    %c0_433 = arith.constant 0 : index
    %c0_434 = arith.constant 0 : index
    %810 = vector.load %arg29[%c0_433, %c0_434] : memref<40x128xf32, #tpu.memory_space<vmem>>, vector<8x128xf32>
    tpu.vector_store %arg29[%c0_433, %c0_434], %809 {strides = array<i32>} : memref<40x128xf32, #tpu.memory_space<vmem>>, vector<8x128xf32>,
    %c0_435 = arith.constant 0 : index
    %c0_436 = arith.constant 0 : index
    %c0_437 = arith.constant 0 : index
    %811 = vector.load %arg3[%c0_435, %c0_436, %c0_437] : memref<1x16x128xf32, #tpu.memory_space<vmem>>, vector<1x16x128xf32>
    %812 = vector.shape_cast %811 : vector<1x16x128xf32> to vector<16x128xf32>
    %c8_438 = arith.constant 8 : index
    %c0_439 = arith.constant 0 : index
    %813 = vector.load %arg29[%c8_438, %c0_439] : memref<40x128xf32, #tpu.memory_space<vmem>>, vector<16x128xf32>
    tpu.vector_store %arg29[%c8_438, %c0_439], %812 {strides = array<i32>} : memref<40x128xf32, #tpu.memory_space<vmem>>, vector<16x128xf32>,
    %c0_440 = arith.constant 0 : index
    %c0_441 = arith.constant 0 : index
    %814 = vector.load %arg23[%c0_440, %c0_441] : memref<16x24xbf16, #tpu.memory_space<vmem>>, vector<16x24xbf16>
    %c0_442 = arith.constant 0 : index
    %c0_443 = arith.constant 0 : index
    %815 = vector.load %arg29[%c0_442, %c0_443] : memref<40x128xf32, #tpu.memory_space<vmem>>, vector<24x128xf32>
    %816 = arith.truncf %815 : vector<24x128xf32> to vector<24x128xbf16>
    %cst_444 = arith.constant dense<0.000000e+00> : vector<16x128xf32>
    %817 = tpu.matmul %814, %816, %cst_444 {dimension_numbers = #tpu.dot_dimension_numbers<[1], [0], [0], [1], [0, 0, 1, 1], [], []>} : vector<16x24xbf16>, vector<24x128xbf16>, vector<16x128xf32> -> vector<16x128xf32>
    %c0_445 = arith.constant 0 : index
    %c0_446 = arith.constant 0 : index
    %818 = vector.load %arg24[%c0_445, %c0_446] : memref<16x1xf32, #tpu.memory_space<vmem>>, vector<16x1xf32>
    %819 = vector.broadcast %818 : vector<16x1xf32> to vector<16x128xf32>
    %820 = arith.addf %817, %819 : vector<16x128xf32>
    %821 = vector.extract_strided_slice %820 {offsets = [0, 0], sizes = [8, 128], strides = [1, 1]} : vector<16x128xf32> to vector<8x128xf32>
    %822 = arith.negf %821 : vector<8x128xf32>
    %823 = math.exp %822 : vector<8x128xf32>
    %cst_447 = arith.constant 1.000000e+00 : f32
    %824 = vector.broadcast %cst_447 : f32 to vector<8x128xf32>
    %825 = arith.addf %824, %823 : vector<8x128xf32>
    %826 = arith.divf %824, %825 : vector<8x128xf32>
    %827 = vector.extract_strided_slice %820 {offsets = [8, 0], sizes = [8, 128], strides = [1, 1]} : vector<16x128xf32> to vector<8x128xf32>
    %828 = math.tanh %827 : vector<8x128xf32>
    %829 = arith.mulf %826, %828 : vector<8x128xf32>
    %c0_448 = arith.constant 0 : index
    %c0_449 = arith.constant 0 : index
    %830 = vector.load %arg25[%c0_448, %c0_449] : memref<16x8xbf16, #tpu.memory_space<vmem>>, vector<16x8xbf16>
    %831 = arith.truncf %829 : vector<8x128xf32> to vector<8x128xbf16>
    %cst_450 = arith.constant dense<0.000000e+00> : vector<16x128xf32>
    %832 = tpu.matmul %830, %831, %cst_450 {dimension_numbers = #tpu.dot_dimension_numbers<[1], [0], [0], [1], [0, 0, 1, 1], [], []>} : vector<16x8xbf16>, vector<8x128xbf16>, vector<16x128xf32> -> vector<16x128xf32>
    %c0_451 = arith.constant 0 : index
    %c0_452 = arith.constant 0 : index
    %833 = vector.load %arg26[%c0_451, %c0_452] : memref<16x1xf32, #tpu.memory_space<vmem>>, vector<16x1xf32>
    %834 = vector.broadcast %833 : vector<16x1xf32> to vector<16x128xf32>
    %835 = arith.addf %832, %834 : vector<16x128xf32>
    %c0_453 = arith.constant 0 : index
    %c0_454 = arith.constant 0 : index
    %c0_455 = arith.constant 0 : index
    %836 = vector.load %arg1[%c0_453, %c0_454, %c0_455] : memref<1x8x128xf32, #tpu.memory_space<vmem>>, vector<1x8x128xf32>
    %837 = vector.shape_cast %836 : vector<1x8x128xf32> to vector<8x128xf32>
    %838 = vector.extract_strided_slice %835 {offsets = [0, 0], sizes = [8, 128], strides = [1, 1]} : vector<16x128xf32> to vector<8x128xf32>
    %839 = arith.addf %837, %838 : vector<8x128xf32>
    %cst_456 = arith.constant 0.707106769 : f32
    %840 = vector.broadcast %cst_456 : f32 to vector<8x128xf32>
    %841 = arith.mulf %839, %840 : vector<8x128xf32>
    %c0_457 = arith.constant 0 : index
    %c0_458 = arith.constant 0 : index
    %c0_459 = arith.constant 0 : index
    %842 = vector.load %arg27[%c0_457, %c0_458, %c0_459] : memref<1x8x128xf32, #tpu.memory_space<vmem>>, vector<1x8x128xf32>
    %843 = vector.shape_cast %842 : vector<1x8x128xf32> to vector<8x128xf32>
    %844 = vector.shape_cast %841 : vector<8x128xf32> to vector<1x8x128xf32>
    tpu.vector_store %arg27[%c0_457, %c0_458, %c0_459], %844 {strides = array<i32>} : memref<1x8x128xf32, #tpu.memory_space<vmem>>, vector<1x8x128xf32>,
    %845 = vector.extract_strided_slice %835 {offsets = [8, 0], sizes = [8, 128], strides = [1, 1]} : vector<16x128xf32> to vector<8x128xf32>
    %c0_460 = arith.constant 0 : index
    %c0_461 = arith.constant 0 : index
    %c0_462 = arith.constant 0 : index
    %846 = vector.load %arg28[%c0_460, %c0_461, %c0_462] : memref<1x8x128xf32, #tpu.memory_space<vmem>>, vector<1x8x128xf32>
    %847 = vector.shape_cast %846 : vector<1x8x128xf32> to vector<8x128xf32>
    %848 = vector.shape_cast %845 : vector<8x128xf32> to vector<1x8x128xf32>
    tpu.vector_store %arg28[%c0_460, %c0_461, %c0_462], %848 {strides = array<i32>} : memref<1x8x128xf32, #tpu.memory_space<vmem>>, vector<1x8x128xf32>,
    return
  }
  func.func @transform_0(%arg0: i32) -> (i32, i32, i32) {
    %c0_i32 = arith.constant 0 : i32
    %c0_i32_0 = arith.constant 0 : i32
    %c0_i32_1 = arith.constant 0 : i32
    return %arg0, %c0_i32, %c0_i32_0 : i32, i32, i32
  }
  func.func @transform_1(%arg0: i32) -> (i32, i32, i32) {
    %c0_i32 = arith.constant 0 : i32
    %c0_i32_0 = arith.constant 0 : i32
    %c0_i32_1 = arith.constant 0 : i32
    return %arg0, %c0_i32, %c0_i32_0 : i32, i32, i32
  }
  func.func @transform_2(%arg0: i32) -> (i32, i32, i32) {
    %c0_i32 = arith.constant 0 : i32
    %c0_i32_0 = arith.constant 0 : i32
    %c0_i32_1 = arith.constant 0 : i32
    return %arg0, %c0_i32, %c0_i32_0 : i32, i32, i32
  }
  func.func @transform_3(%arg0: i32) -> (i32, i32, i32) {
    %c0_i32 = arith.constant 0 : i32
    %c0_i32_0 = arith.constant 0 : i32
    %c0_i32_1 = arith.constant 0 : i32
    %c0_i32_2 = arith.constant 0 : i32
    return %c0_i32, %c0_i32_0, %c0_i32_1 : i32, i32, i32
  }
  func.func @transform_4(%arg0: i32) -> (i32, i32) {
    %c0_i32 = arith.constant 0 : i32
    %c0_i32_0 = arith.constant 0 : i32
    %c0_i32_1 = arith.constant 0 : i32
    return %c0_i32, %c0_i32_0 : i32, i32
  }
  func.func @transform_5(%arg0: i32) -> (i32, i32) {
    %c0_i32 = arith.constant 0 : i32
    %c0_i32_0 = arith.constant 0 : i32
    %c0_i32_1 = arith.constant 0 : i32
    return %c0_i32, %c0_i32_0 : i32, i32
  }
  func.func @transform_6(%arg0: i32) -> (i32, i32) {
    %c0_i32 = arith.constant 0 : i32
    %c0_i32_0 = arith.constant 0 : i32
    %c0_i32_1 = arith.constant 0 : i32
    return %c0_i32, %c0_i32_0 : i32, i32
  }
  func.func @transform_7(%arg0: i32) -> (i32, i32, i32, i32) {
    %c0_i32 = arith.constant 0 : i32
    %c0_i32_0 = arith.constant 0 : i32
    %c0_i32_1 = arith.constant 0 : i32
    %c0_i32_2 = arith.constant 0 : i32
    %c0_i32_3 = arith.constant 0 : i32
    return %c0_i32, %c0_i32_0, %c0_i32_1, %c0_i32_2 : i32, i32, i32, i32
  }
  func.func @transform_8(%arg0: i32) -> (i32, i32, i32) {
    %c0_i32 = arith.constant 0 : i32
    %c0_i32_0 = arith.constant 0 : i32
    %c0_i32_1 = arith.constant 0 : i32
    %c0_i32_2 = arith.constant 0 : i32
    return %c0_i32, %c0_i32_0, %c0_i32_1 : i32, i32, i32
  }
  func.func @transform_9(%arg0: i32) -> (i32, i32, i32) {
    %c0_i32 = arith.constant 0 : i32
    %c0_i32_0 = arith.constant 0 : i32
    %c0_i32_1 = arith.constant 0 : i32
    %c0_i32_2 = arith.constant 0 : i32
    return %c0_i32, %c0_i32_0, %c0_i32_1 : i32, i32, i32
  }
  func.func @transform_10(%arg0: i32) -> (i32, i32, i32) {
    %c0_i32 = arith.constant 0 : i32
    %c0_i32_0 = arith.constant 0 : i32
    %c0_i32_1 = arith.constant 0 : i32
    %c0_i32_2 = arith.constant 0 : i32
    return %c0_i32, %c0_i32_0, %c0_i32_1 : i32, i32, i32
  }
  func.func @transform_11(%arg0: i32) -> (i32, i32, i32, i32) {
    %c0_i32 = arith.constant 0 : i32
    %c0_i32_0 = arith.constant 0 : i32
    %c0_i32_1 = arith.constant 0 : i32
    %c0_i32_2 = arith.constant 0 : i32
    %c0_i32_3 = arith.constant 0 : i32
    return %c0_i32, %c0_i32_0, %c0_i32_1, %c0_i32_2 : i32, i32, i32, i32
  }
  func.func @transform_12(%arg0: i32) -> (i32, i32, i32) {
    %c0_i32 = arith.constant 0 : i32
    %c0_i32_0 = arith.constant 0 : i32
    %c0_i32_1 = arith.constant 0 : i32
    %c0_i32_2 = arith.constant 0 : i32
    return %c0_i32, %c0_i32_0, %c0_i32_1 : i32, i32, i32
  }
  func.func @transform_13(%arg0: i32) -> (i32, i32) {
    %c0_i32 = arith.constant 0 : i32
    %c0_i32_0 = arith.constant 0 : i32
    %c0_i32_1 = arith.constant 0 : i32
    return %c0_i32, %c0_i32_0 : i32, i32
  }
  func.func @transform_14(%arg0: i32) -> (i32, i32) {
    %c0_i32 = arith.constant 0 : i32
    %c0_i32_0 = arith.constant 0 : i32
    %c0_i32_1 = arith.constant 0 : i32
    return %c0_i32, %c0_i32_0 : i32, i32
  }
  func.func @transform_15(%arg0: i32) -> (i32, i32) {
    %c0_i32 = arith.constant 0 : i32
    %c0_i32_0 = arith.constant 0 : i32
    %c0_i32_1 = arith.constant 0 : i32
    return %c0_i32, %c0_i32_0 : i32, i32
  }
  func.func @transform_16(%arg0: i32) -> (i32, i32) {
    %c0_i32 = arith.constant 0 : i32
    %c0_i32_0 = arith.constant 0 : i32
    %c0_i32_1 = arith.constant 0 : i32
    return %c0_i32, %c0_i32_0 : i32, i32
  }
  func.func @transform_17(%arg0: i32) -> (i32, i32) {
    %c0_i32 = arith.constant 0 : i32
    %c0_i32_0 = arith.constant 0 : i32
    %c0_i32_1 = arith.constant 0 : i32
    return %c0_i32, %c0_i32_0 : i32, i32
  }
  func.func @transform_18(%arg0: i32) -> (i32, i32) {
    %c0_i32 = arith.constant 0 : i32
    %c0_i32_0 = arith.constant 0 : i32
    %c0_i32_1 = arith.constant 0 : i32
    return %c0_i32, %c0_i32_0 : i32, i32
  }
  func.func @transform_19(%arg0: i32) -> (i32, i32) {
    %c0_i32 = arith.constant 0 : i32
    %c0_i32_0 = arith.constant 0 : i32
    %c0_i32_1 = arith.constant 0 : i32
    return %c0_i32, %c0_i32_0 : i32, i32
  }
  func.func @transform_20(%arg0: i32) -> (i32, i32) {
    %c0_i32 = arith.constant 0 : i32
    %c0_i32_0 = arith.constant 0 : i32
    %c0_i32_1 = arith.constant 0 : i32
    return %c0_i32, %c0_i32_0 : i32, i32
  }
  func.func @transform_21(%arg0: i32) -> (i32, i32) {
    %c0_i32 = arith.constant 0 : i32
    %c0_i32_0 = arith.constant 0 : i32
    %c0_i32_1 = arith.constant 0 : i32
    return %c0_i32, %c0_i32_0 : i32, i32
  }
  func.func @transform_22(%arg0: i32) -> (i32, i32) {
    %c0_i32 = arith.constant 0 : i32
    %c0_i32_0 = arith.constant 0 : i32
    %c0_i32_1 = arith.constant 0 : i32
    return %c0_i32, %c0_i32_0 : i32, i32
  }
  func.func @transform_23(%arg0: i32) -> (i32, i32) {
    %c0_i32 = arith.constant 0 : i32
    %c0_i32_0 = arith.constant 0 : i32
    %c0_i32_1 = arith.constant 0 : i32
    return %c0_i32, %c0_i32_0 : i32, i32
  }
  func.func @transform_24(%arg0: i32) -> (i32, i32) {
    %c0_i32 = arith.constant 0 : i32
    %c0_i32_0 = arith.constant 0 : i32
    %c0_i32_1 = arith.constant 0 : i32
    return %c0_i32, %c0_i32_0 : i32, i32
  }
  func.func @transform_25(%arg0: i32) -> (i32, i32) {
    %c0_i32 = arith.constant 0 : i32
    %c0_i32_0 = arith.constant 0 : i32
    %c0_i32_1 = arith.constant 0 : i32
    return %c0_i32, %c0_i32_0 : i32, i32
  }
  func.func @transform_26(%arg0: i32) -> (i32, i32, i32) {
    %c0_i32 = arith.constant 0 : i32
    %c0_i32_0 = arith.constant 0 : i32
    %c0_i32_1 = arith.constant 0 : i32
    return %arg0, %c0_i32, %c0_i32_0 : i32, i32, i32
  }
  func.func @transform_27(%arg0: i32) -> (i32, i32, i32) {
    %c0_i32 = arith.constant 0 : i32
    %c0_i32_0 = arith.constant 0 : i32
    %c0_i32_1 = arith.constant 0 : i32
    return %arg0, %c0_i32, %c0_i32_0 : i32, i32, i32
  }
}

</mosaic_0001>

<llo_original>
// kernel: residual_conv_block_forward.1
$region0: #{residual_conv_block_forward.1}
  #allocation0 [shape = 'u32[]', space=smem, size = 0x4, offset = 0x4, fixed_abs, tag = 'smem constant byte address 0x4 - core index']
  #allocation1 [shape = 'u32[72,128]{1,0:T(1,128)}', space=vmem, size = 0x9000, scoped, tag = 'internal scratch']
  #allocation2 [shape = 'f32[40,128]{1,0:T(8,128)}', space=vmem, size = 0x5000, scoped, tag = 'scratch operand']
  %s0 = inlined_call_operand.vmem [shape: f32[2,8,128], index: 0, kind: input, shape index: {}]
  %s1 = inlined_call_operand.vmem [shape: f32[2,1,16], index: 1, kind: input, shape index: {}]
  %s2 = inlined_call_operand.vmem [shape: f32[2,16,128], index: 2, kind: input, shape index: {}]
  %s3 = inlined_call_operand.vmem [shape: f32[4,8,128], index: 3, kind: input, shape index: {}]
  %s4 = inlined_call_operand.vmem [shape: f32[8,128], index: 4, kind: input, shape index: {}]
  %s5 = inlined_call_operand.vmem [shape: f32[8,16], index: 5, kind: input, shape index: {}]
  %s6 = inlined_call_operand.vmem [shape: f32[8,1], index: 6, kind: input, shape index: {}]
  %s7 = inlined_call_operand.vmem [shape: f32[3,4,8,128], index: 7, kind: input, shape index: {}]
  %s8 = inlined_call_operand.vmem [shape: bf16[3,8,24], index: 8, kind: input, shape index: {}]
  %s9 = inlined_call_operand.vmem [shape: bf16[3,8,40], index: 9, kind: input, shape index: {}]
  %s10 = inlined_call_operand.vmem [shape: bf16[3,8,24], index: 10, kind: input, shape index: {}]
  %s11 = inlined_call_operand.vmem [shape: f32[3,3,8,1], index: 11, kind: input, shape index: {}]
  %s12 = inlined_call_operand.vmem [shape: f32[4,8,1], index: 12, kind: input, shape index: {}]
  %s13 = inlined_call_operand.vmem [shape: bf16[8,8], index: 13, kind: input, shape index: {}]
  %s14 = inlined_call_operand.vmem [shape: bf16[24,8], index: 14, kind: input, shape index: {}]
  %s15 = inlined_call_operand.vmem [shape: f32[24,1], index: 15, kind: input, shape index: {}]
  %s16 = inlined_call_operand.vmem [shape: bf16[8,8], index: 16, kind: input, shape index: {}]
  %s17 = inlined_call_operand.vmem [shape: f32[8,1], index: 17, kind: input, shape index: {}]
  %s18 = inlined_call_operand.vmem [shape: bf16[64,8], index: 18, kind: input, shape index: {}]
  %s19 = inlined_call_operand.vmem [shape: f32[64,1], index: 19, kind: input, shape index: {}]
  %s20 = inlined_call_operand.vmem [shape: bf16[8,64], index: 20, kind: input, shape index: {}]
  %s21 = inlined_call_operand.vmem [shape: f32[8,1], index: 21, kind: input, shape index: {}]
  %s22 = inlined_call_operand.vmem [shape: bf16[16,24], index: 22, kind: input, shape index: {}]
  %s23 = inlined_call_operand.vmem [shape: f32[16,1], index: 23, kind: input, shape index: {}]
  %s24 = inlined_call_operand.vmem [shape: bf16[16,8], index: 24, kind: input, shape index: {}]
  %s25 = inlined_call_operand.vmem [shape: f32[16,1], index: 25, kind: input, shape index: {}]
  %s26 = inlined_call_operand.vmem [shape: f32[2,8,128], index: 26, kind: output, shape index: {0}]
  %s27 = inlined_call_operand.vmem [shape: f32[2,8,128], index: 27, kind: output, shape index: {1}]
  %28 = xla_tuple %s26, %s27
  %s29 = sld [smem:[#allocation0]]
  $region145: #{residual_conv_block_forward.1} parent=0
    _
  %s31 = ssub.s32 1, %s29
  %s32 = scalar_select 0, %s31, %s29
  loop: start=0, step=1, limit=4
  $region2: #{residual_conv_block_forward.1} parent=0 // loop_pre_header
    _
  $region3: #{residual_conv_block_forward.1} parent=0 // loop_header
    %s34 = sphi 0, %s38
    %p35 = scmp.ge.s32.totalorder %s34, 4
    %s44 = sphi 0, %s46
    %s47 = sphi 0, %s44
    %s48 = sphi 0, %s47
    %s64 = sphi 0, %s48
    %s70 = sphi 0, %s72
    %s73 = sphi 0, %s70
    %s74 = sphi 0, %s73
    %s90 = sphi 0, %s74
    %s96 = sphi 0, %s98
    %s99 = sphi 0, %s96
    %s100 = sphi 0, %s99
    %s116 = sphi 0, %s100
    %s120 = sphi 0, %s120
    %s122 = sphi 0, %s120
    %s123 = sphi 0, %s122
    %s137 = sphi 0, %s123
    %s141 = sphi 0, %s141
    %s143 = sphi 0, %s141
    %s144 = sphi 0, %s143
    %s158 = sphi 0, %s144
    %s162 = sphi 0, %s162
    %s164 = sphi 0, %s162
    %s165 = sphi 0, %s164
    %s179 = sphi 0, %s165
    %s183 = sphi 0, %s183
    %s185 = sphi 0, %s183
    %s186 = sphi 0, %s185
    %s200 = sphi 0, %s186
    %s204 = sphi 0, %s204
    %s206 = sphi 0, %s204
    %s207 = sphi 0, %s206
    %s221 = sphi 0, %s207
    %s225 = sphi 0, %s225
    %s227 = sphi 0, %s225
    %s228 = sphi 0, %s227
    %s242 = sphi 0, %s228
    %s246 = sphi 0, %s246
    %s248 = sphi 0, %s246
    %s249 = sphi 0, %s248
    %s263 = sphi 0, %s249
    %s267 = sphi 0, %s267
    %s269 = sphi 0, %s267
    %s270 = sphi 0, %s269
    %s284 = sphi 0, %s270
    %s288 = sphi 0, %s288
    %s290 = sphi 0, %s288
    %s291 = sphi 0, %s290
    %s305 = sphi 0, %s291
    %s309 = sphi 0, %s309
    %s311 = sphi 0, %s309
    %s312 = sphi 0, %s311
    %s326 = sphi 0, %s312
    %s330 = sphi 0, %s330
    %s332 = sphi 0, %s330
    %s333 = sphi 0, %s332
    %s347 = sphi 0, %s333
    %s351 = sphi 0, %s351
    %s353 = sphi 0, %s351
    %s354 = sphi 0, %s353
    %s368 = sphi 0, %s354
    %s372 = sphi 0, %s372
    %s374 = sphi 0, %s372
    %s375 = sphi 0, %s374
    %s389 = sphi 0, %s375
    %s393 = sphi 0, %s393
    %s395 = sphi 0, %s393
    %s396 = sphi 0, %s395
    %s410 = sphi 0, %s396
    %s414 = sphi 0, %s414
    %s416 = sphi 0, %s414
    %s417 = sphi 0, %s416
    %s431 = sphi 0, %s417
    %s435 = sphi 0, %s435
    %s437 = sphi 0, %s435
    %s438 = sphi 0, %s437
    %s452 = sphi 0, %s438
    %s456 = sphi 0, %s456
    %s458 = sphi 0, %s456
    %s459 = sphi 0, %s458
    %s473 = sphi 0, %s459
    %s477 = sphi 0, %s477
    %s479 = sphi 0, %s477
    %s480 = sphi 0, %s479
    %s494 = sphi 0, %s480
    %s498 = sphi 0, %s498
    %s500 = sphi 0, %s498
    %s501 = sphi 0, %s500
    %s515 = sphi 0, %s501
    %s519 = sphi 0, %s519
    %s521 = sphi 0, %s519
    %s522 = sphi 0, %s521
    %s536 = sphi 0, %s522
    %s540 = sphi 0, %s540
    %s542 = sphi 0, %s540
    %s543 = sphi 0, %s542
    %s557 = sphi 0, %s543
    %s561 = sphi 0, %s561
    %s563 = sphi 0, %s561
    %s564 = sphi 0, %s563
    %s578 = sphi 0, %s564
    %s582 = sphi 0, %s582
    %s584 = sphi 0, %s582
    %s585 = sphi 0, %s584
    %s599 = sphi 0, %s585
    %s605 = sphi 0, %s607
    %s608 = sphi 0, %s605
    %s609 = sphi 0, %s608
    %s625 = sphi 0, %s609
    %s631 = sphi 0, %s633
    %s634 = sphi 0, %s631
    %s635 = sphi 0, %s634
    %s651 = sphi 0, %s635
  $region4: #{residual_conv_block_forward.1} parent=0 // loop_header_branch
    %37 = sbr.rel (%p35) target = $region8
  $region5: #{residual_conv_block_forward.1} parent=0 // loop_body
    %s39 = ssub.s32 %s34, 1
    %s40 = ssub.s32 %s34, 2
    %s41 = sadd.s32 %s34, 1
    %s42 = ssub.s32 %s34, %s41
    %p43 = scmp.eq.s32.totalorder %s42, 0
    %s45 = sadd.s32 %s44, 1
    %s46 = scalar_select %p43, %s44, %s45
    %p49 = pneg %p43
    %p50 = scmp.eq.s32.totalorder %s34, 1
    %p51 = por %p49, %p50
    %p52 = scmp.ne.s32.totalorder %s44, %s47
    %p53 = scmp.eq.s32.totalorder %s34, 0
    %p54 = por %p52, %p53
    %p55 = scmp.ne.s32.totalorder %s44, %s47
    %p56 = scmp.eq.s32.totalorder %s39, 1
    %p57 = por %p55, %p56
    %p58 = scmp.ne.s32.totalorder %s47, %s48
    %p59 = scmp.eq.s32.totalorder %s39, 0
    %p60 = por %p58, %p59
    %p61 = scmp.ne.s32.totalorder %s47, %s48
    %p62 = scmp.eq.s32.totalorder %s40, 1
    %p63 = por %p61, %p62
    %p65 = scmp.ne.s32.totalorder %s48, %s64
    %p66 = scmp.eq.s32.totalorder %s40, 0
    %p67 = por %p65, %p66
    %s68 = ssub.s32 %s34, %s41
    %p69 = scmp.eq.s32.totalorder %s68, 0
    %s71 = sadd.s32 %s70, 1
    %s72 = scalar_select %p69, %s70, %s71
    %p75 = pneg %p69
    %p76 = scmp.eq.s32.totalorder %s34, 1
    %p77 = por %p75, %p76
    %p78 = scmp.ne.s32.totalorder %s70, %s73
    %p79 = scmp.eq.s32.totalorder %s34, 0
    %p80 = por %p78, %p79
    %p81 = scmp.ne.s32.totalorder %s70, %s73
    %p82 = scmp.eq.s32.totalorder %s39, 1
    %p83 = por %p81, %p82
    %p84 = scmp.ne.s32.totalorder %s73, %s74
    %p85 = scmp.eq.s32.totalorder %s39, 0
    %p86 = por %p84, %p85
    %p87 = scmp.ne.s32.totalorder %s73, %s74
    %p88 = scmp.eq.s32.totalorder %s40, 1
    %p89 = por %p87, %p88
    %p91 = scmp.ne.s32.totalorder %s74, %s90
    %p92 = scmp.eq.s32.totalorder %s40, 0
    %p93 = por %p91, %p92
    %s94 = ssub.s32 %s34, %s41
    %p95 = scmp.eq.s32.totalorder %s94, 0
    %s97 = sadd.s32 %s96, 1
    %s98 = scalar_select %p95, %s96, %s97
    %p101 = pneg %p95
    %p102 = scmp.eq.s32.totalorder %s34, 1
    %p103 = por %p101, %p102
    %p104 = scmp.ne.s32.totalorder %s96, %s99
    %p105 = scmp.eq.s32.totalorder %s34, 0
    %p106 = por %p104, %p105
    %p107 = scmp.ne.s32.totalorder %s96, %s99
    %p108 = scmp.eq.s32.totalorder %s39, 1
    %p109 = por %p107, %p108
    %p110 = scmp.ne.s32.totalorder %s99, %s100
    %p111 = scmp.eq.s32.totalorder %s39, 0
    %p112 = por %p110, %p111
    %p113 = scmp.ne.s32.totalorder %s99, %s100
    %p114 = scmp.eq.s32.totalorder %s40, 1
    %p115 = por %p113, %p114
    %p117 = scmp.ne.s32.totalorder %s100, %s116
    %p118 = scmp.eq.s32.totalorder %s40, 0
    %p119 = por %p117, %p118
    %s121 = sadd.s32 %s120, 1
    %p124 = scmp.eq.s32.totalorder %s34, 1
    %p125 = scmp.ne.s32.totalorder %s120, %s122
    %p126 = scmp.eq.s32.totalorder %s34, 0
    %p127 = por %p125, %p126
    %p128 = scmp.ne.s32.totalorder %s120, %s122
    %p129 = scmp.eq.s32.totalorder %s39, 1
    %p130 = por %p128, %p129
    %p131 = scmp.ne.s32.totalorder %s122, %s123
    %p132 = scmp.eq.s32.totalorder %s39, 0
    %p133 = por %p131, %p132
    %p134 = scmp.ne.s32.totalorder %s122, %s123
    %p135 = scmp.eq.s32.totalorder %s40, 1
    %p136 = por %p134, %p135
    %p138 = scmp.ne.s32.totalorder %s123, %s137
    %p139 = scmp.eq.s32.totalorder %s40, 0
    %p140 = por %p138, %p139
    %s142 = sadd.s32 %s141, 1
    %p145 = scmp.eq.s32.totalorder %s34, 1
    %p146 = scmp.ne.s32.totalorder %s141, %s143
    %p147 = scmp.eq.s32.totalorder %s34, 0
    %p148 = por %p146, %p147
    %p149 = scmp.ne.s32.totalorder %s141, %s143
    %p150 = scmp.eq.s32.totalorder %s39, 1
    %p151 = por %p149, %p150
    %p152 = scmp.ne.s32.totalorder %s143, %s144
    %p153 = scmp.eq.s32.totalorder %s39, 0
    %p154 = por %p152, %p153
    %p155 = scmp.ne.s32.totalorder %s143, %s144
    %p156 = scmp.eq.s32.totalorder %s40, 1
    %p157 = por %p155, %p156
    %p159 = scmp.ne.s32.totalorder %s144, %s158
    %p160 = scmp.eq.s32.totalorder %s40, 0
    %p161 = por %p159, %p160
    %s163 = sadd.s32 %s162, 1
    %p166 = scmp.eq.s32.totalorder %s34, 1
    %p167 = scmp.ne.s32.totalorder %s162, %s164
    %p168 = scmp.eq.s32.totalorder %s34, 0
    %p169 = por %p167, %p168
    %p170 = scmp.ne.s32.totalorder %s162, %s164
    %p171 = scmp.eq.s32.totalorder %s39, 1
    %p172 = por %p170, %p171
    %p173 = scmp.ne.s32.totalorder %s164, %s165
    %p174 = scmp.eq.s32.totalorder %s39, 0
    %p175 = por %p173, %p174
    %p176 = scmp.ne.s32.totalorder %s164, %s165
    %p177 = scmp.eq.s32.totalorder %s40, 1
    %p178 = por %p176, %p177
    %p180 = scmp.ne.s32.totalorder %s165, %s179
    %p181 = scmp.eq.s32.totalorder %s40, 0
    %p182 = por %p180, %p181
    %s184 = sadd.s32 %s183, 1
    %p187 = scmp.eq.s32.totalorder %s34, 1
    %p188 = scmp.ne.s32.totalorder %s183, %s185
    %p189 = scmp.eq.s32.totalorder %s34, 0
    %p190 = por %p188, %p189
    %p191 = scmp.ne.s32.totalorder %s183, %s185
    %p192 = scmp.eq.s32.totalorder %s39, 1
    %p193 = por %p191, %p192
    %p194 = scmp.ne.s32.totalorder %s185, %s186
    %p195 = scmp.eq.s32.totalorder %s39, 0
    %p196 = por %p194, %p195
    %p197 = scmp.ne.s32.totalorder %s185, %s186
    %p198 = scmp.eq.s32.totalorder %s40, 1
    %p199 = por %p197, %p198
    %p201 = scmp.ne.s32.totalorder %s186, %s200
    %p202 = scmp.eq.s32.totalorder %s40, 0
    %p203 = por %p201, %p202
    %s205 = sadd.s32 %s204, 1
    %p208 = scmp.eq.s32.totalorder %s34, 1
    %p209 = scmp.ne.s32.totalorder %s204, %s206
    %p210 = scmp.eq.s32.totalorder %s34, 0
    %p211 = por %p209, %p210
    %p212 = scmp.ne.s32.totalorder %s204, %s206
    %p213 = scmp.eq.s32.totalorder %s39, 1
    %p214 = por %p212, %p213
    %p215 = scmp.ne.s32.totalorder %s206, %s207
    %p216 = scmp.eq.s32.totalorder %s39, 0
    %p217 = por %p215, %p216
    %p218 = scmp.ne.s32.totalorder %s206, %s207
    %p219 = scmp.eq.s32.totalorder %s40, 1
    %p220 = por %p218, %p219
    %p222 = scmp.ne.s32.totalorder %s207, %s221
    %p223 = scmp.eq.s32.totalorder %s40, 0
    %p224 = por %p222, %p223
    %s226 = sadd.s32 %s225, 1
    %p229 = scmp.eq.s32.totalorder %s34, 1
    %p230 = scmp.ne.s32.totalorder %s225, %s227
    %p231 = scmp.eq.s32.totalorder %s34, 0
    %p232 = por %p230, %p231
    %p233 = scmp.ne.s32.totalorder %s225, %s227
    %p234 = scmp.eq.s32.totalorder %s39, 1
    %p235 = por %p233, %p234
    %p236 = scmp.ne.s32.totalorder %s227, %s228
    %p237 = scmp.eq.s32.totalorder %s39, 0
    %p238 = por %p236, %p237
    %p239 = scmp.ne.s32.totalorder %s227, %s228
    %p240 = scmp.eq.s32.totalorder %s40, 1
    %p241 = por %p239, %p240
    %p243 = scmp.ne.s32.totalorder %s228, %s242
    %p244 = scmp.eq.s32.totalorder %s40, 0
    %p245 = por %p243, %p244
    %s247 = sadd.s32 %s246, 1
    %p250 = scmp.eq.s32.totalorder %s34, 1
    %p251 = scmp.ne.s32.totalorder %s246, %s248
    %p252 = scmp.eq.s32.totalorder %s34, 0
    %p253 = por %p251, %p252
    %p254 = scmp.ne.s32.totalorder %s246, %s248
    %p255 = scmp.eq.s32.totalorder %s39, 1
    %p256 = por %p254, %p255
    %p257 = scmp.ne.s32.totalorder %s248, %s249
    %p258 = scmp.eq.s32.totalorder %s39, 0
    %p259 = por %p257, %p258
    %p260 = scmp.ne.s32.totalorder %s248, %s249
    %p261 = scmp.eq.s32.totalorder %s40, 1
    %p262 = por %p260, %p261
    %p264 = scmp.ne.s32.totalorder %s249, %s263
    %p265 = scmp.eq.s32.totalorder %s40, 0
    %p266 = por %p264, %p265
    %s268 = sadd.s32 %s267, 1
    %p271 = scmp.eq.s32.totalorder %s34, 1
    %p272 = scmp.ne.s32.totalorder %s267, %s269
    %p273 = scmp.eq.s32.totalorder %s34, 0
    %p274 = por %p272, %p273
    %p275 = scmp.ne.s32.totalorder %s267, %s269
    %p276 = scmp.eq.s32.totalorder %s39, 1
    %p277 = por %p275, %p276
    %p278 = scmp.ne.s32.totalorder %s269, %s270
    %p279 = scmp.eq.s32.totalorder %s39, 0
    %p280 = por %p278, %p279
    %p281 = scmp.ne.s32.totalorder %s269, %s270
    %p282 = scmp.eq.s32.totalorder %s40, 1
    %p283 = por %p281, %p282
    %p285 = scmp.ne.s32.totalorder %s270, %s284
    %p286 = scmp.eq.s32.totalorder %s40, 0
    %p287 = por %p285, %p286
    %s289 = sadd.s32 %s288, 1
    %p292 = scmp.eq.s32.totalorder %s34, 1
    %p293 = scmp.ne.s32.totalorder %s288, %s290
    %p294 = scmp.eq.s32.totalorder %s34, 0
    %p295 = por %p293, %p294
    %p296 = scmp.ne.s32.totalorder %s288, %s290
    %p297 = scmp.eq.s32.totalorder %s39, 1
    %p298 = por %p296, %p297
    %p299 = scmp.ne.s32.totalorder %s290, %s291
    %p300 = scmp.eq.s32.totalorder %s39, 0
    %p301 = por %p299, %p300
    %p302 = scmp.ne.s32.totalorder %s290, %s291
    %p303 = scmp.eq.s32.totalorder %s40, 1
    %p304 = por %p302, %p303
    %p306 = scmp.ne.s32.totalorder %s291, %s305
    %p307 = scmp.eq.s32.totalorder %s40, 0
    %p308 = por %p306, %p307
    %s310 = sadd.s32 %s309, 1
    %p313 = scmp.eq.s32.totalorder %s34, 1
    %p314 = scmp.ne.s32.totalorder %s309, %s311
    %p315 = scmp.eq.s32.totalorder %s34, 0
    %p316 = por %p314, %p315
    %p317 = scmp.ne.s32.totalorder %s309, %s311
    %p318 = scmp.eq.s32.totalorder %s39, 1
    %p319 = por %p317, %p318
    %p320 = scmp.ne.s32.totalorder %s311, %s312
    %p321 = scmp.eq.s32.totalorder %s39, 0
    %p322 = por %p320, %p321
    %p323 = scmp.ne.s32.totalorder %s311, %s312
    %p324 = scmp.eq.s32.totalorder %s40, 1
    %p325 = por %p323, %p324
    %p327 = scmp.ne.s32.totalorder %s312, %s326
    %p328 = scmp.eq.s32.totalorder %s40, 0
    %p329 = por %p327, %p328
    %s331 = sadd.s32 %s330, 1
    %p334 = scmp.eq.s32.totalorder %s34, 1
    %p335 = scmp.ne.s32.totalorder %s330, %s332
    %p336 = scmp.eq.s32.totalorder %s34, 0
    %p337 = por %p335, %p336
    %p338 = scmp.ne.s32.totalorder %s330, %s332
    %p339 = scmp.eq.s32.totalorder %s39, 1
    %p340 = por %p338, %p339
    %p341 = scmp.ne.s32.totalorder %s332, %s333
    %p342 = scmp.eq.s32.totalorder %s39, 0
    %p343 = por %p341, %p342
    %p344 = scmp.ne.s32.totalorder %s332, %s333
    %p345 = scmp.eq.s32.totalorder %s40, 1
    %p346 = por %p344, %p345
    %p348 = scmp.ne.s32.totalorder %s333, %s347
    %p349 = scmp.eq.s32.totalorder %s40, 0
    %p350 = por %p348, %p349
    %s352 = sadd.s32 %s351, 1
    %p355 = scmp.eq.s32.totalorder %s34, 1
    %p356 = scmp.ne.s32.totalorder %s351, %s353
    %p357 = scmp.eq.s32.totalorder %s34, 0
    %p358 = por %p356, %p357
    %p359 = scmp.ne.s32.totalorder %s351, %s353
    %p360 = scmp.eq.s32.totalorder %s39, 1
    %p361 = por %p359, %p360
    %p362 = scmp.ne.s32.totalorder %s353, %s354
    %p363 = scmp.eq.s32.totalorder %s39, 0
    %p364 = por %p362, %p363
    %p365 = scmp.ne.s32.totalorder %s353, %s354
    %p366 = scmp.eq.s32.totalorder %s40, 1
    %p367 = por %p365, %p366
    %p369 = scmp.ne.s32.totalorder %s354, %s368
    %p370 = scmp.eq.s32.totalorder %s40, 0
    %p371 = por %p369, %p370
    %s373 = sadd.s32 %s372, 1
    %p376 = scmp.eq.s32.totalorder %s34, 1
    %p377 = scmp.ne.s32.totalorder %s372, %s374
    %p378 = scmp.eq.s32.totalorder %s34, 0
    %p379 = por %p377, %p378
    %p380 = scmp.ne.s32.totalorder %s372, %s374
    %p381 = scmp.eq.s32.totalorder %s39, 1
    %p382 = por %p380, %p381
    %p383 = scmp.ne.s32.totalorder %s374, %s375
    %p384 = scmp.eq.s32.totalorder %s39, 0
    %p385 = por %p383, %p384
    %p386 = scmp.ne.s32.totalorder %s374, %s375
    %p387 = scmp.eq.s32.totalorder %s40, 1
    %p388 = por %p386, %p387
    %p390 = scmp.ne.s32.totalorder %s375, %s389
    %p391 = scmp.eq.s32.totalorder %s40, 0
    %p392 = por %p390, %p391
    %s394 = sadd.s32 %s393, 1
    %p397 = scmp.eq.s32.totalorder %s34, 1
    %p398 = scmp.ne.s32.totalorder %s393, %s395
    %p399 = scmp.eq.s32.totalorder %s34, 0
    %p400 = por %p398, %p399
    %p401 = scmp.ne.s32.totalorder %s393, %s395
    %p402 = scmp.eq.s32.totalorder %s39, 1
    %p403 = por %p401, %p402
    %p404 = scmp.ne.s32.totalorder %s395, %s396
    %p405 = scmp.eq.s32.totalorder %s39, 0
    %p406 = por %p404, %p405
    %p407 = scmp.ne.s32.totalorder %s395, %s396
    %p408 = scmp.eq.s32.totalorder %s40, 1
    %p409 = por %p407, %p408
    %p411 = scmp.ne.s32.totalorder %s396, %s410
    %p412 = scmp.eq.s32.totalorder %s40, 0
    %p413 = por %p411, %p412
    %s415 = sadd.s32 %s414, 1
    %p418 = scmp.eq.s32.totalorder %s34, 1
    %p419 = scmp.ne.s32.totalorder %s414, %s416
    %p420 = scmp.eq.s32.totalorder %s34, 0
    %p421 = por %p419, %p420
    %p422 = scmp.ne.s32.totalorder %s414, %s416
    %p423 = scmp.eq.s32.totalorder %s39, 1
    %p424 = por %p422, %p423
    %p425 = scmp.ne.s32.totalorder %s416, %s417
    %p426 = scmp.eq.s32.totalorder %s39, 0
    %p427 = por %p425, %p426
    %p428 = scmp.ne.s32.totalorder %s416, %s417
    %p429 = scmp.eq.s32.totalorder %s40, 1
    %p430 = por %p428, %p429
    %p432 = scmp.ne.s32.totalorder %s417, %s431
    %p433 = scmp.eq.s32.totalorder %s40, 0
    %p434 = por %p432, %p433
    %s436 = sadd.s32 %s435, 1
    %p439 = scmp.eq.s32.totalorder %s34, 1
    %p440 = scmp.ne.s32.totalorder %s435, %s437
    %p441 = scmp.eq.s32.totalorder %s34, 0
    %p442 = por %p440, %p441
    %p443 = scmp.ne.s32.totalorder %s435, %s437
    %p444 = scmp.eq.s32.totalorder %s39, 1
    %p445 = por %p443, %p444
    %p446 = scmp.ne.s32.totalorder %s437, %s438
    %p447 = scmp.eq.s32.totalorder %s39, 0
    %p448 = por %p446, %p447
    %p449 = scmp.ne.s32.totalorder %s437, %s438
    %p450 = scmp.eq.s32.totalorder %s40, 1
    %p451 = por %p449, %p450
    %p453 = scmp.ne.s32.totalorder %s438, %s452
    %p454 = scmp.eq.s32.totalorder %s40, 0
    %p455 = por %p453, %p454
    %s457 = sadd.s32 %s456, 1
    %p460 = scmp.eq.s32.totalorder %s34, 1
    %p461 = scmp.ne.s32.totalorder %s456, %s458
    %p462 = scmp.eq.s32.totalorder %s34, 0
    %p463 = por %p461, %p462
    %p464 = scmp.ne.s32.totalorder %s456, %s458
    %p465 = scmp.eq.s32.totalorder %s39, 1
    %p466 = por %p464, %p465
    %p467 = scmp.ne.s32.totalorder %s458, %s459
    %p468 = scmp.eq.s32.totalorder %s39, 0
    %p469 = por %p467, %p468
    %p470 = scmp.ne.s32.totalorder %s458, %s459
    %p471 = scmp.eq.s32.totalorder %s40, 1
    %p472 = por %p470, %p471
    %p474 = scmp.ne.s32.totalorder %s459, %s473
    %p475 = scmp.eq.s32.totalorder %s40, 0
    %p476 = por %p474, %p475
    %s478 = sadd.s32 %s477, 1
    %p481 = scmp.eq.s32.totalorder %s34, 1
    %p482 = scmp.ne.s32.totalorder %s477, %s479
    %p483 = scmp.eq.s32.totalorder %s34, 0
    %p484 = por %p482, %p483
    %p485 = scmp.ne.s32.totalorder %s477, %s479
    %p486 = scmp.eq.s32.totalorder %s39, 1
    %p487 = por %p485, %p486
    %p488 = scmp.ne.s32.totalorder %s479, %s480
    %p489 = scmp.eq.s32.totalorder %s39, 0
    %p490 = por %p488, %p489
    %p491 = scmp.ne.s32.totalorder %s479, %s480
    %p492 = scmp.eq.s32.totalorder %s40, 1
    %p493 = por %p491, %p492
    %p495 = scmp.ne.s32.totalorder %s480, %s494
    %p496 = scmp.eq.s32.totalorder %s40, 0
    %p497 = por %p495, %p496
    %s499 = sadd.s32 %s498, 1
    %p502 = scmp.eq.s32.totalorder %s34, 1
    %p503 = scmp.ne.s32.totalorder %s498, %s500
    %p504 = scmp.eq.s32.totalorder %s34, 0
    %p505 = por %p503, %p504
    %p506 = scmp.ne.s32.totalorder %s498, %s500
    %p507 = scmp.eq.s32.totalorder %s39, 1
    %p508 = por %p506, %p507
    %p509 = scmp.ne.s32.totalorder %s500, %s501
    %p510 = scmp.eq.s32.totalorder %s39, 0
    %p511 = por %p509, %p510
    %p512 = scmp.ne.s32.totalorder %s500, %s501
    %p513 = scmp.eq.s32.totalorder %s40, 1
    %p514 = por %p512, %p513
    %p516 = scmp.ne.s32.totalorder %s501, %s515
    %p517 = scmp.eq.s32.totalorder %s40, 0
    %p518 = por %p516, %p517
    %s520 = sadd.s32 %s519, 1
    %p523 = scmp.eq.s32.totalorder %s34, 1
    %p524 = scmp.ne.s32.totalorder %s519, %s521
    %p525 = scmp.eq.s32.totalorder %s34, 0
    %p526 = por %p524, %p525
    %p527 = scmp.ne.s32.totalorder %s519, %s521
    %p528 = scmp.eq.s32.totalorder %s39, 1
    %p529 = por %p527, %p528
    %p530 = scmp.ne.s32.totalorder %s521, %s522
    %p531 = scmp.eq.s32.totalorder %s39, 0
    %p532 = por %p530, %p531
    %p533 = scmp.ne.s32.totalorder %s521, %s522
    %p534 = scmp.eq.s32.totalorder %s40, 1
    %p535 = por %p533, %p534
    %p537 = scmp.ne.s32.totalorder %s522, %s536
    %p538 = scmp.eq.s32.totalorder %s40, 0
    %p539 = por %p537, %p538
    %s541 = sadd.s32 %s540, 1
    %p544 = scmp.eq.s32.totalorder %s34, 1
    %p545 = scmp.ne.s32.totalorder %s540, %s542
    %p546 = scmp.eq.s32.totalorder %s34, 0
    %p547 = por %p545, %p546
    %p548 = scmp.ne.s32.totalorder %s540, %s542
    %p549 = scmp.eq.s32.totalorder %s39, 1
    %p550 = por %p548, %p549
    %p551 = scmp.ne.s32.totalorder %s542, %s543
    %p552 = scmp.eq.s32.totalorder %s39, 0
    %p553 = por %p551, %p552
    %p554 = scmp.ne.s32.totalorder %s542, %s543
    %p555 = scmp.eq.s32.totalorder %s40, 1
    %p556 = por %p554, %p555
    %p558 = scmp.ne.s32.totalorder %s543, %s557
    %p559 = scmp.eq.s32.totalorder %s40, 0
    %p560 = por %p558, %p559
    %s562 = sadd.s32 %s561, 1
    %p565 = scmp.eq.s32.totalorder %s34, 1
    %p566 = scmp.ne.s32.totalorder %s561, %s563
    %p567 = scmp.eq.s32.totalorder %s34, 0
    %p568 = por %p566, %p567
    %p569 = scmp.ne.s32.totalorder %s561, %s563
    %p570 = scmp.eq.s32.totalorder %s39, 1
    %p571 = por %p569, %p570
    %p572 = scmp.ne.s32.totalorder %s563, %s564
    %p573 = scmp.eq.s32.totalorder %s39, 0
    %p574 = por %p572, %p573
    %p575 = scmp.ne.s32.totalorder %s563, %s564
    %p576 = scmp.eq.s32.totalorder %s40, 1
    %p577 = por %p575, %p576
    %p579 = scmp.ne.s32.totalorder %s564, %s578
    %p580 = scmp.eq.s32.totalorder %s40, 0
    %p581 = por %p579, %p580
    %s583 = sadd.s32 %s582, 1
    %p586 = scmp.eq.s32.totalorder %s34, 1
    %p587 = scmp.ne.s32.totalorder %s582, %s584
    %p588 = scmp.eq.s32.totalorder %s34, 0
    %p589 = por %p587, %p588
    %p590 = scmp.ne.s32.totalorder %s582, %s584
    %p591 = scmp.eq.s32.totalorder %s39, 1
    %p592 = por %p590, %p591
    %p593 = scmp.ne.s32.totalorder %s584, %s585
    %p594 = scmp.eq.s32.totalorder %s39, 0
    %p595 = por %p593, %p594
    %p596 = scmp.ne.s32.totalorder %s584, %s585
    %p597 = scmp.eq.s32.totalorder %s40, 1
    %p598 = por %p596, %p597
    %p600 = scmp.ne.s32.totalorder %s585, %s599
    %p601 = scmp.eq.s32.totalorder %s40, 0
    %p602 = por %p600, %p601
    %s603 = ssub.s32 %s34, %s41
    %p604 = scmp.eq.s32.totalorder %s603, 0
    %s606 = sadd.s32 %s605, 1
    %s607 = scalar_select %p604, %s605, %s606
    %p610 = pneg %p604
    %p611 = scmp.eq.s32.totalorder %s34, 1
    %p612 = por %p610, %p611
    %p613 = scmp.ne.s32.totalorder %s605, %s608
    %p614 = scmp.eq.s32.totalorder %s34, 0
    %p615 = por %p613, %p614
    %p616 = scmp.ne.s32.totalorder %s605, %s608
    %p617 = scmp.eq.s32.totalorder %s39, 1
    %p618 = por %p616, %p617
    %p619 = scmp.ne.s32.totalorder %s608, %s609
    %p620 = scmp.eq.s32.totalorder %s39, 0
    %p621 = por %p619, %p620
    %p622 = scmp.ne.s32.totalorder %s608, %s609
    %p623 = scmp.eq.s32.totalorder %s40, 1
    %p624 = por %p622, %p623
    %p626 = scmp.ne.s32.totalorder %s609, %s625
    %p627 = scmp.eq.s32.totalorder %s40, 0
    %p628 = por %p626, %p627
    %s629 = ssub.s32 %s34, %s41
    %p630 = scmp.eq.s32.totalorder %s629, 0
    %s632 = sadd.s32 %s631, 1
    %s633 = scalar_select %p630, %s631, %s632
    %p636 = pneg %p630
    %p637 = scmp.eq.s32.totalorder %s34, 1
    %p638 = por %p636, %p637
    %p639 = scmp.ne.s32.totalorder %s631, %s634
    %p640 = scmp.eq.s32.totalorder %s34, 0
    %p641 = por %p639, %p640
    %p642 = scmp.ne.s32.totalorder %s631, %s634
    %p643 = scmp.eq.s32.totalorder %s39, 1
    %p644 = por %p642, %p643
    %p645 = scmp.ne.s32.totalorder %s634, %s635
    %p646 = scmp.eq.s32.totalorder %s39, 0
    %p647 = por %p645, %p646
    %p648 = scmp.ne.s32.totalorder %s634, %s635
    %p649 = scmp.eq.s32.totalorder %s40, 1
    %p650 = por %p648, %p649
    %p652 = scmp.ne.s32.totalorder %s635, %s651
    %p653 = scmp.eq.s32.totalorder %s40, 0
    %p654 = por %p652, %p653
    %p655 = scmp.le.s32.totalorder 1, %s34
    %p656 = scmp.lt.s32.totalorder %s34, 3
    %p657 = pnand %p655, %p656
    %p658 = pneg %p657
    // Predicated region
    $region9: #{residual_conv_block_forward.1} parent=5 // pred_check
      _
    $region10: #{residual_conv_block_forward.1} parent=5 // pred_check_branch
      %660 = sbr.rel (%p657) target = $region12
    $region11: #{residual_conv_block_forward.1} parent=5 // pred_region
      %s661 = ssub.s32 %s34, 1
      // Predicated region
      $region13: #{residual_conv_block_forward.1} parent=11 // pred_check
        %p662 = pneg %p133
      $region14: #{residual_conv_block_forward.1} parent=11 // pred_check_branch
        %664 = sbr.rel (%p662) target = $region16
      $region15: #{residual_conv_block_forward.1} parent=11 // pred_region
        _
      $region16: #{residual_conv_block_forward.1} parent=11 // pred_fallthru
        _
      // Predicated region
      $region17: #{residual_conv_block_forward.1} parent=11 // pred_check
        %p665 = pneg %p154
      $region18: #{residual_conv_block_forward.1} parent=11 // pred_check_branch
        %667 = sbr.rel (%p665) target = $region20
      $region19: #{residual_conv_block_forward.1} parent=11 // pred_region
        _
      $region20: #{residual_conv_block_forward.1} parent=11 // pred_fallthru
        _
      // Predicated region
      $region21: #{residual_conv_block_forward.1} parent=11 // pred_check
        %p668 = pneg %p175
      $region22: #{residual_conv_block_forward.1} parent=11 // pred_check_branch
        %670 = sbr.rel (%p668) target = $region24
      $region23: #{residual_conv_block_forward.1} parent=11 // pred_region
        _
      $region24: #{residual_conv_block_forward.1} parent=11 // pred_fallthru
        _
      // Predicated region
      $region25: #{residual_conv_block_forward.1} parent=11 // pred_check
        %p671 = pneg %p196
      $region26: #{residual_conv_block_forward.1} parent=11 // pred_check_branch
        %673 = sbr.rel (%p671) target = $region28
      $region27: #{residual_conv_block_forward.1} parent=11 // pred_region
        _
      $region28: #{residual_conv_block_forward.1} parent=11 // pred_fallthru
        _
      // Predicated region
      $region29: #{residual_conv_block_forward.1} parent=11 // pred_check
        %p674 = pneg %p217
      $region30: #{residual_conv_block_forward.1} parent=11 // pred_check_branch
        %676 = sbr.rel (%p674) target = $region32
      $region31: #{residual_conv_block_forward.1} parent=11 // pred_region
        _
      $region32: #{residual_conv_block_forward.1} parent=11 // pred_fallthru
        _
      // Predicated region
      $region33: #{residual_conv_block_forward.1} parent=11 // pred_check
        %p677 = pneg %p238
      $region34: #{residual_conv_block_forward.1} parent=11 // pred_check_branch
        %679 = sbr.rel (%p677) target = $region36
      $region35: #{residual_conv_block_forward.1} parent=11 // pred_region
        _
      $region36: #{residual_conv_block_forward.1} parent=11 // pred_fallthru
        _
      // Predicated region
      $region37: #{residual_conv_block_forward.1} parent=11 // pred_check
        %p680 = pneg %p259
      $region38: #{residual_conv_block_forward.1} parent=11 // pred_check_branch
        %682 = sbr.rel (%p680) target = $region40
      $region39: #{residual_conv_block_forward.1} parent=11 // pred_region
        _
      $region40: #{residual_conv_block_forward.1} parent=11 // pred_fallthru
        _
      // Predicated region
      $region41: #{residual_conv_block_forward.1} parent=11 // pred_check
        %p683 = pneg %p280
      $region42: #{residual_conv_block_forward.1} parent=11 // pred_check_branch
        %685 = sbr.rel (%p683) target = $region44
      $region43: #{residual_conv_block_forward.1} parent=11 // pred_region
        _
      $region44: #{residual_conv_block_forward.1} parent=11 // pred_fallthru
        _
      // Predicated region
      $region45: #{residual_conv_block_forward.1} parent=11 // pred_check
        %p686 = pneg %p301
      $region46: #{residual_conv_block_forward.1} parent=11 // pred_check_branch
        %688 = sbr.rel (%p686) target = $region48
      $region47: #{residual_conv_block_forward.1} parent=11 // pred_region
        _
      $region48: #{residual_conv_block_forward.1} parent=11 // pred_fallthru
        _
      // Predicated region
      $region49: #{residual_conv_block_forward.1} parent=11 // pred_check
        %p689 = pneg %p322
      $region50: #{residual_conv_block_forward.1} parent=11 // pred_check_branch
        %691 = sbr.rel (%p689) target = $region52
      $region51: #{residual_conv_block_forward.1} parent=11 // pred_region
        _
      $region52: #{residual_conv_block_forward.1} parent=11 // pred_fallthru
        _
      // Predicated region
      $region53: #{residual_conv_block_forward.1} parent=11 // pred_check
        %p692 = pneg %p343
      $region54: #{residual_conv_block_forward.1} parent=11 // pred_check_branch
        %694 = sbr.rel (%p692) target = $region56
      $region55: #{residual_conv_block_forward.1} parent=11 // pred_region
        _
      $region56: #{residual_conv_block_forward.1} parent=11 // pred_fallthru
        _
      // Predicated region
      $region57: #{residual_conv_block_forward.1} parent=11 // pred_check
        %p695 = pneg %p364
      $region58: #{residual_conv_block_forward.1} parent=11 // pred_check_branch
        %697 = sbr.rel (%p695) target = $region60
      $region59: #{residual_conv_block_forward.1} parent=11 // pred_region
        _
      $region60: #{residual_conv_block_forward.1} parent=11 // pred_fallthru
        _
      // Predicated region
      $region61: #{residual_conv_block_forward.1} parent=11 // pred_check
        %p698 = pneg %p385
      $region62: #{residual_conv_block_forward.1} parent=11 // pred_check_branch
        %700 = sbr.rel (%p698) target = $region64
      $region63: #{residual_conv_block_forward.1} parent=11 // pred_region
        _
      $region64: #{residual_conv_block_forward.1} parent=11 // pred_fallthru
        _
      // Predicated region
      $region65: #{residual_conv_block_forward.1} parent=11 // pred_check
        %p701 = pneg %p406
      $region66: #{residual_conv_block_forward.1} parent=11 // pred_check_branch
        %703 = sbr.rel (%p701) target = $region68
      $region67: #{residual_conv_block_forward.1} parent=11 // pred_region
        _
      $region68: #{residual_conv_block_forward.1} parent=11 // pred_fallthru
        _
      // Predicated region
      $region69: #{residual_conv_block_forward.1} parent=11 // pred_check
        %p704 = pneg %p427
      $region70: #{residual_conv_block_forward.1} parent=11 // pred_check_branch
        %706 = sbr.rel (%p704) target = $region72
      $region71: #{residual_conv_block_forward.1} parent=11 // pred_region
        _
      $region72: #{residual_conv_block_forward.1} parent=11 // pred_fallthru
        _
      // Predicated region
      $region73: #{residual_conv_block_forward.1} parent=11 // pred_check
        %p707 = pneg %p448
      $region74: #{residual_conv_block_forward.1} parent=11 // pred_check_branch
        %709 = sbr.rel (%p707) target = $region76
      $region75: #{residual_conv_block_forward.1} parent=11 // pred_region
        _
      $region76: #{residual_conv_block_forward.1} parent=11 // pred_fallthru
        _
      // Predicated region
      $region77: #{residual_conv_block_forward.1} parent=11 // pred_check
        %p710 = pneg %p469
      $region78: #{residual_conv_block_forward.1} parent=11 // pred_check_branch
        %712 = sbr.rel (%p710) target = $region80
      $region79: #{residual_conv_block_forward.1} parent=11 // pred_region
        _
      $region80: #{residual_conv_block_forward.1} parent=11 // pred_fallthru
        _
      // Predicated region
      $region81: #{residual_conv_block_forward.1} parent=11 // pred_check
        %p713 = pneg %p490
      $region82: #{residual_conv_block_forward.1} parent=11 // pred_check_branch
        %715 = sbr.rel (%p713) target = $region84
      $region83: #{residual_conv_block_forward.1} parent=11 // pred_region
        _
      $region84: #{residual_conv_block_forward.1} parent=11 // pred_fallthru
        _
      // Predicated region
      $region85: #{residual_conv_block_forward.1} parent=11 // pred_check
        %p716 = pneg %p511
      $region86: #{residual_conv_block_forward.1} parent=11 // pred_check_branch
        %718 = sbr.rel (%p716) target = $region88
      $region87: #{residual_conv_block_forward.1} parent=11 // pred_region
        _
      $region88: #{residual_conv_block_forward.1} parent=11 // pred_fallthru
        _
      // Predicated region
      $region89: #{residual_conv_block_forward.1} parent=11 // pred_check
        %p719 = pneg %p532
      $region90: #{residual_conv_block_forward.1} parent=11 // pred_check_branch
        %721 = sbr.rel (%p719) target = $region92
      $region91: #{residual_conv_block_forward.1} parent=11 // pred_region
        _
      $region92: #{residual_conv_block_forward.1} parent=11 // pred_fallthru
        _
      // Predicated region
      $region93: #{residual_conv_block_forward.1} parent=11 // pred_check
        %p722 = pneg %p553
      $region94: #{residual_conv_block_forward.1} parent=11 // pred_check_branch
        %724 = sbr.rel (%p722) target = $region96
      $region95: #{residual_conv_block_forward.1} parent=11 // pred_region
        _
      $region96: #{residual_conv_block_forward.1} parent=11 // pred_fallthru
        _
      // Predicated region
      $region97: #{residual_conv_block_forward.1} parent=11 // pred_check
        %p725 = pneg %p574
      $region98: #{residual_conv_block_forward.1} parent=11 // pred_check_branch
        %727 = sbr.rel (%p725) target = $region100
      $region99: #{residual_conv_block_forward.1} parent=11 // pred_region
        _
      $region100: #{residual_conv_block_forward.1} parent=11 // pred_fallthru
        _
      // Predicated region
      $region101: #{residual_conv_block_forward.1} parent=11 // pred_check
        %p728 = pneg %p595
      $region102: #{residual_conv_block_forward.1} parent=11 // pred_check_branch
        %730 = sbr.rel (%p728) target = $region104
      $region103: #{residual_conv_block_forward.1} parent=11 // pred_region
        _
      $region104: #{residual_conv_block_forward.1} parent=11 // pred_fallthru
        _
    $region12: #{residual_conv_block_forward.1} parent=5 // pred_fallthru
      _
    %p731 = scmp.lt.s32.totalorder %s34, 2
    // Predicated region
    $region105: #{residual_conv_block_forward.1} parent=5 // pred_check
      %p732 = pneg %p731
    $region106: #{residual_conv_block_forward.1} parent=5 // pred_check_branch
      %734 = sbr.rel (%p732) target = $region108
    $region107: #{residual_conv_block_forward.1} parent=5 // pred_region
      // Predicated region
      $region109: #{residual_conv_block_forward.1} parent=107 // pred_check
        %p735 = pneg %p54
      $region110: #{residual_conv_block_forward.1} parent=107 // pred_check_branch
        %737 = sbr.rel (%p735) target = $region112
      $region111: #{residual_conv_block_forward.1} parent=107 // pred_region
        %p738 = scmp.lt.s32.totalorder %s34, 1
        %s739 = scalar_select %p738, %s34, 1
        %s740 = smul.addr %s739, 8
        %s741 = scalar_lea.vmem %s0, %s740
      $region112: #{residual_conv_block_forward.1} parent=107 // pred_fallthru
        _
      // Predicated region
      $region113: #{residual_conv_block_forward.1} parent=107 // pred_check
        %p742 = pneg %p80
      $region114: #{residual_conv_block_forward.1} parent=107 // pred_check_branch
        %744 = sbr.rel (%p742) target = $region116
      $region115: #{residual_conv_block_forward.1} parent=107 // pred_region
        %p745 = scmp.lt.s32.totalorder %s34, 1
        %s746 = scalar_select %p745, %s34, 1
        %s747 = scalar_lea.vmem %s1, %s746
      $region116: #{residual_conv_block_forward.1} parent=107 // pred_fallthru
        _
      // Predicated region
      $region117: #{residual_conv_block_forward.1} parent=107 // pred_check
        %p748 = pneg %p106
      $region118: #{residual_conv_block_forward.1} parent=107 // pred_check_branch
        %750 = sbr.rel (%p748) target = $region120
      $region119: #{residual_conv_block_forward.1} parent=107 // pred_region
        %p751 = scmp.lt.s32.totalorder %s34, 1
        %s752 = scalar_select %p751, %s34, 1
        %s753 = smul.addr %s752, 2
        %s754 = smul.addr %s753, 8
        %s755 = scalar_lea.vmem %s2, %s754
      $region120: #{residual_conv_block_forward.1} parent=107 // pred_fallthru
        _
    $region108: #{residual_conv_block_forward.1} parent=5 // pred_fallthru
      _
    %p756 = scmp.le.s32.totalorder 1, %s34
    %p757 = scmp.lt.s32.totalorder %s34, 3
    %p758 = pnand %p756, %p757
    %p759 = pneg %p758
    // Predicated region
    $region121: #{residual_conv_block_forward.1} parent=5 // pred_check
      _
    $region122: #{residual_conv_block_forward.1} parent=5 // pred_check_branch
      %761 = sbr.rel (%p758) target = $region124
    $region123: #{residual_conv_block_forward.1} parent=5 // pred_region
      %s762 = ssub.s32 %s34, 1
      %p763 = scmp.lt.s32.totalorder %s39, 1
      %s764 = scalar_select %p763, %s39, 1
      %s765 = smul.addr %s764, 8
      %s766 = scalar_lea.vmem %s0, %s765
      %p767 = pneg %p60
      %p768 = pneg %p57
      %p769 = scmp.lt.s32.totalorder %s39, 1
      %s770 = scalar_select %p769, %s39, 1
      %s771 = scalar_lea.vmem %s1, %s770
      %p772 = pneg %p86
      %p773 = pneg %p83
      %p774 = scmp.lt.s32.totalorder %s39, 1
      %s775 = scalar_select %p774, %s39, 1
      %s776 = smul.addr %s775, 2
      %s777 = smul.addr %s776, 8
      %s778 = scalar_lea.vmem %s2, %s777
      %p779 = pneg %p112
      %p780 = pneg %p109
      %p781 = pneg %p133
      %p782 = pneg %p130
      %p783 = pneg %p154
      %p784 = pneg %p151
      %p785 = pneg %p175
      %p786 = pneg %p172
      %p787 = pneg %p196
      %p788 = pneg %p193
      %p789 = pneg %p217
      %p790 = pneg %p214
      %p791 = pneg %p238
      %p792 = pneg %p235
      %p793 = pneg %p259
      %p794 = pneg %p256
      %p795 = pneg %p280
      %p796 = pneg %p277
      %p797 = pneg %p301
      %p798 = pneg %p298
      %p799 = pneg %p322
      %p800 = pneg %p319
      %p801 = pneg %p343
      %p802 = pneg %p340
      %p803 = pneg %p364
      %p804 = pneg %p361
      %p805 = pneg %p385
      %p806 = pneg %p382
      %p807 = pneg %p406
      %p808 = pneg %p403
      %p809 = pneg %p427
      %p810 = pneg %p424
      %p811 = pneg %p448
      %p812 = pneg %p445
      %p813 = pneg %p469
      %p814 = pneg %p466
      %p815 = pneg %p490
      %p816 = pneg %p487
      %p817 = pneg %p511
      %p818 = pneg %p508
      %p819 = pneg %p532
      %p820 = pneg %p529
      %p821 = pneg %p553
      %p822 = pneg %p550
      %p823 = pneg %p574
      %p824 = pneg %p571
      %p825 = pneg %p595
      %p826 = pneg %p592
      %p827 = pneg %p621
      %p828 = pneg %p618
      %p829 = scmp.lt.s32.totalorder %s39, 1
      %s830 = scalar_select %p829, %s39, 1
      %s831 = smul.addr %s830, 8
      %s832 = scalar_lea.vmem %s26, %s831
      %p833 = pneg %p647
      %p834 = pneg %p644
      %p835 = scmp.lt.s32.totalorder %s39, 1
      %s836 = scalar_select %p835, %s39, 1
      %s837 = smul.addr %s836, 8
      %s838 = scalar_lea.vmem %s27, %s837
      %p839 = scmp.lt.s32.totalorder %s39, 1
      %s840 = scalar_select %p839, %s39, 1
      %s841 = smul.addr %s840, 8
      %s842 = scalar_lea.vmem %s0, %s841
      %p843 = scmp.lt.s32.totalorder %s39, 1
      %s844 = scalar_select %p843, %s39, 1
      %s845 = scalar_lea.vmem %s1, %s844
      %p846 = scmp.lt.s32.totalorder %s39, 1
      %s847 = scalar_select %p846, %s39, 1
      %s848 = smul.addr %s847, 2
      %s849 = smul.addr %s848, 8
      %s850 = scalar_lea.vmem %s2, %s849
      %p851 = scmp.lt.s32.totalorder %s39, 1
      %s852 = scalar_select %p851, %s39, 1
      %s853 = smul.addr %s852, 8
      %s854 = scalar_lea.vmem %s26, %s853
      %p855 = scmp.lt.s32.totalorder %s39, 1
      %s856 = scalar_select %p855, %s39, 1
      %s857 = smul.addr %s856, 8
      %s858 = scalar_lea.vmem %s27, %s857
      %v860 = vld [vmem:[%s4] sm:$0xff]
      %v861 = vld [vmem:[%s5] sm:$0xff]
      %v862 = vld [vmem:[%s845] sm:$0x1]
      %v864 = vperm.slane %v862, 0
      %v866 = vmul.f32 %v861, %v864
      %vm867 = vcmask 130048
      %v868 = vsel %vm867, %v866, 0.0
      %869 = vadd.xlane.f32.xlu0 %v868
      %v870 = vpop.xlane.xlu0 %869
      %v871 = vld [vmem:[%s6] sm:$0xff]
      %v872 = vadd.f32 %v870, %v871
      %v873 = vld [vmem:[%s842] sm:$0xff]
      %875 = vset.pattern.permute.xlu0 0
      %876 = vperm.xlu0 %875, %v872
      %v877 = vpop.permute.xlu0 %876
      %v879 = vadd.f32 %v873, %v877
      %v880 = vld [vmem:[%s7] sm:$0xff]
      %v881 = vld [vmem:[%s7 + $0x8] sm:$0xff]
      %v882 = vld [vmem:[%s7 + $0x10] sm:$0xff]
      %v883 = vld [vmem:[%s7 + $0x18] sm:$0xff]
      %v884 = vld [vmem:[%s11] sm:$0xff]
      %v885 = vld [vmem:[%s11 + $0x8] sm:$0xff]
      %v886 = vld [vmem:[%s11 + $0x10] sm:$0xff]
      %887 = vrot.lane.b32.xlu0 %v879, 127
      %v888 = vpop.permute.xlu0 %887
      %v889 = vadd.f32 %v879, %v888
      %890 = vrot.lane.b32.xlu0 %v889, 126
      %v891 = vpop.permute.xlu0 %890
      %v892 = vadd.f32 %v889, %v891
      %893 = vrot.lane.b32.xlu0 %v892, 124
      %v894 = vpop.permute.xlu0 %893
      %v895 = vadd.f32 %v892, %v894
      %896 = vrot.lane.b32.xlu0 %v895, 120
      %v897 = vpop.permute.xlu0 %896
      %v898 = vadd.f32 %v895, %v897
      %v899 = vmul.f32 %v898, %v860
      %900 = vrot.lane.b32.xlu0 %v899, 1
      %v901 = vpop.permute.xlu0 %900
      %v902 = vadd.f32 %v899, %v901
      %903 = vrot.lane.b32.xlu0 %v902, 2
      %v904 = vpop.permute.xlu0 %903
      %v905 = vadd.f32 %v902, %v904
      %906 = vrot.lane.b32.xlu0 %v905, 4
      %v907 = vpop.permute.xlu0 %906
      %v908 = vadd.f32 %v905, %v907
      %909 = vrot.lane.b32.xlu0 %v908, 8
      %v910 = vpop.permute.xlu0 %909
      %v911 = vadd.f32 %v908, %v910
      %v912 = vrot.slane %v911, 4
      %v913 = vadd.f32 %v911, %v912
      %v914 = vrot.slane %v913, 2
      %v915 = vadd.f32 %v913, %v914
      %v916 = vrot.slane %v915, 1
      %v917 = vadd.f32 %v915, %v916
      %v918 = vmul.f32 %v917, 0.0078125
      %v919 = vsub.f32 %v879, %v918
      %v920 = vmul.f32 %v919, %v919
      %921 = vrot.lane.b32.xlu0 %v920, 127
      %v922 = vpop.permute.xlu0 %921
      %v923 = vadd.f32 %v920, %v922
      %924 = vrot.lane.b32.xlu0 %v923, 126
      %v925 = vpop.permute.xlu0 %924
      %v926 = vadd.f32 %v923, %v925
      %927 = vrot.lane.b32.xlu0 %v926, 124
      %v928 = vpop.permute.xlu0 %927
      %v929 = vadd.f32 %v926, %v928
      %930 = vrot.lane.b32.xlu0 %v929, 120
      %v931 = vpop.permute.xlu0 %930
      %v932 = vadd.f32 %v929, %v931
      %v933 = vmul.f32 %v932, %v860
      %934 = vrot.lane.b32.xlu0 %v933, 1
      %v935 = vpop.permute.xlu0 %934
      %v936 = vadd.f32 %v933, %v935
      %937 = vrot.lane.b32.xlu0 %v936, 2
      %v938 = vpop.permute.xlu0 %937
      %v939 = vadd.f32 %v936, %v938
      %940 = vrot.lane.b32.xlu0 %v939, 4
      %v941 = vpop.permute.xlu0 %940
      %v942 = vadd.f32 %v939, %v941
      %943 = vrot.lane.b32.xlu0 %v942, 8
      %v944 = vpop.permute.xlu0 %943
      %v945 = vadd.f32 %v942, %v944
      %v946 = vrot.slane %v945, 4
      %v947 = vadd.f32 %v945, %v946
      %v948 = vrot.slane %v947, 2
      %v949 = vadd.f32 %v947, %v948
      %v950 = vrot.slane %v949, 1
      %v951 = vadd.f32 %v949, %v950
      %v952 = vmul.f32 %v951, 0.0078125
      %v953 = vadd.f32 %v952, 1e-05
      %v954 = vrsqrt.pop %v953
      %v955 = vmul.f32 %v954, %v953
      %v956 = vmul.f32 %v955, %v954
      %v957 = vmul.f32 0.5, %v956
      %v958 = vsub.f32 1.5, %v957
      %v959 = vmul.f32 %v954, %v958
      %vm960 = vweird.f32 %v953
      %vm961 = vweird.f32 %v954
      %vm962 = vmor %vm960, %vm961
      %v963 = vsel %vm962, %v954, %v959
      %v964 = vmul.f32 %v919, %v963
      %v965 = vmul.f32 %v964, %v880
      %v966 = vadd.f32 %v965, %v881
      %v967 = vld [vmem:[%s8] sm:$0xf]
      %968 = vrot.lane.b32.xlu0 %v966, 1
      %v969 = vpop.permute.xlu0 %968
      %s970 = scalar_lea.vmem %s3, 8
      %v971 = vld [vmem:[%s970] sm:$0xff]
      %v972 = vmul.f32 %v969, %v971
      %973 = vst [vmem:[#allocation2] sm:$0xff] %v972
      %974 = vst [vmem:[#allocation2 + $0x8] sm:$0xff] %v966
      %975 = vrot.lane.b32.xlu0 %v966, 127
      %v976 = vpop.permute.xlu0 %975
      %s977 = scalar_lea.vmem %s3, 16
      %v978 = vld [vmem:[%s977] sm:$0xff]
      %v979 = vmul.f32 %v976, %v978
      %980 = vst [vmem:[#allocation2 + $0x10] sm:$0xff] %v979
      %v981 = vld [vmem:[#allocation2] sm:$0xff]
      %v982 = vld [vmem:[#allocation2 + $0x8] sm:$0xff]
      %v983 = vld [vmem:[#allocation2 + $0x10] sm:$0xff]
      %v984 = vpack.c.bf16 %v982, %v981
      %v985 = vpack.c.bf16 %v983, %v983
      %987 = vset.pattern.permute.xlu0 0
      %988 = vperm.xlu0 %987, %v884
      %v989 = vpop.permute.xlu0 %988
      %vm991 = vcmask 195584
      %v993 = vsel %vm991, %v967, 0
      %vm995 = vcmask 1043456
      %v997 = vsel %vm995, %v985, 0
      %999 = vmatpush.bf16.msra.mxu0 0
      %1000 = vmatpush.bf16.msra.mxu0 0
      %1001 = vmatpush.bf16.msra.mxu0 0
      %1002 = vmatpush.bf16.msra.mxu0 0
      %1003 = vmatpush.bf16.msra.mxu0 0
      %1004 = vmatpush.bf16.msra.mxu0 0
      %1005 = vmatpush.bf16.msra.mxu0 %v997
      %1006 = vmatpush.bf16.msra.mxu0 %v984
      %1007 = vmatmul.bf16.gmra.mxu0 %v993
      %v1008 = vpop.f32.mrf.mxu0
      %v1009 = vadd.f32 %v989, %v1008
      %v1010 = vpop.f32.mrf.mxu0
      %1011 = vdwg.mxu0
      %v1012 = vxor.u32 %v1009, 2147483648
      %v1013 = vmul.f32 %v1012, 1.442695
      %v1014 = vpow.pop %v1013
      %v1015 = vadd.f32 %v1014, 1.0
      %v1016 = vrcp.pop %v1015
      %v1017 = vmul.f32 %v1015, %v1016
      %v1018 = vsub.f32 1.0, %v1017
      %v1019 = vmul.f32 %v1016, %v1018
      %v1020 = vadd.f32 %v1016, %v1019
      %vm1021 = vweird.f32 %v1015
      %vm1022 = vweird.f32 %v1016
      %vm1023 = vmor %vm1021, %vm1022
      %v1024 = vsel %vm1023, %v1016, %v1020
      %v1025 = vand.u32 2147483647, %v1015
      %vm1026 = vcmp.eq.f32.partialorder %v1025, 8.507059e+37
      %v1027 = vand.u32 %v1015, 2147483648
      %v1028 = vor.u32 1.1754944e-38, %v1027
      %v1029 = vsel %vm1026, %v1028, %v1024
      %v1030 = vmul.f32 1.0, %v1029
      %v1031 = vmul.f32 %v1009, %v1030
      %1032 = vrot.lane.b32.xlu0 %v1031, 127
      %v1033 = vpop.permute.xlu0 %1032
      %v1034 = vadd.f32 %v1031, %v1033
      %1035 = vrot.lane.b32.xlu0 %v1034, 126
      %v1036 = vpop.permute.xlu0 %1035
      %v1037 = vadd.f32 %v1034, %v1036
      %1038 = vrot.lane.b32.xlu0 %v1037, 124
      %v1039 = vpop.permute.xlu0 %1038
      %v1040 = vadd.f32 %v1037, %v1039
      %1041 = vrot.lane.b32.xlu0 %v1040, 120
      %v1042 = vpop.permute.xlu0 %1041
      %v1043 = vadd.f32 %v1040, %v1042
      %v1044 = vmul.f32 %v1043, %v860
      %1045 = vrot.lane.b32.xlu0 %v1044, 1
      %v1046 = vpop.permute.xlu0 %1045
      %v1047 = vadd.f32 %v1044, %v1046
      %1048 = vrot.lane.b32.xlu0 %v1047, 2
      %v1049 = vpop.permute.xlu0 %1048
      %v1050 = vadd.f32 %v1047, %v1049
      %1051 = vrot.lane.b32.xlu0 %v1050, 4
      %v1052 = vpop.permute.xlu0 %1051
      %v1053 = vadd.f32 %v1050, %v1052
      %1054 = vrot.lane.b32.xlu0 %v1053, 8
      %v1055 = vpop.permute.xlu0 %1054
      %v1056 = vadd.f32 %v1053, %v1055
      %v1057 = vrot.slane %v1056, 4
      %v1058 = vadd.f32 %v1056, %v1057
      %v1059 = vrot.slane %v1058, 2
      %v1060 = vadd.f32 %v1058, %v1059
      %v1061 = vrot.slane %v1060, 1
      %v1062 = vadd.f32 %v1060, %v1061
      %v1063 = vmul.f32 %v1062, 0.0078125
      %v1064 = vsub.f32 %v1031, %v1063
      %v1065 = vmul.f32 %v1064, %v1064
      %1066 = vrot.lane.b32.xlu0 %v1065, 127
      %v1067 = vpop.permute.xlu0 %1066
      %v1068 = vadd.f32 %v1065, %v1067
      %1069 = vrot.lane.b32.xlu0 %v1068, 126
      %v1070 = vpop.permute.xlu0 %1069
      %v1071 = vadd.f32 %v1068, %v1070
      %1072 = vrot.lane.b32.xlu0 %v1071, 124
      %v1073 = vpop.permute.xlu0 %1072
      %v1074 = vadd.f32 %v1071, %v1073
      %1075 = vrot.lane.b32.xlu0 %v1074, 120
      %v1076 = vpop.permute.xlu0 %1075
      %v1077 = vadd.f32 %v1074, %v1076
      %v1078 = vmul.f32 %v1077, %v860
      %1079 = vrot.lane.b32.xlu0 %v1078, 1
      %v1080 = vpop.permute.xlu0 %1079
      %v1081 = vadd.f32 %v1078, %v1080
      %1082 = vrot.lane.b32.xlu0 %v1081, 2
      %v1083 = vpop.permute.xlu0 %1082
      %v1084 = vadd.f32 %v1081, %v1083
      %1085 = vrot.lane.b32.xlu0 %v1084, 4
      %v1086 = vpop.permute.xlu0 %1085
      %v1087 = vadd.f32 %v1084, %v1086
      %1088 = vrot.lane.b32.xlu0 %v1087, 8
      %v1089 = vpop.permute.xlu0 %1088
      %v1090 = vadd.f32 %v1087, %v1089
      %v1091 = vrot.slane %v1090, 4
      %v1092 = vadd.f32 %v1090, %v1091
      %v1093 = vrot.slane %v1092, 2
      %v1094 = vadd.f32 %v1092, %v1093
      %v1095 = vrot.slane %v1094, 1
      %v1096 = vadd.f32 %v1094, %v1095
      %v1097 = vmul.f32 %v1096, 0.0078125
      %v1098 = vadd.f32 %v1097, 1e-05
      %v1099 = vrsqrt.pop %v1098
      %v1100 = vmul.f32 %v1099, %v1098
      %v1101 = vmul.f32 %v1100, %v1099
      %v1102 = vmul.f32 0.5, %v1101
      %v1103 = vsub.f32 1.5, %v1102
      %v1104 = vmul.f32 %v1099, %v1103
      %vm1105 = vweird.f32 %v1098
      %vm1106 = vweird.f32 %v1099
      %vm1107 = vmor %vm1105, %vm1106
      %v1108 = vsel %vm1107, %v1099, %v1104
      %v1109 = vmul.f32 %v1064, %v1108
      %v1110 = vmul.f32 %v1109, %v882
      %v1111 = vadd.f32 %v1110, %v883
      %v1112 = vld [vmem:[%s9] sm:$0xf]
      %1113 = vrot.lane.b32.xlu0 %v1111, 2
      %v1114 = vpop.permute.xlu0 %1113
      %v1115 = vld [vmem:[%s3] sm:$0xff]
      %v1116 = vmul.f32 %v1114, %v1115
      %1117 = vst [vmem:[#allocation2] sm:$0xff] %v1116
      %1118 = vrot.lane.b32.xlu0 %v1111, 1
      %v1119 = vpop.permute.xlu0 %1118
      %v1120 = vld [vmem:[%s970] sm:$0xff]
      %v1121 = vmul.f32 %v1119, %v1120
      %1122 = vst [vmem:[#allocation2 + $0x8] sm:$0xff] %v1121
      %1123 = vst [vmem:[#allocation2 + $0x10] sm:$0xff] %v1111
      %1124 = vrot.lane.b32.xlu0 %v1111, 127
      %v1125 = vpop.permute.xlu0 %1124
      %v1126 = vld [vmem:[%s977] sm:$0xff]
      %v1127 = vmul.f32 %v1125, %v1126
      %1128 = vst [vmem:[#allocation2 + $0x18] sm:$0xff] %v1127
      %1129 = vrot.lane.b32.xlu0 %v1111, 126
      %v1130 = vpop.permute.xlu0 %1129
      %s1131 = scalar_lea.vmem %s3, 24
      %v1132 = vld [vmem:[%s1131] sm:$0xff]
      %v1133 = vmul.f32 %v1130, %v1132
      %1134 = vst [vmem:[#allocation2 + $0x20] sm:$0xff] %v1133
      %v1135 = vld [vmem:[#allocation2] sm:$0xff]
      %v1136 = vld [vmem:[#allocation2 + $0x8] sm:$0xff]
      %v1137 = vld [vmem:[#allocation2 + $0x10] sm:$0xff]
      %v1138 = vld [vmem:[#allocation2 + $0x18] sm:$0xff]
      %v1139 = vld [vmem:[#allocation2 + $0x20] sm:$0xff]
      %v1140 = vpack.c.bf16 %v1136, %v1135
      %v1141 = vpack.c.bf16 %v1138, %v1137
      %v1142 = vpack.c.bf16 %v1139, %v1139
      %1144 = vset.pattern.permute.xlu0 0
      %1145 = vperm.xlu0 %1144, %v885
      %v1146 = vpop.permute.xlu0 %1145
      %vm1148 = vcmask 326656
      %v1150 = vsel %vm1148, %v1112, 0
      %v1153 = vsel %vm995, %v1142, 0
      %1155 = vmatpush.bf16.msra.mxu0 0
      %1156 = vmatpush.bf16.msra.mxu0 0
      %1157 = vmatpush.bf16.msra.mxu0 0
      %1158 = vmatpush.bf16.msra.mxu0 0
      %1159 = vmatpush.bf16.msra.mxu0 0
      %1160 = vmatpush.bf16.msra.mxu0 %v1153
      %1161 = vmatpush.bf16.msra.mxu0 %v1141
      %1162 = vmatpush.bf16.msra.mxu0 %v1140
      %1163 = vmatmul.bf16.gmra.mxu0 %v1150
      %v1164 = vpop.f32.mrf.mxu0
      %v1165 = vadd.f32 %v1146, %v1164
      %v1166 = vpop.f32.mrf.mxu0
      %1167 = vdwg.mxu0
      %v1168 = vxor.u32 %v1165, 2147483648
      %v1169 = vmul.f32 %v1168, 1.442695
      %v1170 = vpow.pop %v1169
      %v1171 = vadd.f32 %v1170, 1.0
      %v1172 = vrcp.pop %v1171
      %v1173 = vmul.f32 %v1171, %v1172
      %v1174 = vsub.f32 1.0, %v1173
      %v1175 = vmul.f32 %v1172, %v1174
      %v1176 = vadd.f32 %v1172, %v1175
      %vm1177 = vweird.f32 %v1171
      %vm1178 = vweird.f32 %v1172
      %vm1179 = vmor %vm1177, %vm1178
      %v1180 = vsel %vm1179, %v1172, %v1176
      %v1181 = vand.u32 2147483647, %v1171
      %vm1182 = vcmp.eq.f32.partialorder %v1181, 8.507059e+37
      %v1183 = vand.u32 %v1171, 2147483648
      %v1184 = vor.u32 1.1754944e-38, %v1183
      %v1185 = vsel %vm1182, %v1184, %v1180
      %v1186 = vmul.f32 1.0, %v1185
      %v1187 = vmul.f32 %v1165, %v1186
      %v1188 = vld [vmem:[%s10] sm:$0xf]
      %1189 = vrot.lane.b32.xlu0 %v1187, 1
      %v1190 = vpop.permute.xlu0 %1189
      %v1191 = vld [vmem:[%s970] sm:$0xff]
      %v1192 = vmul.f32 %v1190, %v1191
      %1193 = vst [vmem:[#allocation2] sm:$0xff] %v1192
      %1194 = vst [vmem:[#allocation2 + $0x8] sm:$0xff] %v1187
      %1195 = vrot.lane.b32.xlu0 %v1187, 127
      %v1196 = vpop.permute.xlu0 %1195
      %v1197 = vld [vmem:[%s977] sm:$0xff]
      %v1198 = vmul.f32 %v1196, %v1197
      %1199 = vst [vmem:[#allocation2 + $0x10] sm:$0xff] %v1198
      %v1200 = vld [vmem:[#allocation2] sm:$0xff]
      %v1201 = vld [vmem:[#allocation2 + $0x8] sm:$0xff]
      %v1202 = vld [vmem:[#allocation2 + $0x10] sm:$0xff]
      %v1203 = vpack.c.bf16 %v1201, %v1200
      %v1204 = vpack.c.bf16 %v1202, %v1202
      %1206 = vset.pattern.permute.xlu0 0
      %1207 = vperm.xlu0 %1206, %v886
      %v1208 = vpop.permute.xlu0 %1207
      %v1211 = vsel %vm991, %v1188, 0
      %v1214 = vsel %vm995, %v1204, 0
      %1216 = vmatpush.bf16.msra.mxu0 0
      %1217 = vmatpush.bf16.msra.mxu0 0
      %1218 = vmatpush.bf16.msra.mxu0 0
      %1219 = vmatpush.bf16.msra.mxu0 0
      %1220 = vmatpush.bf16.msra.mxu0 0
      %1221 = vmatpush.bf16.msra.mxu0 0
      %1222 = vmatpush.bf16.msra.mxu0 %v1214
      %1223 = vmatpush.bf16.msra.mxu0 %v1203
      %1224 = vmatmul.bf16.gmra.mxu0 %v1211
      %v1225 = vpop.f32.mrf.mxu0
      %v1226 = vadd.f32 %v1208, %v1225
      %v1227 = vpop.f32.mrf.mxu0
      %1228 = vdwg.mxu0
      %v1229 = vadd.f32 %v1226, %v879
      %v1230 = vmul.f32 %v1229, 0.70710707
      %s1231 = scalar_lea.vmem %s7, 32
      %v1232 = vld [vmem:[%s1231] sm:$0xff]
      %v1233 = vld [vmem:[%s1231 + $0x8] sm:$0xff]
      %v1234 = vld [vmem:[%s1231 + $0x10] sm:$0xff]
      %v1235 = vld [vmem:[%s1231 + $0x18] sm:$0xff]
      %s1236 = scalar_lea.vmem %s11, 24
      %v1237 = vld [vmem:[%s1236] sm:$0xff]
      %v1238 = vld [vmem:[%s1236 + $0x8] sm:$0xff]
      %v1239 = vld [vmem:[%s1236 + $0x10] sm:$0xff]
      %1240 = vrot.lane.b32.xlu0 %v1230, 127
      %v1241 = vpop.permute.xlu0 %1240
      %v1242 = vadd.f32 %v1230, %v1241
      %1243 = vrot.lane.b32.xlu0 %v1242, 126
      %v1244 = vpop.permute.xlu0 %1243
      %v1245 = vadd.f32 %v1242, %v1244
      %1246 = vrot.lane.b32.xlu0 %v1245, 124
      %v1247 = vpop.permute.xlu0 %1246
      %v1248 = vadd.f32 %v1245, %v1247
      %1249 = vrot.lane.b32.xlu0 %v1248, 120
      %v1250 = vpop.permute.xlu0 %1249
      %v1251 = vadd.f32 %v1248, %v1250
      %v1252 = vmul.f32 %v1251, %v860
      %1253 = vrot.lane.b32.xlu0 %v1252, 1
      %v1254 = vpop.permute.xlu0 %1253
      %v1255 = vadd.f32 %v1252, %v1254
      %1256 = vrot.lane.b32.xlu0 %v1255, 2
      %v1257 = vpop.permute.xlu0 %1256
      %v1258 = vadd.f32 %v1255, %v1257
      %1259 = vrot.lane.b32.xlu0 %v1258, 4
      %v1260 = vpop.permute.xlu0 %1259
      %v1261 = vadd.f32 %v1258, %v1260
      %1262 = vrot.lane.b32.xlu0 %v1261, 8
      %v1263 = vpop.permute.xlu0 %1262
      %v1264 = vadd.f32 %v1261, %v1263
      %v1265 = vrot.slane %v1264, 4
      %v1266 = vadd.f32 %v1264, %v1265
      %v1267 = vrot.slane %v1266, 2
      %v1268 = vadd.f32 %v1266, %v1267
      %v1269 = vrot.slane %v1268, 1
      %v1270 = vadd.f32 %v1268, %v1269
      %v1271 = vmul.f32 %v1270, 0.0078125
      %v1272 = vsub.f32 %v1230, %v1271
      %v1273 = vmul.f32 %v1272, %v1272
      %1274 = vrot.lane.b32.xlu0 %v1273, 127
      %v1275 = vpop.permute.xlu0 %1274
      %v1276 = vadd.f32 %v1273, %v1275
      %1277 = vrot.lane.b32.xlu0 %v1276, 126
      %v1278 = vpop.permute.xlu0 %1277
      %v1279 = vadd.f32 %v1276, %v1278
      %1280 = vrot.lane.b32.xlu0 %v1279, 124
      %v1281 = vpop.permute.xlu0 %1280
      %v1282 = vadd.f32 %v1279, %v1281
      %1283 = vrot.lane.b32.xlu0 %v1282, 120
      %v1284 = vpop.permute.xlu0 %1283
      %v1285 = vadd.f32 %v1282, %v1284
      %v1286 = vmul.f32 %v1285, %v860
      %1287 = vrot.lane.b32.xlu0 %v1286, 1
      %v1288 = vpop.permute.xlu0 %1287
      %v1289 = vadd.f32 %v1286, %v1288
      %1290 = vrot.lane.b32.xlu0 %v1289, 2
      %v1291 = vpop.permute.xlu0 %1290
      %v1292 = vadd.f32 %v1289, %v1291
      %1293 = vrot.lane.b32.xlu0 %v1292, 4
      %v1294 = vpop.permute.xlu0 %1293
      %v1295 = vadd.f32 %v1292, %v1294
      %1296 = vrot.lane.b32.xlu0 %v1295, 8
      %v1297 = vpop.permute.xlu0 %1296
      %v1298 = vadd.f32 %v1295, %v1297
      %v1299 = vrot.slane %v1298, 4
      %v1300 = vadd.f32 %v1298, %v1299
      %v1301 = vrot.slane %v1300, 2
      %v1302 = vadd.f32 %v1300, %v1301
      %v1303 = vrot.slane %v1302, 1
      %v1304 = vadd.f32 %v1302, %v1303
      %v1305 = vmul.f32 %v1304, 0.0078125
      %v1306 = vadd.f32 %v1305, 1e-05
      %v1307 = vrsqrt.pop %v1306
      %v1308 = vmul.f32 %v1307, %v1306
      %v1309 = vmul.f32 %v1308, %v1307
      %v1310 = vmul.f32 0.5, %v1309
      %v1311 = vsub.f32 1.5, %v1310
      %v1312 = vmul.f32 %v1307, %v1311
      %vm1313 = vweird.f32 %v1306
      %vm1314 = vweird.f32 %v1307
      %vm1315 = vmor %vm1313, %vm1314
      %v1316 = vsel %vm1315, %v1307, %v1312
      %v1317 = vmul.f32 %v1272, %v1316
      %v1318 = vmul.f32 %v1317, %v1232
      %v1319 = vadd.f32 %v1318, %v1233
      %s1320 = scalar_lea.vmem %s8, 4
      %v1321 = vld [vmem:[%s1320] sm:$0xf]
      %1322 = vrot.lane.b32.xlu0 %v1319, 1
      %v1323 = vpop.permute.xlu0 %1322
      %v1324 = vld [vmem:[%s970] sm:$0xff]
      %v1325 = vmul.f32 %v1323, %v1324
      %1326 = vst [vmem:[#allocation2] sm:$0xff] %v1325
      %1327 = vst [vmem:[#allocation2 + $0x8] sm:$0xff] %v1319
      %1328 = vrot.lane.b32.xlu0 %v1319, 127
      %v1329 = vpop.permute.xlu0 %1328
      %v1330 = vld [vmem:[%s977] sm:$0xff]
      %v1331 = vmul.f32 %v1329, %v1330
      %1332 = vst [vmem:[#allocation2 + $0x10] sm:$0xff] %v1331
      %v1333 = vld [vmem:[#allocation2] sm:$0xff]
      %v1334 = vld [vmem:[#allocation2 + $0x8] sm:$0xff]
      %v1335 = vld [vmem:[#allocation2 + $0x10] sm:$0xff]
      %v1336 = vpack.c.bf16 %v1334, %v1333
      %v1337 = vpack.c.bf16 %v1335, %v1335
      %1339 = vset.pattern.permute.xlu0 0
      %1340 = vperm.xlu0 %1339, %v1237
      %v1341 = vpop.permute.xlu0 %1340
      %v1344 = vsel %vm991, %v1321, 0
      %v1347 = vsel %vm995, %v1337, 0
      %1349 = vmatpush.bf16.msra.mxu0 0
      %1350 = vmatpush.bf16.msra.mxu0 0
      %1351 = vmatpush.bf16.msra.mxu0 0
      %1352 = vmatpush.bf16.msra.mxu0 0
      %1353 = vmatpush.bf16.msra.mxu0 0
      %1354 = vmatpush.bf16.msra.mxu0 0
      %1355 = vmatpush.bf16.msra.mxu0 %v1347
      %1356 = vmatpush.bf16.msra.mxu0 %v1336
      %1357 = vmatmul.bf16.gmra.mxu0 %v1344
      %v1358 = vpop.f32.mrf.mxu0
      %v1359 = vadd.f32 %v1341, %v1358
      %v1360 = vpop.f32.mrf.mxu0
      %1361 = vdwg.mxu0
      %v1362 = vxor.u32 %v1359, 2147483648
      %v1363 = vmul.f32 %v1362, 1.442695
      %v1364 = vpow.pop %v1363
      %v1365 = vadd.f32 %v1364, 1.0
      %v1366 = vrcp.pop %v1365
      %v1367 = vmul.f32 %v1365, %v1366
      %v1368 = vsub.f32 1.0, %v1367
      %v1369 = vmul.f32 %v1366, %v1368
      %v1370 = vadd.f32 %v1366, %v1369
      %vm1371 = vweird.f32 %v1365
      %vm1372 = vweird.f32 %v1366
      %vm1373 = vmor %vm1371, %vm1372
      %v1374 = vsel %vm1373, %v1366, %v1370
      %v1375 = vand.u32 2147483647, %v1365
      %vm1376 = vcmp.eq.f32.partialorder %v1375, 8.507059e+37
      %v1377 = vand.u32 %v1365, 2147483648
      %v1378 = vor.u32 1.1754944e-38, %v1377
      %v1379 = vsel %vm1376, %v1378, %v1374
      %v1380 = vmul.f32 1.0, %v1379
      %v1381 = vmul.f32 %v1359, %v1380
      %1382 = vrot.lane.b32.xlu0 %v1381, 127
      %v1383 = vpop.permute.xlu0 %1382
      %v1384 = vadd.f32 %v1381, %v1383
      %1385 = vrot.lane.b32.xlu0 %v1384, 126
      %v1386 = vpop.permute.xlu0 %1385
      %v1387 = vadd.f32 %v1384, %v1386
      %1388 = vrot.lane.b32.xlu0 %v1387, 124
      %v1389 = vpop.permute.xlu0 %1388
      %v1390 = vadd.f32 %v1387, %v1389
      %1391 = vrot.lane.b32.xlu0 %v1390, 120
      %v1392 = vpop.permute.xlu0 %1391
      %v1393 = vadd.f32 %v1390, %v1392
      %v1394 = vmul.f32 %v1393, %v860
      %1395 = vrot.lane.b32.xlu0 %v1394, 1
      %v1396 = vpop.permute.xlu0 %1395
      %v1397 = vadd.f32 %v1394, %v1396
      %1398 = vrot.lane.b32.xlu0 %v1397, 2
      %v1399 = vpop.permute.xlu0 %1398
      %v1400 = vadd.f32 %v1397, %v1399
      %1401 = vrot.lane.b32.xlu0 %v1400, 4
      %v1402 = vpop.permute.xlu0 %1401
      %v1403 = vadd.f32 %v1400, %v1402
      %1404 = vrot.lane.b32.xlu0 %v1403, 8
      %v1405 = vpop.permute.xlu0 %1404
      %v1406 = vadd.f32 %v1403, %v1405
      %v1407 = vrot.slane %v1406, 4
      %v1408 = vadd.f32 %v1406, %v1407
      %v1409 = vrot.slane %v1408, 2
      %v1410 = vadd.f32 %v1408, %v1409
      %v1411 = vrot.slane %v1410, 1
      %v1412 = vadd.f32 %v1410, %v1411
      %v1413 = vmul.f32 %v1412, 0.0078125
      %v1414 = vsub.f32 %v1381, %v1413
      %v1415 = vmul.f32 %v1414, %v1414
      %1416 = vrot.lane.b32.xlu0 %v1415, 127
      %v1417 = vpop.permute.xlu0 %1416
      %v1418 = vadd.f32 %v1415, %v1417
      %1419 = vrot.lane.b32.xlu0 %v1418, 126
      %v1420 = vpop.permute.xlu0 %1419
      %v1421 = vadd.f32 %v1418, %v1420
      %1422 = vrot.lane.b32.xlu0 %v1421, 124
      %v1423 = vpop.permute.xlu0 %1422
      %v1424 = vadd.f32 %v1421, %v1423
      %1425 = vrot.lane.b32.xlu0 %v1424, 120
      %v1426 = vpop.permute.xlu0 %1425
      %v1427 = vadd.f32 %v1424, %v1426
      %v1428 = vmul.f32 %v1427, %v860
      %1429 = vrot.lane.b32.xlu0 %v1428, 1
      %v1430 = vpop.permute.xlu0 %1429
      %v1431 = vadd.f32 %v1428, %v1430
      %1432 = vrot.lane.b32.xlu0 %v1431, 2
      %v1433 = vpop.permute.xlu0 %1432
      %v1434 = vadd.f32 %v1431, %v1433
      %1435 = vrot.lane.b32.xlu0 %v1434, 4
      %v1436 = vpop.permute.xlu0 %1435
      %v1437 = vadd.f32 %v1434, %v1436
      %1438 = vrot.lane.b32.xlu0 %v1437, 8
      %v1439 = vpop.permute.xlu0 %1438
      %v1440 = vadd.f32 %v1437, %v1439
      %v1441 = vrot.slane %v1440, 4
      %v1442 = vadd.f32 %v1440, %v1441
      %v1443 = vrot.slane %v1442, 2
      %v1444 = vadd.f32 %v1442, %v1443
      %v1445 = vrot.slane %v1444, 1
      %v1446 = vadd.f32 %v1444, %v1445
      %v1447 = vmul.f32 %v1446, 0.0078125
      %v1448 = vadd.f32 %v1447, 1e-05
      %v1449 = vrsqrt.pop %v1448
      %v1450 = vmul.f32 %v1449, %v1448
      %v1451 = vmul.f32 %v1450, %v1449
      %v1452 = vmul.f32 0.5, %v1451
      %v1453 = vsub.f32 1.5, %v1452
      %v1454 = vmul.f32 %v1449, %v1453
      %vm1455 = vweird.f32 %v1448
      %vm1456 = vweird.f32 %v1449
      %vm1457 = vmor %vm1455, %vm1456
      %v1458 = vsel %vm1457, %v1449, %v1454
      %v1459 = vmul.f32 %v1414, %v1458
      %v1460 = vmul.f32 %v1459, %v1234
      %v1461 = vadd.f32 %v1460, %v1235
      %s1462 = scalar_lea.vmem %s9, 4
      %v1463 = vld [vmem:[%s1462] sm:$0xf]
      %1464 = vrot.lane.b32.xlu0 %v1461, 2
      %v1465 = vpop.permute.xlu0 %1464
      %v1466 = vld [vmem:[%s3] sm:$0xff]
      %v1467 = vmul.f32 %v1465, %v1466
      %1468 = vst [vmem:[#allocation2] sm:$0xff] %v1467
      %1469 = vrot.lane.b32.xlu0 %v1461, 1
      %v1470 = vpop.permute.xlu0 %1469
      %v1471 = vld [vmem:[%s970] sm:$0xff]
      %v1472 = vmul.f32 %v1470, %v1471
      %1473 = vst [vmem:[#allocation2 + $0x8] sm:$0xff] %v1472
      %1474 = vst [vmem:[#allocation2 + $0x10] sm:$0xff] %v1461
      %1475 = vrot.lane.b32.xlu0 %v1461, 127
      %v1476 = vpop.permute.xlu0 %1475
      %v1477 = vld [vmem:[%s977] sm:$0xff]
      %v1478 = vmul.f32 %v1476, %v1477
      %1479 = vst [vmem:[#allocation2 + $0x18] sm:$0xff] %v1478
      %1480 = vrot.lane.b32.xlu0 %v1461, 126
      %v1481 = vpop.permute.xlu0 %1480
      %v1482 = vld [vmem:[%s1131] sm:$0xff]
      %v1483 = vmul.f32 %v1481, %v1482
      %1484 = vst [vmem:[#allocation2 + $0x20] sm:$0xff] %v1483
      %v1485 = vld [vmem:[#allocation2] sm:$0xff]
      %v1486 = vld [vmem:[#allocation2 + $0x8] sm:$0xff]
      %v1487 = vld [vmem:[#allocation2 + $0x10] sm:$0xff]
      %v1488 = vld [vmem:[#allocation2 + $0x18] sm:$0xff]
      %v1489 = vld [vmem:[#allocation2 + $0x20] sm:$0xff]
      %v1490 = vpack.c.bf16 %v1486, %v1485
      %v1491 = vpack.c.bf16 %v1488, %v1487
      %v1492 = vpack.c.bf16 %v1489, %v1489
      %1494 = vset.pattern.permute.xlu0 0
      %1495 = vperm.xlu0 %1494, %v1238
      %v1496 = vpop.permute.xlu0 %1495
      %v1499 = vsel %vm1148, %v1463, 0
      %v1502 = vsel %vm995, %v1492, 0
      %1504 = vmatpush.bf16.msra.mxu0 0
      %1505 = vmatpush.bf16.msra.mxu0 0
      %1506 = vmatpush.bf16.msra.mxu0 0
      %1507 = vmatpush.bf16.msra.mxu0 0
      %1508 = vmatpush.bf16.msra.mxu0 0
      %1509 = vmatpush.bf16.msra.mxu0 %v1502
      %1510 = vmatpush.bf16.msra.mxu0 %v1491
      %1511 = vmatpush.bf16.msra.mxu0 %v1490
      %1512 = vmatmul.bf16.gmra.mxu0 %v1499
      %v1513 = vpop.f32.mrf.mxu0
      %v1514 = vadd.f32 %v1496, %v1513
      %v1515 = vpop.f32.mrf.mxu0
      %1516 = vdwg.mxu0
      %v1517 = vxor.u32 %v1514, 2147483648
      %v1518 = vmul.f32 %v1517, 1.442695
      %v1519 = vpow.pop %v1518
      %v1520 = vadd.f32 %v1519, 1.0
      %v1521 = vrcp.pop %v1520
      %v1522 = vmul.f32 %v1520, %v1521
      %v1523 = vsub.f32 1.0, %v1522
      %v1524 = vmul.f32 %v1521, %v1523
      %v1525 = vadd.f32 %v1521, %v1524
      %vm1526 = vweird.f32 %v1520
      %vm1527 = vweird.f32 %v1521
      %vm1528 = vmor %vm1526, %vm1527
      %v1529 = vsel %vm1528, %v1521, %v1525
      %v1530 = vand.u32 2147483647, %v1520
      %vm1531 = vcmp.eq.f32.partialorder %v1530, 8.507059e+37
      %v1532 = vand.u32 %v1520, 2147483648
      %v1533 = vor.u32 1.1754944e-38, %v1532
      %v1534 = vsel %vm1531, %v1533, %v1529
      %v1535 = vmul.f32 1.0, %v1534
      %v1536 = vmul.f32 %v1514, %v1535
      %s1537 = scalar_lea.vmem %s10, 4
      %v1538 = vld [vmem:[%s1537] sm:$0xf]
      %1539 = vrot.lane.b32.xlu0 %v1536, 1
      %v1540 = vpop.permute.xlu0 %1539
      %v1541 = vld [vmem:[%s970] sm:$0xff]
      %v1542 = vmul.f32 %v1540, %v1541
      %1543 = vst [vmem:[#allocation2] sm:$0xff] %v1542
      %1544 = vst [vmem:[#allocation2 + $0x8] sm:$0xff] %v1536
      %1545 = vrot.lane.b32.xlu0 %v1536, 127
      %v1546 = vpop.permute.xlu0 %1545
      %v1547 = vld [vmem:[%s977] sm:$0xff]
      %v1548 = vmul.f32 %v1546, %v1547
      %1549 = vst [vmem:[#allocation2 + $0x10] sm:$0xff] %v1548
      %v1550 = vld [vmem:[#allocation2] sm:$0xff]
      %v1551 = vld [vmem:[#allocation2 + $0x8] sm:$0xff]
      %v1552 = vld [vmem:[#allocation2 + $0x10] sm:$0xff]
      %v1553 = vpack.c.bf16 %v1551, %v1550
      %v1554 = vpack.c.bf16 %v1552, %v1552
      %1556 = vset.pattern.permute.xlu0 0
      %1557 = vperm.xlu0 %1556, %v1239
      %v1558 = vpop.permute.xlu0 %1557
      %v1561 = vsel %vm991, %v1538, 0
      %v1564 = vsel %vm995, %v1554, 0
      %1566 = vmatpush.bf16.msra.mxu0 0
      %1567 = vmatpush.bf16.msra.mxu0 0
      %1568 = vmatpush.bf16.msra.mxu0 0
      %1569 = vmatpush.bf16.msra.mxu0 0
      %1570 = vmatpush.bf16.msra.mxu0 0
      %1571 = vmatpush.bf16.msra.mxu0 0
      %1572 = vmatpush.bf16.msra.mxu0 %v1564
      %1573 = vmatpush.bf16.msra.mxu0 %v1553
      %1574 = vmatmul.bf16.gmra.mxu0 %v1561
      %v1575 = vpop.f32.mrf.mxu0
      %v1576 = vadd.f32 %v1558, %v1575
      %v1577 = vpop.f32.mrf.mxu0
      %1578 = vdwg.mxu0
      %v1579 = vadd.f32 %v1576, %v1230
      %v1580 = vmul.f32 %v1579, 0.70710707
      %s1581 = scalar_lea.vmem %s7, 64
      %v1582 = vld [vmem:[%s1581] sm:$0xff]
      %v1583 = vld [vmem:[%s1581 + $0x8] sm:$0xff]
      %v1584 = vld [vmem:[%s1581 + $0x10] sm:$0xff]
      %v1585 = vld [vmem:[%s1581 + $0x18] sm:$0xff]
      %s1586 = scalar_lea.vmem %s11, 48
      %v1587 = vld [vmem:[%s1586] sm:$0xff]
      %v1588 = vld [vmem:[%s1586 + $0x8] sm:$0xff]
      %v1589 = vld [vmem:[%s1586 + $0x10] sm:$0xff]
      %1590 = vrot.lane.b32.xlu0 %v1580, 127
      %v1591 = vpop.permute.xlu0 %1590
      %v1592 = vadd.f32 %v1580, %v1591
      %1593 = vrot.lane.b32.xlu0 %v1592, 126
      %v1594 = vpop.permute.xlu0 %1593
      %v1595 = vadd.f32 %v1592, %v1594
      %1596 = vrot.lane.b32.xlu0 %v1595, 124
      %v1597 = vpop.permute.xlu0 %1596
      %v1598 = vadd.f32 %v1595, %v1597
      %1599 = vrot.lane.b32.xlu0 %v1598, 120
      %v1600 = vpop.permute.xlu0 %1599
      %v1601 = vadd.f32 %v1598, %v1600
      %v1602 = vmul.f32 %v1601, %v860
      %1603 = vrot.lane.b32.xlu0 %v1602, 1
      %v1604 = vpop.permute.xlu0 %1603
      %v1605 = vadd.f32 %v1602, %v1604
      %1606 = vrot.lane.b32.xlu0 %v1605, 2
      %v1607 = vpop.permute.xlu0 %1606
      %v1608 = vadd.f32 %v1605, %v1607
      %1609 = vrot.lane.b32.xlu0 %v1608, 4
      %v1610 = vpop.permute.xlu0 %1609
      %v1611 = vadd.f32 %v1608, %v1610
      %1612 = vrot.lane.b32.xlu0 %v1611, 8
      %v1613 = vpop.permute.xlu0 %1612
      %v1614 = vadd.f32 %v1611, %v1613
      %v1615 = vrot.slane %v1614, 4
      %v1616 = vadd.f32 %v1614, %v1615
      %v1617 = vrot.slane %v1616, 2
      %v1618 = vadd.f32 %v1616, %v1617
      %v1619 = vrot.slane %v1618, 1
      %v1620 = vadd.f32 %v1618, %v1619
      %v1621 = vmul.f32 %v1620, 0.0078125
      %v1622 = vsub.f32 %v1580, %v1621
      %v1623 = vmul.f32 %v1622, %v1622
      %1624 = vrot.lane.b32.xlu0 %v1623, 127
      %v1625 = vpop.permute.xlu0 %1624
      %v1626 = vadd.f32 %v1623, %v1625
      %1627 = vrot.lane.b32.xlu0 %v1626, 126
      %v1628 = vpop.permute.xlu0 %1627
      %v1629 = vadd.f32 %v1626, %v1628
      %1630 = vrot.lane.b32.xlu0 %v1629, 124
      %v1631 = vpop.permute.xlu0 %1630
      %v1632 = vadd.f32 %v1629, %v1631
      %1633 = vrot.lane.b32.xlu0 %v1632, 120
      %v1634 = vpop.permute.xlu0 %1633
      %v1635 = vadd.f32 %v1632, %v1634
      %v1636 = vmul.f32 %v1635, %v860
      %1637 = vrot.lane.b32.xlu0 %v1636, 1
      %v1638 = vpop.permute.xlu0 %1637
      %v1639 = vadd.f32 %v1636, %v1638
      %1640 = vrot.lane.b32.xlu0 %v1639, 2
      %v1641 = vpop.permute.xlu0 %1640
      %v1642 = vadd.f32 %v1639, %v1641
      %1643 = vrot.lane.b32.xlu0 %v1642, 4
      %v1644 = vpop.permute.xlu0 %1643
      %v1645 = vadd.f32 %v1642, %v1644
      %1646 = vrot.lane.b32.xlu0 %v1645, 8
      %v1647 = vpop.permute.xlu0 %1646
      %v1648 = vadd.f32 %v1645, %v1647
      %v1649 = vrot.slane %v1648, 4
      %v1650 = vadd.f32 %v1648, %v1649
      %v1651 = vrot.slane %v1650, 2
      %v1652 = vadd.f32 %v1650, %v1651
      %v1653 = vrot.slane %v1652, 1
      %v1654 = vadd.f32 %v1652, %v1653
      %v1655 = vmul.f32 %v1654, 0.0078125
      %v1656 = vadd.f32 %v1655, 1e-05
      %v1657 = vrsqrt.pop %v1656
      %v1658 = vmul.f32 %v1657, %v1656
      %v1659 = vmul.f32 %v1658, %v1657
      %v1660 = vmul.f32 0.5, %v1659
      %v1661 = vsub.f32 1.5, %v1660
      %v1662 = vmul.f32 %v1657, %v1661
      %vm1663 = vweird.f32 %v1656
      %vm1664 = vweird.f32 %v1657
      %vm1665 = vmor %vm1663, %vm1664
      %v1666 = vsel %vm1665, %v1657, %v1662
      %v1667 = vmul.f32 %v1622, %v1666
      %v1668 = vmul.f32 %v1667, %v1582
      %v1669 = vadd.f32 %v1668, %v1583
      %s1670 = scalar_lea.vmem %s8, 8
      %v1671 = vld [vmem:[%s1670] sm:$0xf]
      %1672 = vrot.lane.b32.xlu0 %v1669, 1
      %v1673 = vpop.permute.xlu0 %1672
      %v1674 = vld [vmem:[%s970] sm:$0xff]
      %v1675 = vmul.f32 %v1673, %v1674
      %1676 = vst [vmem:[#allocation2] sm:$0xff] %v1675
      %1677 = vst [vmem:[#allocation2 + $0x8] sm:$0xff] %v1669
      %1678 = vrot.lane.b32.xlu0 %v1669, 127
      %v1679 = vpop.permute.xlu0 %1678
      %v1680 = vld [vmem:[%s977] sm:$0xff]
      %v1681 = vmul.f32 %v1679, %v1680
      %1682 = vst [vmem:[#allocation2 + $0x10] sm:$0xff] %v1681
      %v1683 = vld [vmem:[#allocation2] sm:$0xff]
      %v1684 = vld [vmem:[#allocation2 + $0x8] sm:$0xff]
      %v1685 = vld [vmem:[#allocation2 + $0x10] sm:$0xff]
      %v1686 = vpack.c.bf16 %v1684, %v1683
      %v1687 = vpack.c.bf16 %v1685, %v1685
      %1689 = vset.pattern.permute.xlu0 0
      %1690 = vperm.xlu0 %1689, %v1587
      %v1691 = vpop.permute.xlu0 %1690
      %v1694 = vsel %vm991, %v1671, 0
      %v1697 = vsel %vm995, %v1687, 0
      %1699 = vmatpush.bf16.msra.mxu0 0
      %1700 = vmatpush.bf16.msra.mxu0 0
      %1701 = vmatpush.bf16.msra.mxu0 0
      %1702 = vmatpush.bf16.msra.mxu0 0
      %1703 = vmatpush.bf16.msra.mxu0 0
      %1704 = vmatpush.bf16.msra.mxu0 0
      %1705 = vmatpush.bf16.msra.mxu0 %v1697
      %1706 = vmatpush.bf16.msra.mxu0 %v1686
      %1707 = vmatmul.bf16.gmra.mxu0 %v1694
      %v1708 = vpop.f32.mrf.mxu0
      %v1709 = vadd.f32 %v1691, %v1708
      %v1710 = vpop.f32.mrf.mxu0
      %1711 = vdwg.mxu0
      %v1712 = vxor.u32 %v1709, 2147483648
      %v1713 = vmul.f32 %v1712, 1.442695
      %v1714 = vpow.pop %v1713
      %v1715 = vadd.f32 %v1714, 1.0
      %v1716 = vrcp.pop %v1715
      %v1717 = vmul.f32 %v1715, %v1716
      %v1718 = vsub.f32 1.0, %v1717
      %v1719 = vmul.f32 %v1716, %v1718
      %v1720 = vadd.f32 %v1716, %v1719
      %vm1721 = vweird.f32 %v1715
      %vm1722 = vweird.f32 %v1716
      %vm1723 = vmor %vm1721, %vm1722
      %v1724 = vsel %vm1723, %v1716, %v1720
      %v1725 = vand.u32 2147483647, %v1715
      %vm1726 = vcmp.eq.f32.partialorder %v1725, 8.507059e+37
      %v1727 = vand.u32 %v1715, 2147483648
      %v1728 = vor.u32 1.1754944e-38, %v1727
      %v1729 = vsel %vm1726, %v1728, %v1724
      %v1730 = vmul.f32 1.0, %v1729
      %v1731 = vmul.f32 %v1709, %v1730
      %1732 = vrot.lane.b32.xlu0 %v1731, 127
      %v1733 = vpop.permute.xlu0 %1732
      %v1734 = vadd.f32 %v1731, %v1733
      %1735 = vrot.lane.b32.xlu0 %v1734, 126
      %v1736 = vpop.permute.xlu0 %1735
      %v1737 = vadd.f32 %v1734, %v1736
      %1738 = vrot.lane.b32.xlu0 %v1737, 124
      %v1739 = vpop.permute.xlu0 %1738
      %v1740 = vadd.f32 %v1737, %v1739
      %1741 = vrot.lane.b32.xlu0 %v1740, 120
      %v1742 = vpop.permute.xlu0 %1741
      %v1743 = vadd.f32 %v1740, %v1742
      %v1744 = vmul.f32 %v1743, %v860
      %1745 = vrot.lane.b32.xlu0 %v1744, 1
      %v1746 = vpop.permute.xlu0 %1745
      %v1747 = vadd.f32 %v1744, %v1746
      %1748 = vrot.lane.b32.xlu0 %v1747, 2
      %v1749 = vpop.permute.xlu0 %1748
      %v1750 = vadd.f32 %v1747, %v1749
      %1751 = vrot.lane.b32.xlu0 %v1750, 4
      %v1752 = vpop.permute.xlu0 %1751
      %v1753 = vadd.f32 %v1750, %v1752
      %1754 = vrot.lane.b32.xlu0 %v1753, 8
      %v1755 = vpop.permute.xlu0 %1754
      %v1756 = vadd.f32 %v1753, %v1755
      %v1757 = vrot.slane %v1756, 4
      %v1758 = vadd.f32 %v1756, %v1757
      %v1759 = vrot.slane %v1758, 2
      %v1760 = vadd.f32 %v1758, %v1759
      %v1761 = vrot.slane %v1760, 1
      %v1762 = vadd.f32 %v1760, %v1761
      %v1763 = vmul.f32 %v1762, 0.0078125
      %v1764 = vsub.f32 %v1731, %v1763
      %v1765 = vmul.f32 %v1764, %v1764
      %1766 = vrot.lane.b32.xlu0 %v1765, 127
      %v1767 = vpop.permute.xlu0 %1766
      %v1768 = vadd.f32 %v1765, %v1767
      %1769 = vrot.lane.b32.xlu0 %v1768, 126
      %v1770 = vpop.permute.xlu0 %1769
      %v1771 = vadd.f32 %v1768, %v1770
      %1772 = vrot.lane.b32.xlu0 %v1771, 124
      %v1773 = vpop.permute.xlu0 %1772
      %v1774 = vadd.f32 %v1771, %v1773
      %1775 = vrot.lane.b32.xlu0 %v1774, 120
      %v1776 = vpop.permute.xlu0 %1775
      %v1777 = vadd.f32 %v1774, %v1776
      %v1778 = vmul.f32 %v1777, %v860
      %1779 = vrot.lane.b32.xlu0 %v1778, 1
      %v1780 = vpop.permute.xlu0 %1779
      %v1781 = vadd.f32 %v1778, %v1780
      %1782 = vrot.lane.b32.xlu0 %v1781, 2
      %v1783 = vpop.permute.xlu0 %1782
      %v1784 = vadd.f32 %v1781, %v1783
      %1785 = vrot.lane.b32.xlu0 %v1784, 4
      %v1786 = vpop.permute.xlu0 %1785
      %v1787 = vadd.f32 %v1784, %v1786
      %1788 = vrot.lane.b32.xlu0 %v1787, 8
      %v1789 = vpop.permute.xlu0 %1788
      %v1790 = vadd.f32 %v1787, %v1789
      %v1791 = vrot.slane %v1790, 4
      %v1792 = vadd.f32 %v1790, %v1791
      %v1793 = vrot.slane %v1792, 2
      %v1794 = vadd.f32 %v1792, %v1793
      %v1795 = vrot.slane %v1794, 1
      %v1796 = vadd.f32 %v1794, %v1795
      %v1797 = vmul.f32 %v1796, 0.0078125
      %v1798 = vadd.f32 %v1797, 1e-05
      %v1799 = vrsqrt.pop %v1798
      %v1800 = vmul.f32 %v1799, %v1798
      %v1801 = vmul.f32 %v1800, %v1799
      %v1802 = vmul.f32 0.5, %v1801
      %v1803 = vsub.f32 1.5, %v1802
      %v1804 = vmul.f32 %v1799, %v1803
      %vm1805 = vweird.f32 %v1798
      %vm1806 = vweird.f32 %v1799
      %vm1807 = vmor %vm1805, %vm1806
      %v1808 = vsel %vm1807, %v1799, %v1804
      %v1809 = vmul.f32 %v1764, %v1808
      %v1810 = vmul.f32 %v1809, %v1584
      %v1811 = vadd.f32 %v1810, %v1585
      %s1812 = scalar_lea.vmem %s9, 8
      %v1813 = vld [vmem:[%s1812] sm:$0xf]
      %1814 = vrot.lane.b32.xlu0 %v1811, 2
      %v1815 = vpop.permute.xlu0 %1814
      %v1816 = vld [vmem:[%s3] sm:$0xff]
      %v1817 = vmul.f32 %v1815, %v1816
      %1818 = vst [vmem:[#allocation2] sm:$0xff] %v1817
      %1819 = vrot.lane.b32.xlu0 %v1811, 1
      %v1820 = vpop.permute.xlu0 %1819
      %v1821 = vld [vmem:[%s970] sm:$0xff]
      %v1822 = vmul.f32 %v1820, %v1821
      %1823 = vst [vmem:[#allocation2 + $0x8] sm:$0xff] %v1822
      %1824 = vst [vmem:[#allocation2 + $0x10] sm:$0xff] %v1811
      %1825 = vrot.lane.b32.xlu0 %v1811, 127
      %v1826 = vpop.permute.xlu0 %1825
      %v1827 = vld [vmem:[%s977] sm:$0xff]
      %v1828 = vmul.f32 %v1826, %v1827
      %1829 = vst [vmem:[#allocation2 + $0x18] sm:$0xff] %v1828
      %1830 = vrot.lane.b32.xlu0 %v1811, 126
      %v1831 = vpop.permute.xlu0 %1830
      %v1832 = vld [vmem:[%s1131] sm:$0xff]
      %v1833 = vmul.f32 %v1831, %v1832
      %1834 = vst [vmem:[#allocation2 + $0x20] sm:$0xff] %v1833
      %v1835 = vld [vmem:[#allocation2] sm:$0xff]
      %v1836 = vld [vmem:[#allocation2 + $0x8] sm:$0xff]
      %v1837 = vld [vmem:[#allocation2 + $0x10] sm:$0xff]
      %v1838 = vld [vmem:[#allocation2 + $0x18] sm:$0xff]
      %v1839 = vld [vmem:[#allocation2 + $0x20] sm:$0xff]
      %v1840 = vpack.c.bf16 %v1836, %v1835
      %v1841 = vpack.c.bf16 %v1838, %v1837
      %v1842 = vpack.c.bf16 %v1839, %v1839
      %1844 = vset.pattern.permute.xlu0 0
      %1845 = vperm.xlu0 %1844, %v1588
      %v1846 = vpop.permute.xlu0 %1845
      %v1849 = vsel %vm1148, %v1813, 0
      %v1852 = vsel %vm995, %v1842, 0
      %1854 = vmatpush.bf16.msra.mxu0 0
      %1855 = vmatpush.bf16.msra.mxu0 0
      %1856 = vmatpush.bf16.msra.mxu0 0
      %1857 = vmatpush.bf16.msra.mxu0 0
      %1858 = vmatpush.bf16.msra.mxu0 0
      %1859 = vmatpush.bf16.msra.mxu0 %v1852
      %1860 = vmatpush.bf16.msra.mxu0 %v1841
      %1861 = vmatpush.bf16.msra.mxu0 %v1840
      %1862 = vmatmul.bf16.gmra.mxu0 %v1849
      %v1863 = vpop.f32.mrf.mxu0
      %v1864 = vadd.f32 %v1846, %v1863
      %v1865 = vpop.f32.mrf.mxu0
      %1866 = vdwg.mxu0
      %v1867 = vxor.u32 %v1864, 2147483648
      %v1868 = vmul.f32 %v1867, 1.442695
      %v1869 = vpow.pop %v1868
      %v1870 = vadd.f32 %v1869, 1.0
      %v1871 = vrcp.pop %v1870
      %v1872 = vmul.f32 %v1870, %v1871
      %v1873 = vsub.f32 1.0, %v1872
      %v1874 = vmul.f32 %v1871, %v1873
      %v1875 = vadd.f32 %v1871, %v1874
      %vm1876 = vweird.f32 %v1870
      %vm1877 = vweird.f32 %v1871
      %vm1878 = vmor %vm1876, %vm1877
      %v1879 = vsel %vm1878, %v1871, %v1875
      %v1880 = vand.u32 2147483647, %v1870
      %vm1881 = vcmp.eq.f32.partialorder %v1880, 8.507059e+37
      %v1882 = vand.u32 %v1870, 2147483648
      %v1883 = vor.u32 1.1754944e-38, %v1882
      %v1884 = vsel %vm1881, %v1883, %v1879
      %v1885 = vmul.f32 1.0, %v1884
      %v1886 = vmul.f32 %v1864, %v1885
      %s1887 = scalar_lea.vmem %s10, 8
      %v1888 = vld [vmem:[%s1887] sm:$0xf]
      %1889 = vrot.lane.b32.xlu0 %v1886, 1
      %v1890 = vpop.permute.xlu0 %1889
      %v1891 = vld [vmem:[%s970] sm:$0xff]
      %v1892 = vmul.f32 %v1890, %v1891
      %1893 = vst [vmem:[#allocation2] sm:$0xff] %v1892
      %1894 = vst [vmem:[#allocation2 + $0x8] sm:$0xff] %v1886
      %1895 = vrot.lane.b32.xlu0 %v1886, 127
      %v1896 = vpop.permute.xlu0 %1895
      %v1897 = vld [vmem:[%s977] sm:$0xff]
      %v1898 = vmul.f32 %v1896, %v1897
      %1899 = vst [vmem:[#allocation2 + $0x10] sm:$0xff] %v1898
      %v1900 = vld [vmem:[#allocation2] sm:$0xff]
      %v1901 = vld [vmem:[#allocation2 + $0x8] sm:$0xff]
      %v1902 = vld [vmem:[#allocation2 + $0x10] sm:$0xff]
      %v1903 = vpack.c.bf16 %v1901, %v1900
      %v1904 = vpack.c.bf16 %v1902, %v1902
      %1906 = vset.pattern.permute.xlu0 0
      %1907 = vperm.xlu0 %1906, %v1589
      %v1908 = vpop.permute.xlu0 %1907
      %v1911 = vsel %vm991, %v1888, 0
      %v1914 = vsel %vm995, %v1904, 0
      %1916 = vmatpush.bf16.msra.mxu0 0
      %1917 = vmatpush.bf16.msra.mxu0 0
      %1918 = vmatpush.bf16.msra.mxu0 0
      %1919 = vmatpush.bf16.msra.mxu0 0
      %1920 = vmatpush.bf16.msra.mxu0 0
      %1921 = vmatpush.bf16.msra.mxu0 0
      %1922 = vmatpush.bf16.msra.mxu0 %v1914
      %1923 = vmatpush.bf16.msra.mxu0 %v1903
      %1924 = vmatmul.bf16.gmra.mxu0 %v1911
      %v1925 = vpop.f32.mrf.mxu0
      %v1926 = vadd.f32 %v1908, %v1925
      %v1927 = vpop.f32.mrf.mxu0
      %1928 = vdwg.mxu0
      %v1929 = vadd.f32 %v1926, %v1580
      %v1930 = vmul.f32 %v1929, 0.70710707
      %v1931 = vld [vmem:[%s13] sm:$0xf]
      %v1932 = vld [vmem:[%s12] sm:$0xff]
      %s1933 = scalar_lea.vmem %s12, 8
      %v1934 = vld [vmem:[%s1933] sm:$0xff]
      %v1935 = vrot.slane %v1930, 4
      %v1936 = vadd.f32 %v1930, %v1935
      %v1937 = vrot.slane %v1936, 2
      %v1938 = vadd.f32 %v1936, %v1937
      %v1939 = vrot.slane %v1938, 1
      %v1940 = vadd.f32 %v1938, %v1939
      %v1941 = vmul.f32 %v1940, 0.125
      %v1942 = vsub.f32 %v1930, %v1941
      %v1943 = vmul.f32 %v1942, %v1942
      %v1944 = vrot.slane %v1943, 4
      %v1945 = vadd.f32 %v1943, %v1944
      %v1946 = vrot.slane %v1945, 2
      %v1947 = vadd.f32 %v1945, %v1946
      %v1948 = vrot.slane %v1947, 1
      %v1949 = vadd.f32 %v1947, %v1948
      %v1950 = vmul.f32 %v1949, 0.125
      %v1951 = vadd.f32 %v1950, 1e-05
      %v1952 = vrsqrt.pop %v1951
      %v1953 = vmul.f32 %v1952, %v1951
      %v1954 = vmul.f32 %v1953, %v1952
      %v1955 = vmul.f32 0.5, %v1954
      %v1956 = vsub.f32 1.5, %v1955
      %v1957 = vmul.f32 %v1952, %v1956
      %vm1958 = vweird.f32 %v1951
      %vm1959 = vweird.f32 %v1952
      %vm1960 = vmor %vm1958, %vm1959
      %v1961 = vsel %vm1960, %v1952, %v1957
      %v1962 = vmul.f32 %v1942, %v1961
      %1964 = vset.pattern.permute.xlu0 0
      %1965 = vperm.xlu0 %1964, %v1932
      %v1966 = vpop.permute.xlu0 %1965
      %v1968 = vmul.f32 %v1962, %v1966
      %1970 = vset.pattern.permute.xlu0 0
      %1971 = vperm.xlu0 %1970, %v1934
      %v1972 = vpop.permute.xlu0 %1971
      %v1974 = vadd.f32 %v1968, %v1972
      %v1975 = vld [vmem:[%s14] sm:$0xf]
      %v1976 = vld [vmem:[%s14 + $0x4] sm:$0xf]
      %v1977 = vld [vmem:[%s14 + $0x8] sm:$0xf]
      %v1978 = vpack.c.bf16 %v1974, %v1974
      %v1979 = vld [vmem:[%s15] sm:$0xff]
      %v1980 = vld [vmem:[%s15 + $0x8] sm:$0xff]
      %v1981 = vld [vmem:[%s15 + $0x10] sm:$0xff]
      %1983 = vset.pattern.permute.xlu0 0
      %1984 = vperm.xlu0 %1983, %v1979
      %v1985 = vpop.permute.xlu0 %1984
      %1988 = vset.pattern.permute.xlu0 0
      %1989 = vperm.xlu0 %1988, %v1980
      %v1990 = vpop.permute.xlu0 %1989
      %1993 = vset.pattern.permute.xlu0 0
      %1994 = vperm.xlu0 %1993, %v1981
      %v1995 = vpop.permute.xlu0 %1994
      %v2000 = vunpack.c.l.b16 %v1975
      %v2001 = vunpack.c.l.b16 %v1976
      %v2002 = vunpack.c.l.b16 %v1977
      %v2003 = vpack.c.b16 %v2001, %v2000
      %v2004 = vpack.c.b16 %v2002, %v2002
      %vm2005 = vcmask 64512
      %v2007 = vsel %vm2005, %v2003, 0
      %v2010 = vsel %vm2005, %v2004, 0
      %v2013 = vsel %vm995, %v1978, 0
      %2015 = vmatpush.bf16.msra.mxu0 0
      %2016 = vmatpush.bf16.msra.mxu0 0
      %2017 = vmatpush.bf16.msra.mxu0 0
      %2018 = vmatpush.bf16.msra.mxu0 0
      %2019 = vmatpush.bf16.msra.mxu0 0
      %2020 = vmatpush.bf16.msra.mxu0 0
      %2021 = vmatpush.bf16.msra.mxu0 0
      %2022 = vmatpush.bf16.msra.mxu0 %v2013
      %2023 = vmatmul.bf16.gmra.mxu0 %v2007
      %v2024 = vpop.f32.mrf.mxu0
      %v2025 = vadd.f32 %v1985, %v2024
      %v2026 = vpop.f32.mrf.mxu0
      %v2027 = vadd.f32 %v1990, %v2026
      %2028 = vmatmul.bf16.gmra.mxu0 %v2010
      %v2029 = vpop.f32.mrf.mxu0
      %v2030 = vadd.f32 %v1995, %v2029
      %v2031 = vpop.f32.mrf.mxu0
      %2032 = vdwg.mxu0
      %v2033 = vmul.f32 %v2025, 0.70710677
      %v2034 = vmul.f32 %v2033, %v2027
      %v2035 = vpack.c.bf16 %v2034, %v2034
      %v2037 = vsel %vm2005, %v1931, 0
      %v2040 = vsel %vm995, %v2035, 0
      %2042 = vmatpush.bf16.msra.mxu0 0
      %2043 = vmatpush.bf16.msra.mxu0 0
      %2044 = vmatpush.bf16.msra.mxu0 0
      %2045 = vmatpush.bf16.msra.mxu0 0
      %2046 = vmatpush.bf16.msra.mxu0 0
      %2047 = vmatpush.bf16.msra.mxu0 0
      %2048 = vmatpush.bf16.msra.mxu0 0
      %2049 = vmatpush.bf16.msra.mxu0 %v2040
      %2050 = vmatmul.bf16.gmra.mxu0 %v2037
      %v2051 = vpop.f32.mrf.mxu0
      %v2052 = vadd.f32 0.0, %v2051
      %v2053 = vpop.f32.mrf.mxu0
      %2054 = vdwg.mxu0
      %2055 = vrot.lane.b32.xlu0 %v2027, 112
      %v2056 = vpop.permute.xlu0 %2055
      %2057 = vrot.lane.b32.xlu0 %v2030, 112
      %v2058 = vpop.permute.xlu0 %2057
      %v2059 = vmul.f32 %v2033, %v2056
      %v2060 = vpack.c.bf16 %v2059, %v2059
      %v2062 = vsel %vm995, %v2060, 0
      %2064 = vmatpush.bf16.msra.mxu0 0
      %2065 = vmatpush.bf16.msra.mxu0 0
      %2066 = vmatpush.bf16.msra.mxu0 0
      %2067 = vmatpush.bf16.msra.mxu0 0
      %2068 = vmatpush.bf16.msra.mxu0 0
      %2069 = vmatpush.bf16.msra.mxu0 0
      %2070 = vmatpush.bf16.msra.mxu0 0
      %2071 = vmatpush.bf16.msra.mxu0 %v2062
      %2072 = vmatmul.bf16.gmra.mxu0 %v2037
      %v2073 = vpop.f32.mrf.mxu0
      %v2074 = vadd.f32 0.0, %v2073
      %v2075 = vpop.f32.mrf.mxu0
      %2076 = vdwg.mxu0
      %v2077 = vmax.f32 %v2052, %v2074
      %v2078 = vsub.f32 %v2052, %v2077
      %v2079 = vmul.f32 %v2078, 1.442695
      %v2080 = vpow.pop %v2079
      %v2081 = vsub.f32 %v2074, %v2077
      %v2082 = vmul.f32 %v2081, 1.442695
      %v2083 = vpow.pop %v2082
      %v2084 = vadd.f32 %v2080, %v2083
      %v2085 = vmul.f32 %v2080, %v2030
      %v2086 = vmul.f32 %v2083, %v2058
      %v2087 = vadd.f32 %v2085, %v2086
      %2088 = vrot.lane.b32.xlu0 %v2027, 96
      %v2089 = vpop.permute.xlu0 %2088
      %2090 = vrot.lane.b32.xlu0 %v2030, 96
      %v2091 = vpop.permute.xlu0 %2090
      %v2092 = vmul.f32 %v2033, %v2089
      %v2093 = vpack.c.bf16 %v2092, %v2092
      %v2095 = vsel %vm995, %v2093, 0
      %2097 = vmatpush.bf16.msra.mxu0 0
      %2098 = vmatpush.bf16.msra.mxu0 0
      %2099 = vmatpush.bf16.msra.mxu0 0
      %2100 = vmatpush.bf16.msra.mxu0 0
      %2101 = vmatpush.bf16.msra.mxu0 0
      %2102 = vmatpush.bf16.msra.mxu0 0
      %2103 = vmatpush.bf16.msra.mxu0 0
      %2104 = vmatpush.bf16.msra.mxu0 %v2095
      %2105 = vmatmul.bf16.gmra.mxu0 %v2037
      %v2106 = vpop.f32.mrf.mxu0
      %v2107 = vadd.f32 0.0, %v2106
      %v2108 = vpop.f32.mrf.mxu0
      %2109 = vdwg.mxu0
      %v2110 = vmax.f32 %v2077, %v2107
      %v2111 = vsub.f32 %v2077, %v2110
      %v2112 = vmul.f32 %v2111, 1.442695
      %v2113 = vpow.pop %v2112
      %v2114 = vsub.f32 %v2107, %v2110
      %v2115 = vmul.f32 %v2114, 1.442695
      %v2116 = vpow.pop %v2115
      %v2117 = vmul.f32 %v2113, %v2084
      %v2118 = vadd.f32 %v2117, %v2116
      %v2119 = vmul.f32 %v2113, %v2087
      %v2120 = vmul.f32 %v2116, %v2091
      %v2121 = vadd.f32 %v2119, %v2120
      %2122 = vrot.lane.b32.xlu0 %v2027, 80
      %v2123 = vpop.permute.xlu0 %2122
      %2124 = vrot.lane.b32.xlu0 %v2030, 80
      %v2125 = vpop.permute.xlu0 %2124
      %v2126 = vmul.f32 %v2033, %v2123
      %v2127 = vpack.c.bf16 %v2126, %v2126
      %v2129 = vsel %vm995, %v2127, 0
      %2131 = vmatpush.bf16.msra.mxu0 0
      %2132 = vmatpush.bf16.msra.mxu0 0
      %2133 = vmatpush.bf16.msra.mxu0 0
      %2134 = vmatpush.bf16.msra.mxu0 0
      %2135 = vmatpush.bf16.msra.mxu0 0
      %2136 = vmatpush.bf16.msra.mxu0 0
      %2137 = vmatpush.bf16.msra.mxu0 0
      %2138 = vmatpush.bf16.msra.mxu0 %v2129
      %2139 = vmatmul.bf16.gmra.mxu0 %v2037
      %v2140 = vpop.f32.mrf.mxu0
      %v2141 = vadd.f32 0.0, %v2140
      %v2142 = vpop.f32.mrf.mxu0
      %2143 = vdwg.mxu0
      %v2144 = vmax.f32 %v2110, %v2141
      %v2145 = vsub.f32 %v2110, %v2144
      %v2146 = vmul.f32 %v2145, 1.442695
      %v2147 = vpow.pop %v2146
      %v2148 = vsub.f32 %v2141, %v2144
      %v2149 = vmul.f32 %v2148, 1.442695
      %v2150 = vpow.pop %v2149
      %v2151 = vmul.f32 %v2147, %v2118
      %v2152 = vadd.f32 %v2151, %v2150
      %v2153 = vmul.f32 %v2147, %v2121
      %v2154 = vmul.f32 %v2150, %v2125
      %v2155 = vadd.f32 %v2153, %v2154
      %2156 = vrot.lane.b32.xlu0 %v2027, 64
      %v2157 = vpop.permute.xlu0 %2156
      %2158 = vrot.lane.b32.xlu0 %v2030, 64
      %v2159 = vpop.permute.xlu0 %2158
      %v2160 = vmul.f32 %v2033, %v2157
      %v2161 = vpack.c.bf16 %v2160, %v2160
      %v2163 = vsel %vm995, %v2161, 0
      %2165 = vmatpush.bf16.msra.mxu0 0
      %2166 = vmatpush.bf16.msra.mxu0 0
      %2167 = vmatpush.bf16.msra.mxu0 0
      %2168 = vmatpush.bf16.msra.mxu0 0
      %2169 = vmatpush.bf16.msra.mxu0 0
      %2170 = vmatpush.bf16.msra.mxu0 0
      %2171 = vmatpush.bf16.msra.mxu0 0
      %2172 = vmatpush.bf16.msra.mxu0 %v2163
      %2173 = vmatmul.bf16.gmra.mxu0 %v2037
      %v2174 = vpop.f32.mrf.mxu0
      %v2175 = vadd.f32 0.0, %v2174
      %v2176 = vpop.f32.mrf.mxu0
      %2177 = vdwg.mxu0
      %v2178 = vmax.f32 %v2144, %v2175
      %v2179 = vsub.f32 %v2144, %v2178
      %v2180 = vmul.f32 %v2179, 1.442695
      %v2181 = vpow.pop %v2180
      %v2182 = vsub.f32 %v2175, %v2178
      %v2183 = vmul.f32 %v2182, 1.442695
      %v2184 = vpow.pop %v2183
      %v2185 = vmul.f32 %v2181, %v2152
      %v2186 = vadd.f32 %v2185, %v2184
      %v2187 = vmul.f32 %v2181, %v2155
      %v2188 = vmul.f32 %v2184, %v2159
      %v2189 = vadd.f32 %v2187, %v2188
      %2190 = vrot.lane.b32.xlu0 %v2027, 48
      %v2191 = vpop.permute.xlu0 %2190
      %2192 = vrot.lane.b32.xlu0 %v2030, 48
      %v2193 = vpop.permute.xlu0 %2192
      %v2194 = vmul.f32 %v2033, %v2191
      %v2195 = vpack.c.bf16 %v2194, %v2194
      %v2197 = vsel %vm995, %v2195, 0
      %2199 = vmatpush.bf16.msra.mxu0 0
      %2200 = vmatpush.bf16.msra.mxu0 0
      %2201 = vmatpush.bf16.msra.mxu0 0
      %2202 = vmatpush.bf16.msra.mxu0 0
      %2203 = vmatpush.bf16.msra.mxu0 0
      %2204 = vmatpush.bf16.msra.mxu0 0
      %2205 = vmatpush.bf16.msra.mxu0 0
      %2206 = vmatpush.bf16.msra.mxu0 %v2197
      %2207 = vmatmul.bf16.gmra.mxu0 %v2037
      %v2208 = vpop.f32.mrf.mxu0
      %v2209 = vadd.f32 0.0, %v2208
      %v2210 = vpop.f32.mrf.mxu0
      %2211 = vdwg.mxu0
      %v2212 = vmax.f32 %v2178, %v2209
      %v2213 = vsub.f32 %v2178, %v2212
      %v2214 = vmul.f32 %v2213, 1.442695
      %v2215 = vpow.pop %v2214
      %v2216 = vsub.f32 %v2209, %v2212
      %v2217 = vmul.f32 %v2216, 1.442695
      %v2218 = vpow.pop %v2217
      %v2219 = vmul.f32 %v2215, %v2186
      %v2220 = vadd.f32 %v2219, %v2218
      %v2221 = vmul.f32 %v2215, %v2189
      %v2222 = vmul.f32 %v2218, %v2193
      %v2223 = vadd.f32 %v2221, %v2222
      %2224 = vrot.lane.b32.xlu0 %v2027, 32
      %v2225 = vpop.permute.xlu0 %2224
      %2226 = vrot.lane.b32.xlu0 %v2030, 32
      %v2227 = vpop.permute.xlu0 %2226
      %v2228 = vmul.f32 %v2033, %v2225
      %v2229 = vpack.c.bf16 %v2228, %v2228
      %v2231 = vsel %vm995, %v2229, 0
      %2233 = vmatpush.bf16.msra.mxu0 0
      %2234 = vmatpush.bf16.msra.mxu0 0
      %2235 = vmatpush.bf16.msra.mxu0 0
      %2236 = vmatpush.bf16.msra.mxu0 0
      %2237 = vmatpush.bf16.msra.mxu0 0
      %2238 = vmatpush.bf16.msra.mxu0 0
      %2239 = vmatpush.bf16.msra.mxu0 0
      %2240 = vmatpush.bf16.msra.mxu0 %v2231
      %2241 = vmatmul.bf16.gmra.mxu0 %v2037
      %v2242 = vpop.f32.mrf.mxu0
      %v2243 = vadd.f32 0.0, %v2242
      %v2244 = vpop.f32.mrf.mxu0
      %2245 = vdwg.mxu0
      %v2246 = vmax.f32 %v2212, %v2243
      %v2247 = vsub.f32 %v2212, %v2246
      %v2248 = vmul.f32 %v2247, 1.442695
      %v2249 = vpow.pop %v2248
      %v2250 = vsub.f32 %v2243, %v2246
      %v2251 = vmul.f32 %v2250, 1.442695
      %v2252 = vpow.pop %v2251
      %v2253 = vmul.f32 %v2249, %v2220
      %v2254 = vadd.f32 %v2253, %v2252
      %v2255 = vmul.f32 %v2249, %v2223
      %v2256 = vmul.f32 %v2252, %v2227
      %v2257 = vadd.f32 %v2255, %v2256
      %2258 = vrot.lane.b32.xlu0 %v2027, 16
      %v2259 = vpop.permute.xlu0 %2258
      %2260 = vrot.lane.b32.xlu0 %v2030, 16
      %v2261 = vpop.permute.xlu0 %2260
      %v2262 = vmul.f32 %v2033, %v2259
      %v2263 = vpack.c.bf16 %v2262, %v2262
      %v2265 = vsel %vm995, %v2263, 0
      %2267 = vmatpush.bf16.msra.mxu0 0
      %2268 = vmatpush.bf16.msra.mxu0 0
      %2269 = vmatpush.bf16.msra.mxu0 0
      %2270 = vmatpush.bf16.msra.mxu0 0
      %2271 = vmatpush.bf16.msra.mxu0 0
      %2272 = vmatpush.bf16.msra.mxu0 0
      %2273 = vmatpush.bf16.msra.mxu0 0
      %2274 = vmatpush.bf16.msra.mxu0 %v2265
      %2275 = vmatmul.bf16.gmra.mxu0 %v2037
      %v2276 = vpop.f32.mrf.mxu0
      %v2277 = vadd.f32 0.0, %v2276
      %v2278 = vpop.f32.mrf.mxu0
      %2279 = vdwg.mxu0
      %v2280 = vmax.f32 %v2246, %v2277
      %v2281 = vsub.f32 %v2246, %v2280
      %v2282 = vmul.f32 %v2281, 1.442695
      %v2283 = vpow.pop %v2282
      %v2284 = vsub.f32 %v2277, %v2280
      %v2285 = vmul.f32 %v2284, 1.442695
      %v2286 = vpow.pop %v2285
      %v2287 = vmul.f32 %v2283, %v2254
      %v2288 = vadd.f32 %v2287, %v2286
      %v2289 = vmul.f32 %v2283, %v2257
      %v2290 = vmul.f32 %v2286, %v2261
      %v2291 = vadd.f32 %v2289, %v2290
      %v2292 = vrcp.pop %v2288
      %v2293 = vmul.f32 %v2291, %v2292
      %v2294 = vld [vmem:[%s16] sm:$0xf]
      %v2295 = vpack.c.bf16 %v2293, %v2293
      %v2297 = vsel %vm2005, %v2294, 0
      %v2300 = vsel %vm995, %v2295, 0
      %2302 = vmatpush.bf16.msra.mxu0 0
      %2303 = vmatpush.bf16.msra.mxu0 0
      %2304 = vmatpush.bf16.msra.mxu0 0
      %2305 = vmatpush.bf16.msra.mxu0 0
      %2306 = vmatpush.bf16.msra.mxu0 0
      %2307 = vmatpush.bf16.msra.mxu0 0
      %2308 = vmatpush.bf16.msra.mxu0 0
      %2309 = vmatpush.bf16.msra.mxu0 %v2300
      %2310 = vmatmul.bf16.gmra.mxu0 %v2297
      %v2311 = vpop.f32.mrf.mxu0
      %v2312 = vadd.f32 0.0, %v2311
      %v2313 = vpop.f32.mrf.mxu0
      %2314 = vdwg.mxu0
      %v2315 = vadd.f32 %v1930, %v2312
      %v2316 = vld [vmem:[%s17] sm:$0xff]
      %2318 = vset.pattern.permute.xlu0 0
      %2319 = vperm.xlu0 %2318, %v2316
      %v2320 = vpop.permute.xlu0 %2319
      %v2322 = vadd.f32 %v2315, %v2320
      %s2323 = scalar_lea.vmem %s12, 16
      %v2324 = vld [vmem:[%s2323] sm:$0xff]
      %s2325 = scalar_lea.vmem %s12, 24
      %v2326 = vld [vmem:[%s2325] sm:$0xff]
      %v2327 = vrot.slane %v2322, 4
      %v2328 = vadd.f32 %v2322, %v2327
      %v2329 = vrot.slane %v2328, 2
      %v2330 = vadd.f32 %v2328, %v2329
      %v2331 = vrot.slane %v2330, 1
      %v2332 = vadd.f32 %v2330, %v2331
      %v2333 = vmul.f32 %v2332, 0.125
      %v2334 = vsub.f32 %v2322, %v2333
      %v2335 = vmul.f32 %v2334, %v2334
      %v2336 = vrot.slane %v2335, 4
      %v2337 = vadd.f32 %v2335, %v2336
      %v2338 = vrot.slane %v2337, 2
      %v2339 = vadd.f32 %v2337, %v2338
      %v2340 = vrot.slane %v2339, 1
      %v2341 = vadd.f32 %v2339, %v2340
      %v2342 = vmul.f32 %v2341, 0.125
      %v2343 = vadd.f32 %v2342, 1e-05
      %v2344 = vrsqrt.pop %v2343
      %v2345 = vmul.f32 %v2344, %v2343
      %v2346 = vmul.f32 %v2345, %v2344
      %v2347 = vmul.f32 0.5, %v2346
      %v2348 = vsub.f32 1.5, %v2347
      %v2349 = vmul.f32 %v2344, %v2348
      %vm2350 = vweird.f32 %v2343
      %vm2351 = vweird.f32 %v2344
      %vm2352 = vmor %vm2350, %vm2351
      %v2353 = vsel %vm2352, %v2344, %v2349
      %v2354 = vmul.f32 %v2334, %v2353
      %2356 = vset.pattern.permute.xlu0 0
      %2357 = vperm.xlu0 %2356, %v2324
      %v2358 = vpop.permute.xlu0 %2357
      %v2360 = vmul.f32 %v2354, %v2358
      %2362 = vset.pattern.permute.xlu0 0
      %2363 = vperm.xlu0 %2362, %v2326
      %v2364 = vpop.permute.xlu0 %2363
      %v2366 = vadd.f32 %v2360, %v2364
      %v2367 = vld [vmem:[%s18] sm:$0xf]
      %v2368 = vld [vmem:[%s18 + $0x4] sm:$0xf]
      %v2369 = vld [vmem:[%s18 + $0x8] sm:$0xf]
      %v2370 = vld [vmem:[%s18 + $0xc] sm:$0xf]
      %v2371 = vld [vmem:[%s18 + $0x10] sm:$0xf]
      %v2372 = vld [vmem:[%s18 + $0x14] sm:$0xf]
      %v2373 = vld [vmem:[%s18 + $0x18] sm:$0xf]
      %v2374 = vld [vmem:[%s18 + $0x1c] sm:$0xf]
      %v2375 = vpack.c.bf16 %v2366, %v2366
      %v2376 = vld [vmem:[%s19] sm:$0xff]
      %v2377 = vld [vmem:[%s19 + $0x8] sm:$0xff]
      %v2378 = vld [vmem:[%s19 + $0x10] sm:$0xff]
      %v2379 = vld [vmem:[%s19 + $0x18] sm:$0xff]
      %v2380 = vld [vmem:[%s19 + $0x20] sm:$0xff]
      %v2381 = vld [vmem:[%s19 + $0x28] sm:$0xff]
      %v2382 = vld [vmem:[%s19 + $0x30] sm:$0xff]
      %v2383 = vld [vmem:[%s19 + $0x38] sm:$0xff]
      %2385 = vset.pattern.permute.xlu0 0
      %2386 = vperm.xlu0 %2385, %v2376
      %v2387 = vpop.permute.xlu0 %2386
      %2390 = vset.pattern.permute.xlu0 0
      %2391 = vperm.xlu0 %2390, %v2377
      %v2392 = vpop.permute.xlu0 %2391
      %2395 = vset.pattern.permute.xlu0 0
      %2396 = vperm.xlu0 %2395, %v2378
      %v2397 = vpop.permute.xlu0 %2396
      %2400 = vset.pattern.permute.xlu0 0
      %2401 = vperm.xlu0 %2400, %v2379
      %v2402 = vpop.permute.xlu0 %2401
      %2405 = vset.pattern.permute.xlu0 0
      %2406 = vperm.xlu0 %2405, %v2380
      %v2407 = vpop.permute.xlu0 %2406
      %2410 = vset.pattern.permute.xlu0 0
      %2411 = vperm.xlu0 %2410, %v2381
      %v2412 = vpop.permute.xlu0 %2411
      %2415 = vset.pattern.permute.xlu0 0
      %2416 = vperm.xlu0 %2415, %v2382
      %v2417 = vpop.permute.xlu0 %2416
      %2420 = vset.pattern.permute.xlu0 0
      %2421 = vperm.xlu0 %2420, %v2383
      %v2422 = vpop.permute.xlu0 %2421
      %v2432 = vunpack.c.l.b16 %v2367
      %v2433 = vunpack.c.l.b16 %v2368
      %v2434 = vunpack.c.l.b16 %v2369
      %v2435 = vunpack.c.l.b16 %v2370
      %v2436 = vunpack.c.l.b16 %v2371
      %v2437 = vunpack.c.l.b16 %v2372
      %v2438 = vunpack.c.l.b16 %v2373
      %v2439 = vunpack.c.l.b16 %v2374
      %v2440 = vpack.c.b16 %v2433, %v2432
      %v2441 = vpack.c.b16 %v2435, %v2434
      %v2442 = vpack.c.b16 %v2437, %v2436
      %v2443 = vpack.c.b16 %v2439, %v2438
      %v2445 = vsel %vm2005, %v2440, 0
      %v2448 = vsel %vm2005, %v2441, 0
      %v2451 = vsel %vm2005, %v2442, 0
      %v2454 = vsel %vm2005, %v2443, 0
      %v2457 = vsel %vm995, %v2375, 0
      %2459 = vmatpush.bf16.msra.mxu0 0
      %2460 = vmatpush.bf16.msra.mxu0 0
      %2461 = vmatpush.bf16.msra.mxu0 0
      %2462 = vmatpush.bf16.msra.mxu0 0
      %2463 = vmatpush.bf16.msra.mxu0 0
      %2464 = vmatpush.bf16.msra.mxu0 0
      %2465 = vmatpush.bf16.msra.mxu0 0
      %2466 = vmatpush.bf16.msra.mxu0 %v2457
      %2467 = vmatmul.bf16.gmra.mxu0 %v2445
      %v2468 = vpop.f32.mrf.mxu0
      %v2469 = vadd.f32 %v2387, %v2468
      %v2470 = vpop.f32.mrf.mxu0
      %v2471 = vadd.f32 %v2392, %v2470
      %2472 = vmatmul.bf16.gmra.mxu0 %v2448
      %v2473 = vpop.f32.mrf.mxu0
      %v2474 = vadd.f32 %v2397, %v2473
      %v2475 = vpop.f32.mrf.mxu0
      %v2476 = vadd.f32 %v2402, %v2475
      %2477 = vmatmul.bf16.gmra.mxu0 %v2451
      %v2478 = vpop.f32.mrf.mxu0
      %v2479 = vadd.f32 %v2407, %v2478
      %v2480 = vpop.f32.mrf.mxu0
      %v2481 = vadd.f32 %v2412, %v2480
      %2482 = vmatmul.bf16.gmra.mxu0 %v2454
      %v2483 = vpop.f32.mrf.mxu0
      %v2484 = vadd.f32 %v2417, %v2483
      %v2485 = vpop.f32.mrf.mxu0
      %v2486 = vadd.f32 %v2422, %v2485
      %2487 = vdwg.mxu0
      %v2488 = vmax.f32 %v2469, 0.0
      %v2489 = vmax.f32 %v2471, 0.0
      %v2490 = vmax.f32 %v2474, 0.0
      %v2491 = vmax.f32 %v2476, 0.0
      %v2492 = vmax.f32 %v2479, 0.0
      %v2493 = vmax.f32 %v2481, 0.0
      %v2494 = vmax.f32 %v2484, 0.0
      %v2495 = vmax.f32 %v2486, 0.0
      %v2496 = vld [vmem:[%s20] sm:$0xf]
      %v2497 = vpack.c.bf16 %v2489, %v2488
      %v2498 = vpack.c.bf16 %v2491, %v2490
      %v2499 = vpack.c.bf16 %v2493, %v2492
      %v2500 = vpack.c.bf16 %v2495, %v2494
      %vm2501 = vcmask 523264
      %v2503 = vsel %vm2501, %v2496, 0
      %2505 = vmatpush.bf16.msra.mxu0 0
      %2506 = vmatpush.bf16.msra.mxu0 0
      %2507 = vmatpush.bf16.msra.mxu0 0
      %2508 = vmatpush.bf16.msra.mxu0 0
      %2509 = vmatpush.bf16.msra.mxu0 %v2500
      %2510 = vmatpush.bf16.msra.mxu0 %v2499
      %2511 = vmatpush.bf16.msra.mxu0 %v2498
      %2512 = vmatpush.bf16.msra.mxu0 %v2497
      %2513 = vmatmul.bf16.gmra.mxu0 %v2503
      %v2514 = vpop.f32.mrf.mxu0
      %v2515 = vadd.f32 0.0, %v2514
      %v2516 = vpop.f32.mrf.mxu0
      %2517 = vdwg.mxu0
      %v2518 = vadd.f32 %v2322, %v2515
      %v2519 = vld [vmem:[%s21] sm:$0xff]
      %2521 = vset.pattern.permute.xlu0 0
      %2522 = vperm.xlu0 %2521, %v2519
      %v2523 = vpop.permute.xlu0 %2522
      %v2525 = vadd.f32 %v2518, %v2523
      %2526 = vst [vmem:[#allocation2] sm:$0xff] %v2525
      %v2527 = vld [vmem:[%s850] sm:$0xff]
      %v2528 = vld [vmem:[%s850 + $0x8] sm:$0xff]
      %2529 = vst [vmem:[#allocation2 + $0x8] sm:$0xff] %v2527
      %2530 = vst [vmem:[#allocation2 + $0x10] sm:$0xff] %v2528
      %v2531 = vld [vmem:[%s22] sm:$0xf]
      %v2532 = vld [vmem:[%s22 + $0x4] sm:$0xf]
      %v2533 = vld [vmem:[#allocation2] sm:$0xff]
      %v2534 = vld [vmem:[#allocation2 + $0x8] sm:$0xff]
      %v2535 = vld [vmem:[#allocation2 + $0x10] sm:$0xff]
      %v2536 = vpack.c.bf16 %v2534, %v2533
      %v2537 = vpack.c.bf16 %v2535, %v2535
      %v2538 = vld [vmem:[%s23] sm:$0xff]
      %v2539 = vld [vmem:[%s23 + $0x8] sm:$0xff]
      %2541 = vset.pattern.permute.xlu0 0
      %2542 = vperm.xlu0 %2541, %v2538
      %v2543 = vpop.permute.xlu0 %2542
      %2546 = vset.pattern.permute.xlu0 0
      %2547 = vperm.xlu0 %2546, %v2539
      %v2548 = vpop.permute.xlu0 %2547
      %v2552 = vunpack.c.l.b16 %v2531
      %v2553 = vunpack.c.l.b16 %v2532
      %v2554 = vpack.c.b16 %v2553, %v2552
      %v2556 = vsel %vm991, %v2554, 0
      %v2559 = vsel %vm995, %v2537, 0
      %2561 = vmatpush.bf16.msra.mxu0 0
      %2562 = vmatpush.bf16.msra.mxu0 0
      %2563 = vmatpush.bf16.msra.mxu0 0
      %2564 = vmatpush.bf16.msra.mxu0 0
      %2565 = vmatpush.bf16.msra.mxu0 0
      %2566 = vmatpush.bf16.msra.mxu0 0
      %2567 = vmatpush.bf16.msra.mxu0 %v2559
      %2568 = vmatpush.bf16.msra.mxu0 %v2536
      %2569 = vmatmul.bf16.gmra.mxu0 %v2556
      %v2570 = vpop.f32.mrf.mxu0
      %v2571 = vadd.f32 %v2543, %v2570
      %v2572 = vpop.f32.mrf.mxu0
      %v2573 = vadd.f32 %v2548, %v2572
      %2574 = vdwg.mxu0
      %v2575 = vxor.u32 %v2571, 2147483648
      %v2576 = vmul.f32 %v2575, 1.442695
      %v2577 = vpow.pop %v2576
      %v2578 = vadd.f32 %v2577, 1.0
      %v2579 = vrcp.pop %v2578
      %v2580 = vmul.f32 %v2578, %v2579
      %v2581 = vsub.f32 1.0, %v2580
      %v2582 = vmul.f32 %v2579, %v2581
      %v2583 = vadd.f32 %v2579, %v2582
      %vm2584 = vweird.f32 %v2578
      %vm2585 = vweird.f32 %v2579
      %vm2586 = vmor %vm2584, %vm2585
      %v2587 = vsel %vm2586, %v2579, %v2583
      %v2588 = vand.u32 2147483647, %v2578
      %vm2589 = vcmp.eq.f32.partialorder %v2588, 8.507059e+37
      %v2590 = vand.u32 %v2578, 2147483648
      %v2591 = vor.u32 1.1754944e-38, %v2590
      %v2592 = vsel %vm2589, %v2591, %v2587
      %v2593 = vmul.f32 1.0, %v2592
      %v2594 = vtanh.pop %v2573
      %v2595 = vmul.f32 %v2593, %v2594
      %v2596 = vld [vmem:[%s24] sm:$0xf]
      %v2597 = vld [vmem:[%s24 + $0x4] sm:$0xf]
      %v2598 = vpack.c.bf16 %v2595, %v2595
      %v2599 = vld [vmem:[%s25] sm:$0xff]
      %v2600 = vld [vmem:[%s25 + $0x8] sm:$0xff]
      %2602 = vset.pattern.permute.xlu0 0
      %2603 = vperm.xlu0 %2602, %v2599
      %v2604 = vpop.permute.xlu0 %2603
      %2607 = vset.pattern.permute.xlu0 0
      %2608 = vperm.xlu0 %2607, %v2600
      %v2609 = vpop.permute.xlu0 %2608
      %v2613 = vunpack.c.l.b16 %v2596
      %v2614 = vunpack.c.l.b16 %v2597
      %v2615 = vpack.c.b16 %v2614, %v2613
      %v2617 = vsel %vm2005, %v2615, 0
      %v2620 = vsel %vm995, %v2598, 0
      %2622 = vmatpush.bf16.msra.mxu0 0
      %2623 = vmatpush.bf16.msra.mxu0 0
      %2624 = vmatpush.bf16.msra.mxu0 0
      %2625 = vmatpush.bf16.msra.mxu0 0
      %2626 = vmatpush.bf16.msra.mxu0 0
      %2627 = vmatpush.bf16.msra.mxu0 0
      %2628 = vmatpush.bf16.msra.mxu0 0
      %2629 = vmatpush.bf16.msra.mxu0 %v2620
      %2630 = vmatmul.bf16.gmra.mxu0 %v2617
      %v2631 = vpop.f32.mrf.mxu0
      %v2632 = vadd.f32 %v2604, %v2631
      %v2633 = vpop.f32.mrf.mxu0
      %v2634 = vadd.f32 %v2609, %v2633
      %2635 = vdwg.mxu0
      %v2636 = vld [vmem:[%s842] sm:$0xff]
      %v2637 = vadd.f32 %v2636, %v2632
      %v2638 = vmul.f32 %v2637, 0.70710677
      %2639 = vst [vmem:[%s854] sm:$0xff] %v2638
      %2640 = vst [vmem:[%s858] sm:$0xff] %v2634
      %p2641 = scmp.lt.s32.totalorder %s39, 1
      %s2642 = scalar_select %p2641, %s39, 1
      %s2643 = smul.addr %s2642, 8
      %s2644 = scalar_lea.vmem %s26, %s2643
      %p2645 = scmp.lt.s32.totalorder %s39, 1
      %s2646 = scalar_select %p2645, %s39, 1
      %s2647 = smul.addr %s2646, 8
      %s2648 = scalar_lea.vmem %s27, %s2647
      // Predicated region
      $region125: #{residual_conv_block_forward.1} parent=123 // pred_check
        %p2649 = pneg %p618
      $region126: #{residual_conv_block_forward.1} parent=123 // pred_check_branch
        %2651 = sbr.rel (%p2649) target = $region128
      $region127: #{residual_conv_block_forward.1} parent=123 // pred_region
        _
      $region128: #{residual_conv_block_forward.1} parent=123 // pred_fallthru
        _
      // Predicated region
      $region129: #{residual_conv_block_forward.1} parent=123 // pred_check
        %p2652 = pneg %p644
      $region130: #{residual_conv_block_forward.1} parent=123 // pred_check_branch
        %2654 = sbr.rel (%p2652) target = $region132
      $region131: #{residual_conv_block_forward.1} parent=123 // pred_region
        _
      $region132: #{residual_conv_block_forward.1} parent=123 // pred_fallthru
        _
    $region124: #{residual_conv_block_forward.1} parent=5 // pred_fallthru
      _
    %p2655 = scmp.le.s32.totalorder 2, %s34
    // Predicated region
    $region133: #{residual_conv_block_forward.1} parent=5 // pred_check
      %p2656 = pneg %p2655
    $region134: #{residual_conv_block_forward.1} parent=5 // pred_check_branch
      %2658 = sbr.rel (%p2656) target = $region136
    $region135: #{residual_conv_block_forward.1} parent=5 // pred_region
      %s2659 = ssub.s32 %s34, 2
      // Predicated region
      $region137: #{residual_conv_block_forward.1} parent=135 // pred_check
        %p2660 = pneg %p624
      $region138: #{residual_conv_block_forward.1} parent=135 // pred_check_branch
        %2662 = sbr.rel (%p2660) target = $region140
      $region139: #{residual_conv_block_forward.1} parent=135 // pred_region
        %p2663 = scmp.lt.s32.totalorder %s40, 1
        %s2664 = scalar_select %p2663, %s40, 1
        %s2665 = smul.addr %s2664, 8
        %s2666 = scalar_lea.vmem %s26, %s2665
      $region140: #{residual_conv_block_forward.1} parent=135 // pred_fallthru
        _
      // Predicated region
      $region141: #{residual_conv_block_forward.1} parent=135 // pred_check
        %p2667 = pneg %p650
      $region142: #{residual_conv_block_forward.1} parent=135 // pred_check_branch
        %2669 = sbr.rel (%p2667) target = $region144
      $region143: #{residual_conv_block_forward.1} parent=135 // pred_region
        %p2670 = scmp.lt.s32.totalorder %s40, 1
        %s2671 = scalar_select %p2670, %s40, 1
        %s2672 = smul.addr %s2671, 8
        %s2673 = scalar_lea.vmem %s27, %s2672
      $region144: #{residual_conv_block_forward.1} parent=135 // pred_fallthru
        _
    $region136: #{residual_conv_block_forward.1} parent=5 // pred_fallthru
      _
  $region6: #{residual_conv_block_forward.1} parent=0 // loop_footer
    %s38 = sadd.s32 1, %s34
  $region7: #{residual_conv_block_forward.1} parent=0 // loop_footer_branch
    %33 = sbr.rel target = $region3
  $region8: #{residual_conv_block_forward.1} parent=0 // loop_exit
    _

</llo_original>
